<compile_context>
chip_gen: v7x
topology: tpu7x:2x2x1
jax: 0.10.0
libtpu: 0.0.40
codegen_flags: <defaults>
</compile_context>

<pallas_src>
import jax
import jax.numpy as jnp
from jax import lax
from jax.experimental import pallas as pl
from jax.experimental.pallas import tpu as pltpu

_VMEM_BUDGET = 32 * 1024 * 1024   # working-set target: fits v7x's 64 MiB/TC with headroom
_VMEM_LIMIT = 48 * 1024 * 1024    # scoped VMEM limit handed to Mosaic (> defaults on v5e/v6e/v7x)


def _round_up(x, m):
    return (x + m - 1) // m * m


def _pick_tm(n_rows, c1, c2, in_itemsize, out_itemsize, budget_bytes):
    """Largest row tile whose double-buffered working set fits the VMEM budget."""
    # Resident weight gets 2 buffers from the default pipeliner (constant index -> no re-DMA,
    # but 2x VMEM); x / out tiles are double-buffered; allow ~2 f32 LN temporaries per row.
    fixed = 2 * c1 * c2 * in_itemsize + 8 * c2 * 4
    per_row = 2 * (c1 * in_itemsize + c2 * out_itemsize) + 2 * c2 * 4
    tm = (budget_bytes - fixed) // per_row
    tm = int(max(256, min(1024, (tm // 256) * 256)))        # 256-aligned (also 128-aligned for v5e)
    # Keep at least 2 grid steps when the problem allows it -> both v7x TensorCores get work.
    if n_rows >= 2 * 256:
        tm = min(tm, max(256, (n_rows // 2 // 256) * 256))
    # Never exceed the (sublane-padded) row count.
    tm = min(tm, _round_up(n_rows, 8))
    return tm


def _feature_resizer_kernel(x_ref, w_ref, b_ref, g_ref, beta_ref, o_ref):
    # x_ref: (tm, C1) [bf16|f32], w_ref: (C1, C2) [bf16|f32],
    # b_ref/g_ref/beta_ref: (1, C2) f32, o_ref: (tm, C2).
    # Linear: MXU matmul with f32 accumulation, bias added in f32.
    y = jnp.dot(x_ref[...], w_ref[...], preferred_element_type=jnp.float32) + b_ref[...]
    # LayerNorm over the output feature dim, eps=1e-12, all in f32.
    # Single-pass moments: one extra VPU multiply, half the XLU reductions.
    inv_c2 = 1.0 / y.shape[-1]
    s1 = jnp.sum(y, axis=-1, keepdims=True)
    s2 = jnp.sum(y * y, axis=-1, keepdims=True)
    mean = s1 * inv_c2
    var = jnp.maximum(s2 * inv_c2 - mean * mean, 0.0)
    y_norm = (y - mean) * lax.rsqrt(var + 1e-12)
    # Dropout: identity in eval mode.
    o_ref[...] = (y_norm * g_ref[...] + beta_ref[...]).astype(o_ref.dtype)


def feature_resizer(x, w_t, b, gamma, beta, *, tm=None,
                    matmul_dtype=jnp.bfloat16, out_dtype=None):
    """x: (..., C1); w_t: (C1, C2) = PyTorch fc.weight transposed; b/gamma/beta: (C2,).

    Returns (..., C2). The matmul runs in `matmul_dtype` with f32 accumulation; LayerNorm in f32.
    """
    orig_shape = x.shape
    C1 = orig_shape[-1]
    C2 = w_t.shape[1]
    if out_dtype is None:
        out_dtype = x.dtype

    x2 = x.reshape(-1, C1)
    N = x2.shape[0]

    xc = x2.astype(matmul_dtype)
    wc = w_t.astype(matmul_dtype)
    b2 = b.astype(jnp.float32).reshape(1, C2)
    g2 = gamma.astype(jnp.float32).reshape(1, C2)
    beta2 = beta.astype(jnp.float32).reshape(1, C2)

    in_bytes = jnp.dtype(matmul_dtype).itemsize
    out_bytes = jnp.dtype(out_dtype).itemsize
    if tm is None:
        tm = _pick_tm(N, C1, C2, in_bytes, out_bytes, _VMEM_BUDGET)

    n_pad = _round_up(N, tm)
    if n_pad != N:
        xc = jnp.pad(xc, ((0, n_pad - N), (0, 0)))

    out = pl.pallas_call(
        _feature_resizer_kernel,
        out_shape=jax.ShapeDtypeStruct((n_pad, C2), out_dtype),
        grid_spec=pltpu.PrefetchScalarGridSpec(
            num_scalar_prefetch=0,
            grid=(n_pad // tm,),
            in_specs=[
                pl.BlockSpec((tm, C1), lambda i: (i, 0)),   # row tile of x
                pl.BlockSpec((C1, C2), lambda i: (0, 0)),   # resident weight (constant index)
                pl.BlockSpec((1, C2), lambda i: (0, 0)),    # bias
                pl.BlockSpec((1, C2), lambda i: (0, 0)),    # LN gamma
                pl.BlockSpec((1, C2), lambda i: (0, 0)),    # LN beta
            ],
            out_specs=pl.BlockSpec((tm, C2), lambda i: (i, 0)),
        ),
        compiler_params=pltpu.CompilerParams(
            dimension_semantics=("parallel",),
            vmem_limit_bytes=_VMEM_LIMIT,
        ),
    )(xc, wc, b2, g2, beta2)

    if n_pad != N:
        out = out[:N]
    return out.reshape(*orig_shape[:-1], C2)


if __name__ == "__main__":
    # Module config as used in UNINEXT (text features 768 -> vision hidden 256); lane-dense dims.
    B, S, C1, C2 = 2, 512, 768, 256

    key = jax.random.PRNGKey(0)
    k_x, k_w, k_b, k_g, k_beta = jax.random.split(key, 5)

    # encoder_features: (B, S, C1) — the nn.Linear acts on the last dim.
    x = jax.random.normal(k_x, (B, S, C1), dtype=jnp.float32)
    # PyTorch fc.weight is (C2, C1); we store it pre-transposed as (C1, C2).
    w_t = jax.random.normal(k_w, (C1, C2), dtype=jnp.float32) * 0.05
    b = jax.random.normal(k_b, (C2,), dtype=jnp.float32) * 0.01
    gamma = 1.0 + 0.1 * jax.random.normal(k_g, (C2,), dtype=jnp.float32)
    beta = 0.1 * jax.random.normal(k_beta, (C2,), dtype=jnp.float32)

    # Pure-JAX reference (full-precision f32 matmul, two-pass LayerNorm).
    y_ref = jnp.dot(x, w_t, precision=lax.Precision.HIGHEST) + b
    mean = jnp.mean(y_ref, axis=-1, keepdims=True)
    var = jnp.mean((y_ref - mean) ** 2, axis=-1, keepdims=True)
    ref = (y_ref - mean) / jnp.sqrt(var + 1e-12) * gamma + beta

    # f32-matmul path: tight check of the fused kernel math (single-pass moments etc.).
    out_f32 = feature_resizer(x, w_t, b, gamma, beta, matmul_dtype=jnp.float32)
    jax.block_until_ready(out_f32)
    assert out_f32.shape == (B, S, C2)
    assert jnp.allclose(out_f32, ref, atol=1e-3, rtol=1e-3), "f32 path mismatch vs reference"

    # Default bf16-MXU path (f32 accumulation, f32 LayerNorm): looser tolerance for bf16 inputs.
    out = feature_resizer(x, w_t, b, gamma, beta)
    jax.block_until_ready(out)
    assert out.shape == (B, S, C2)
    assert jnp.allclose(out, ref, atol=5e-2, rtol=5e-2), "bf16 path mismatch vs reference"

    print("KERNEL_OK")
</pallas_src>

<mosaic_0001>
module attributes {stable_mosaic.version = 11 : i64} {
  func.func @_feature_resizer_kernel(%arg0: i32, %arg1: memref<512x768xf32, #tpu.memory_space<vmem>>, %arg2: memref<768x256xf32, #tpu.memory_space<vmem>>, %arg3: memref<1x256xf32, #tpu.memory_space<vmem>>, %arg4: memref<1x256xf32, #tpu.memory_space<vmem>>, %arg5: memref<1x256xf32, #tpu.memory_space<vmem>>, %arg6: memref<512x256xf32, #tpu.memory_space<vmem>>) attributes {dimension_semantics = [#tpu.dimension_semantics<parallel>], iteration_bounds = array<i64: 2>, scalar_prefetch = 0 : i64, scratch_operands = 0 : i64, tpu.core_type = #tpu.core_type<tc>, window_params = [{transform_indices = @transform_0, window_bounds = array<i64: 512, 768>}, {pipeline_mode = #tpu.pipeline_mode<synchronous>, transform_indices = @transform_1, window_bounds = array<i64: 768, 256>}, {pipeline_mode = #tpu.pipeline_mode<synchronous>, transform_indices = @transform_2, window_bounds = array<i64: 1, 256>}, {pipeline_mode = #tpu.pipeline_mode<synchronous>, transform_indices = @transform_3, window_bounds = array<i64: 1, 256>}, {pipeline_mode = #tpu.pipeline_mode<synchronous>, transform_indices = @transform_4, window_bounds = array<i64: 1, 256>}, {transform_indices = @transform_5, window_bounds = array<i64: 512, 256>}]} {
    %c0 = arith.constant 0 : index
    %c0_0 = arith.constant 0 : index
    %0 = vector.load %arg1[%c0, %c0_0] : memref<512x768xf32, #tpu.memory_space<vmem>>, vector<512x768xf32>
    %c0_1 = arith.constant 0 : index
    %c0_2 = arith.constant 0 : index
    %1 = vector.load %arg2[%c0_1, %c0_2] : memref<768x256xf32, #tpu.memory_space<vmem>>, vector<768x256xf32>
    %cst = arith.constant dense<0.000000e+00> : vector<512x256xf32>
    %2 = tpu.matmul %0, %1, %cst {dimension_numbers = #tpu.dot_dimension_numbers<[1], [0], [0], [1], [0, 0, 1, 1], [], []>} : vector<512x768xf32>, vector<768x256xf32>, vector<512x256xf32> -> vector<512x256xf32>
    %c0_3 = arith.constant 0 : index
    %c0_4 = arith.constant 0 : index
    %3 = vector.load %arg3[%c0_3, %c0_4] : memref<1x256xf32, #tpu.memory_space<vmem>>, vector<1x256xf32>
    %4 = vector.broadcast %3 : vector<1x256xf32> to vector<512x256xf32>
    %5 = arith.addf %2, %4 : vector<512x256xf32>
    %cst_5 = arith.constant dense<0.000000e+00> : vector<512xf32>
    %6 = vector.multi_reduction <add>, %5, %cst_5 [1] : vector<512x256xf32> to vector<512xf32>
    %7 = vector.shape_cast %6 : vector<512xf32> to vector<512x1xf32>
    %8 = arith.mulf %5, %5 : vector<512x256xf32>
    %cst_6 = arith.constant dense<0.000000e+00> : vector<512xf32>
    %9 = vector.multi_reduction <add>, %8, %cst_6 [1] : vector<512x256xf32> to vector<512xf32>
    %10 = vector.shape_cast %9 : vector<512xf32> to vector<512x1xf32>
    %cst_7 = arith.constant 3.906250e-03 : f32
    %11 = vector.broadcast %cst_7 : f32 to vector<512x1xf32>
    %12 = arith.mulf %7, %11 : vector<512x1xf32>
    %cst_8 = arith.constant 3.906250e-03 : f32
    %13 = vector.broadcast %cst_8 : f32 to vector<512x1xf32>
    %14 = arith.mulf %10, %13 : vector<512x1xf32>
    %15 = arith.mulf %12, %12 : vector<512x1xf32>
    %16 = arith.subf %14, %15 : vector<512x1xf32>
    %cst_9 = arith.constant 0.000000e+00 : f32
    %17 = vector.broadcast %cst_9 : f32 to vector<512x1xf32>
    %18 = arith.maximumf %16, %17 : vector<512x1xf32>
    %19 = vector.broadcast %12 : vector<512x1xf32> to vector<512x256xf32>
    %20 = arith.subf %5, %19 : vector<512x256xf32>
    %cst_10 = arith.constant 9.99999996E-13 : f32
    %21 = vector.broadcast %cst_10 : f32 to vector<512x1xf32>
    %22 = arith.addf %18, %21 : vector<512x1xf32>
    %23 = math.rsqrt %22 : vector<512x1xf32>
    %24 = vector.broadcast %23 : vector<512x1xf32> to vector<512x256xf32>
    %25 = arith.mulf %20, %24 : vector<512x256xf32>
    %c0_11 = arith.constant 0 : index
    %c0_12 = arith.constant 0 : index
    %26 = vector.load %arg4[%c0_11, %c0_12] : memref<1x256xf32, #tpu.memory_space<vmem>>, vector<1x256xf32>
    %27 = vector.broadcast %26 : vector<1x256xf32> to vector<512x256xf32>
    %28 = arith.mulf %25, %27 : vector<512x256xf32>
    %c0_13 = arith.constant 0 : index
    %c0_14 = arith.constant 0 : index
    %29 = vector.load %arg5[%c0_13, %c0_14] : memref<1x256xf32, #tpu.memory_space<vmem>>, vector<1x256xf32>
    %30 = vector.broadcast %29 : vector<1x256xf32> to vector<512x256xf32>
    %31 = arith.addf %28, %30 : vector<512x256xf32>
    %c0_15 = arith.constant 0 : index
    %c0_16 = arith.constant 0 : index
    %32 = vector.load %arg6[%c0_15, %c0_16] : memref<512x256xf32, #tpu.memory_space<vmem>>, vector<512x256xf32>
    tpu.vector_store %arg6[%c0_15, %c0_16], %31 {strides = array<i32>} : memref<512x256xf32, #tpu.memory_space<vmem>>, vector<512x256xf32>,
    return
  }
  func.func @transform_0(%arg0: i32) -> (i32, i32) {
    %c0_i32 = arith.constant 0 : i32
    %c0_i32_0 = arith.constant 0 : i32
    return %arg0, %c0_i32 : i32, i32
  }
  func.func @transform_1(%arg0: i32) -> (i32, i32) {
    %c0_i32 = arith.constant 0 : i32
    %c0_i32_0 = arith.constant 0 : i32
    %c0_i32_1 = arith.constant 0 : i32
    return %c0_i32, %c0_i32_0 : i32, i32
  }
  func.func @transform_2(%arg0: i32) -> (i32, i32) {
    %c0_i32 = arith.constant 0 : i32
    %c0_i32_0 = arith.constant 0 : i32
    %c0_i32_1 = arith.constant 0 : i32
    return %c0_i32, %c0_i32_0 : i32, i32
  }
  func.func @transform_3(%arg0: i32) -> (i32, i32) {
    %c0_i32 = arith.constant 0 : i32
    %c0_i32_0 = arith.constant 0 : i32
    %c0_i32_1 = arith.constant 0 : i32
    return %c0_i32, %c0_i32_0 : i32, i32
  }
  func.func @transform_4(%arg0: i32) -> (i32, i32) {
    %c0_i32 = arith.constant 0 : i32
    %c0_i32_0 = arith.constant 0 : i32
    %c0_i32_1 = arith.constant 0 : i32
    return %c0_i32, %c0_i32_0 : i32, i32
  }
  func.func @transform_5(%arg0: i32) -> (i32, i32) {
    %c0_i32 = arith.constant 0 : i32
    %c0_i32_0 = arith.constant 0 : i32
    return %arg0, %c0_i32 : i32, i32
  }
}

</mosaic_0001>

<llo_original>
// kernel: tpu_custom_call.1
$region0: #{tpu_custom_call.1}
  #allocation0 [shape = 'u32[]', space=smem, size = 0x4, offset = 0x4, fixed_abs, tag = 'smem constant byte address 0x4 - core index']
  #allocation1 [shape = 'u32[144,128]{1,0:T(1,128)}', space=vmem, size = 0x12000, scoped, tag = 'internal scratch']
  %s0 = inlined_call_operand.hbm [shape: f32[1024,768], index: 0, kind: input, shape index: {}]
  %s1 = inlined_call_operand.hbm [shape: f32[768,256], index: 1, kind: input, shape index: {}]
  %s2 = inlined_call_operand.hbm [shape: f32[1,256], index: 2, kind: input, shape index: {}]
  %s3 = inlined_call_operand.hbm [shape: f32[1,256], index: 3, kind: input, shape index: {}]
  %s4 = inlined_call_operand.hbm [shape: f32[1,256], index: 4, kind: input, shape index: {}]
  %s5 = inlined_call_operand.hbm [shape: f32[1024,256], index: 5, kind: output, shape index: {}]
  %s6 = sld [smem:[#allocation0]]
  $region73: #{tpu_custom_call.1} parent=0
    _
  %s8 = ssub.s32 1, %s6
  %s9 = scalar_select 0, %s8, %s6
  $region1: #{tpu_custom_call.1} parent=0
    #allocation2 [shape = 'u8[3145728]{0}', space=vmem, size = 0x300000, scoped, tag = 'input window, operand 0']
    #allocation3 [shape = 's32[2]{0}', space=sflag, size = 0x8, scoped, tag = 'scoped memory for tpu_custom_call.1']
    #allocation4 [shape = 's32[2]{0}', space=sflag, size = 0x8, scoped, tag = 'scoped memory for tpu_custom_call.1']
    #allocation5 [shape = 'u8[786432]{0}', space=vmem, size = 0xc0000, scoped, tag = 'input window, operand 1, single buffered']
    #allocation6 [shape = 's32[1]{0}', space=sflag, size = 0x4, scoped, tag = 'scoped memory for tpu_custom_call.1']
    #allocation7 [shape = 'u8[1024]{0}', space=vmem, size = 0x400, scoped, tag = 'input window, operand 2, single buffered']
    #allocation8 [shape = 'u8[1024]{0}', space=vmem, size = 0x400, scoped, tag = 'input window, operand 3, single buffered']
    #allocation9 [shape = 's32[1]{0}', space=sflag, size = 0x4, scoped, tag = 'scoped memory for tpu_custom_call.1']
    #allocation10 [shape = 'u8[1024]{0}', space=vmem, size = 0x400, scoped, tag = 'input window, operand 4, single buffered']
    #allocation11 [shape = 'u8[1048576]{0}', space=vmem, size = 0x100000, scoped, tag = 'output window, operand 0']
    %10 = vsyncpa [#allocation3], 0
    %s11 = scalar_lea.sflag [#allocation3], 1
    %12 = vsyncpa %s11, 0
    %13 = vsyncpa [#allocation6], 0
    %14 = vsyncpa [#allocation9], 0
    %15 = vsyncpa [#allocation4], 0
    %s16 = scalar_lea.sflag [#allocation4], 1
    %17 = vsyncpa %s16, 0
    loop: start=0, step=1, limit=4
    $region2: #{tpu_custom_call.1} parent=1 // loop_pre_header
      _
    $region3: #{tpu_custom_call.1} parent=1 // loop_header
      %s19 = sphi 0, %s23
      %p20 = scmp.ge.s32.totalorder %s19, 4
      %s29 = sphi 0, %s31
      %s32 = sphi 0, %s29
      %s33 = sphi 0, %s32
      %s49 = sphi 0, %s33
      %s53 = sphi 0, %s53
      %s55 = sphi 0, %s53
      %s56 = sphi 0, %s55
      %s70 = sphi 0, %s56
      %s74 = sphi 0, %s74
      %s76 = sphi 0, %s74
      %s77 = sphi 0, %s76
      %s91 = sphi 0, %s77
      %s95 = sphi 0, %s95
      %s97 = sphi 0, %s95
      %s98 = sphi 0, %s97
      %s112 = sphi 0, %s98
      %s116 = sphi 0, %s116
      %s118 = sphi 0, %s116
      %s119 = sphi 0, %s118
      %s133 = sphi 0, %s119
      %s139 = sphi 0, %s141
      %s142 = sphi 0, %s139
      %s143 = sphi 0, %s142
      %s159 = sphi 0, %s143
    $region4: #{tpu_custom_call.1} parent=1 // loop_header_branch
      %22 = sbr.rel (%p20) target = $region8
    $region5: #{tpu_custom_call.1} parent=1 // loop_body
      %s24 = ssub.s32 %s19, 1
      %s25 = ssub.s32 %s19, 2
      %s26 = sadd.s32 %s19, 1
      %s27 = ssub.s32 %s19, %s26
      %p28 = scmp.eq.s32.totalorder %s27, 0
      %s30 = sadd.s32 %s29, 1
      %s31 = scalar_select %p28, %s29, %s30
      %p34 = pneg %p28
      %p35 = scmp.eq.s32.totalorder %s19, 1
      %p36 = por %p34, %p35
      %p37 = scmp.ne.s32.totalorder %s29, %s32
      %p38 = scmp.eq.s32.totalorder %s19, 0
      %p39 = por %p37, %p38
      %p40 = scmp.ne.s32.totalorder %s29, %s32
      %p41 = scmp.eq.s32.totalorder %s24, 1
      %p42 = por %p40, %p41
      %p43 = scmp.ne.s32.totalorder %s32, %s33
      %p44 = scmp.eq.s32.totalorder %s24, 0
      %p45 = por %p43, %p44
      %p46 = scmp.ne.s32.totalorder %s32, %s33
      %p47 = scmp.eq.s32.totalorder %s25, 1
      %p48 = por %p46, %p47
      %p50 = scmp.ne.s32.totalorder %s33, %s49
      %p51 = scmp.eq.s32.totalorder %s25, 0
      %p52 = por %p50, %p51
      %s54 = sadd.s32 %s53, 1
      %p57 = scmp.eq.s32.totalorder %s19, 1
      %p58 = scmp.ne.s32.totalorder %s53, %s55
      %p59 = scmp.eq.s32.totalorder %s19, 0
      %p60 = por %p58, %p59
      %p61 = scmp.ne.s32.totalorder %s53, %s55
      %p62 = scmp.eq.s32.totalorder %s24, 1
      %p63 = por %p61, %p62
      %p64 = scmp.ne.s32.totalorder %s55, %s56
      %p65 = scmp.eq.s32.totalorder %s24, 0
      %p66 = por %p64, %p65
      %p67 = scmp.ne.s32.totalorder %s55, %s56
      %p68 = scmp.eq.s32.totalorder %s25, 1
      %p69 = por %p67, %p68
      %p71 = scmp.ne.s32.totalorder %s56, %s70
      %p72 = scmp.eq.s32.totalorder %s25, 0
      %p73 = por %p71, %p72
      %s75 = sadd.s32 %s74, 1
      %p78 = scmp.eq.s32.totalorder %s19, 1
      %p79 = scmp.ne.s32.totalorder %s74, %s76
      %p80 = scmp.eq.s32.totalorder %s19, 0
      %p81 = por %p79, %p80
      %p82 = scmp.ne.s32.totalorder %s74, %s76
      %p83 = scmp.eq.s32.totalorder %s24, 1
      %p84 = por %p82, %p83
      %p85 = scmp.ne.s32.totalorder %s76, %s77
      %p86 = scmp.eq.s32.totalorder %s24, 0
      %p87 = por %p85, %p86
      %p88 = scmp.ne.s32.totalorder %s76, %s77
      %p89 = scmp.eq.s32.totalorder %s25, 1
      %p90 = por %p88, %p89
      %p92 = scmp.ne.s32.totalorder %s77, %s91
      %p93 = scmp.eq.s32.totalorder %s25, 0
      %p94 = por %p92, %p93
      %s96 = sadd.s32 %s95, 1
      %p99 = scmp.eq.s32.totalorder %s19, 1
      %p100 = scmp.ne.s32.totalorder %s95, %s97
      %p101 = scmp.eq.s32.totalorder %s19, 0
      %p102 = por %p100, %p101
      %p103 = scmp.ne.s32.totalorder %s95, %s97
      %p104 = scmp.eq.s32.totalorder %s24, 1
      %p105 = por %p103, %p104
      %p106 = scmp.ne.s32.totalorder %s97, %s98
      %p107 = scmp.eq.s32.totalorder %s24, 0
      %p108 = por %p106, %p107
      %p109 = scmp.ne.s32.totalorder %s97, %s98
      %p110 = scmp.eq.s32.totalorder %s25, 1
      %p111 = por %p109, %p110
      %p113 = scmp.ne.s32.totalorder %s98, %s112
      %p114 = scmp.eq.s32.totalorder %s25, 0
      %p115 = por %p113, %p114
      %s117 = sadd.s32 %s116, 1
      %p120 = scmp.eq.s32.totalorder %s19, 1
      %p121 = scmp.ne.s32.totalorder %s116, %s118
      %p122 = scmp.eq.s32.totalorder %s19, 0
      %p123 = por %p121, %p122
      %p124 = scmp.ne.s32.totalorder %s116, %s118
      %p125 = scmp.eq.s32.totalorder %s24, 1
      %p126 = por %p124, %p125
      %p127 = scmp.ne.s32.totalorder %s118, %s119
      %p128 = scmp.eq.s32.totalorder %s24, 0
      %p129 = por %p127, %p128
      %p130 = scmp.ne.s32.totalorder %s118, %s119
      %p131 = scmp.eq.s32.totalorder %s25, 1
      %p132 = por %p130, %p131
      %p134 = scmp.ne.s32.totalorder %s119, %s133
      %p135 = scmp.eq.s32.totalorder %s25, 0
      %p136 = por %p134, %p135
      %s137 = ssub.s32 %s19, %s26
      %p138 = scmp.eq.s32.totalorder %s137, 0
      %s140 = sadd.s32 %s139, 1
      %s141 = scalar_select %p138, %s139, %s140
      %p144 = pneg %p138
      %p145 = scmp.eq.s32.totalorder %s19, 1
      %p146 = por %p144, %p145
      %p147 = scmp.ne.s32.totalorder %s139, %s142
      %p148 = scmp.eq.s32.totalorder %s19, 0
      %p149 = por %p147, %p148
      %p150 = scmp.ne.s32.totalorder %s139, %s142
      %p151 = scmp.eq.s32.totalorder %s24, 1
      %p152 = por %p150, %p151
      %p153 = scmp.ne.s32.totalorder %s142, %s143
      %p154 = scmp.eq.s32.totalorder %s24, 0
      %p155 = por %p153, %p154
      %p156 = scmp.ne.s32.totalorder %s142, %s143
      %p157 = scmp.eq.s32.totalorder %s25, 1
      %p158 = por %p156, %p157
      %p160 = scmp.ne.s32.totalorder %s143, %s159
      %p161 = scmp.eq.s32.totalorder %s25, 0
      %p162 = por %p160, %p161
      %p163 = scmp.le.s32.totalorder 1, %s19
      %p164 = scmp.lt.s32.totalorder %s19, 3
      %p165 = pnand %p163, %p164
      %p166 = pneg %p165
      // Predicated region
      $region9: #{tpu_custom_call.1} parent=5 // pred_check
        _
      $region10: #{tpu_custom_call.1} parent=5 // pred_check_branch
        %168 = sbr.rel (%p165) target = $region12
      $region11: #{tpu_custom_call.1} parent=5 // pred_region
        %s169 = ssub.s32 %s19, 1
        // Predicated region
        $region13: #{tpu_custom_call.1} parent=11 // pred_check
          %p170 = pneg %p66
        $region14: #{tpu_custom_call.1} parent=11 // pred_check_branch
          %172 = sbr.rel (%p170) target = $region16
        $region15: #{tpu_custom_call.1} parent=11 // pred_region
          %s174 = ssub.s32 24576, 24576
          %175 = vsyncadd [#allocation6], %s174
          %s176 = sshll.u32 [#allocation5], 4
          %s177 = int_to_ptr.vmem [resolvable:$true] %s176
          %182 = dma.hbm_to_vmem [thread:$0]  %s1, 24576, %s177, [#allocation6], 256, 256, 16
        $region16: #{tpu_custom_call.1} parent=11 // pred_fallthru
          _
        // Predicated region
        $region17: #{tpu_custom_call.1} parent=11 // pred_check
          %p183 = pneg %p87
        $region18: #{tpu_custom_call.1} parent=11 // pred_check_branch
          %185 = sbr.rel (%p183) target = $region20
        $region19: #{tpu_custom_call.1} parent=11 // pred_region
          %s187 = ssub.s32 32, 32
          %188 = vsyncadd [#allocation6], %s187
          %s190 = sshll.u32 [#allocation7], 4
          %s191 = int_to_ptr.vmem [resolvable:$true] %s190
          %193 = dma.hbm_to_vmem [thread:$0]  %s2, 32, %s191, [#allocation6]
        $region20: #{tpu_custom_call.1} parent=11 // pred_fallthru
          _
        // Predicated region
        $region21: #{tpu_custom_call.1} parent=11 // pred_check
          %p194 = pneg %p108
        $region22: #{tpu_custom_call.1} parent=11 // pred_check_branch
          %196 = sbr.rel (%p194) target = $region24
        $region23: #{tpu_custom_call.1} parent=11 // pred_region
          %s198 = ssub.s32 32, 32
          %199 = vsyncadd [#allocation9], %s198
          %s201 = sshll.u32 [#allocation8], 4
          %s202 = int_to_ptr.vmem [resolvable:$true] %s201
          %204 = dma.hbm_to_vmem [thread:$0]  %s3, 32, %s202, [#allocation9]
        $region24: #{tpu_custom_call.1} parent=11 // pred_fallthru
          _
        // Predicated region
        $region25: #{tpu_custom_call.1} parent=11 // pred_check
          %p205 = pneg %p129
        $region26: #{tpu_custom_call.1} parent=11 // pred_check_branch
          %207 = sbr.rel (%p205) target = $region28
        $region27: #{tpu_custom_call.1} parent=11 // pred_region
          %s209 = ssub.s32 32, 32
          %210 = vsyncadd [#allocation9], %s209
          %s212 = sshll.u32 [#allocation10], 4
          %s213 = int_to_ptr.vmem [resolvable:$true] %s212
          %215 = dma.hbm_to_vmem [thread:$0]  %s4, 32, %s213, [#allocation9]
        $region28: #{tpu_custom_call.1} parent=11 // pred_fallthru
          _
      $region12: #{tpu_custom_call.1} parent=5 // pred_fallthru
        _
      %p216 = scmp.lt.s32.totalorder %s19, 2
      // Predicated region
      $region29: #{tpu_custom_call.1} parent=5 // pred_check
        %p217 = pneg %p216
      $region30: #{tpu_custom_call.1} parent=5 // pred_check_branch
        %219 = sbr.rel (%p217) target = $region32
      $region31: #{tpu_custom_call.1} parent=5 // pred_region
        // Predicated region
        $region33: #{tpu_custom_call.1} parent=31 // pred_check
          %p220 = pneg %p39
        $region34: #{tpu_custom_call.1} parent=31 // pred_check_branch
          %222 = sbr.rel (%p220) target = $region36
        $region35: #{tpu_custom_call.1} parent=31 // pred_region
          %s223 = sand.u32 %s29, 1
          %s224 = scalar_lea.sflag [#allocation3], %s223
          %s225 = sand.u32 %s29, 1
          %s226 = smul.addr %s225, 3072
          %s227 = scalar_lea.vmem [#allocation2], %s226
          %s228 = smul.u32 64, %s19
          %s230 = ssub.s32 49152, 49152
          %231 = vsyncadd %s224, %s230
          %s232 = smul.addr %s228, 6
          %s233 = smul.addr %s232, 128
          %s234 = scalar_lea.hbm %s0, %s233
          %s235 = sshll.u32 %s227, 4
          %s236 = int_to_ptr.vmem [resolvable:$true] %s235
          %241 = dma.hbm_to_vmem [thread:$0]  %s234, 49152, %s236, %s224, 768, 768, 48
        $region36: #{tpu_custom_call.1} parent=31 // pred_fallthru
          _
      $region32: #{tpu_custom_call.1} parent=5 // pred_fallthru
        _
      %p242 = scmp.le.s32.totalorder 1, %s19
      %p243 = scmp.lt.s32.totalorder %s19, 3
      %p244 = pnand %p242, %p243
      %p245 = pneg %p244
      // Predicated region
      $region37: #{tpu_custom_call.1} parent=5 // pred_check
        _
      $region38: #{tpu_custom_call.1} parent=5 // pred_check_branch
        %247 = sbr.rel (%p244) target = $region40
      $region39: #{tpu_custom_call.1} parent=5 // pred_region
        %s248 = ssub.s32 %s19, 1
        %s249 = sand.u32 %s32, 1
        %s250 = scalar_lea.sflag [#allocation3], %s249
        %s251 = sand.u32 %s32, 1
        %s252 = smul.addr %s251, 3072
        %s253 = scalar_lea.vmem [#allocation2], %s252
        // Predicated region
        $region41: #{tpu_custom_call.1} parent=39 // pred_check
          %p254 = pneg %p45
        $region42: #{tpu_custom_call.1} parent=39 // pred_check_branch
          %256 = sbr.rel (%p254) target = $region44
        $region43: #{tpu_custom_call.1} parent=39 // pred_region
          %257 = dma.done %s250, 49152
        $region44: #{tpu_custom_call.1} parent=39 // pred_fallthru
          _
        // Predicated region
        $region45: #{tpu_custom_call.1} parent=39 // pred_check
          %p258 = pneg %p66
        $region46: #{tpu_custom_call.1} parent=39 // pred_check_branch
          %260 = sbr.rel (%p258) target = $region48
        $region47: #{tpu_custom_call.1} parent=39 // pred_region
          %261 = dma.done [#allocation6], 24576
        $region48: #{tpu_custom_call.1} parent=39 // pred_fallthru
          _
        // Predicated region
        $region49: #{tpu_custom_call.1} parent=39 // pred_check
          %p262 = pneg %p87
        $region50: #{tpu_custom_call.1} parent=39 // pred_check_branch
          %264 = sbr.rel (%p262) target = $region52
        $region51: #{tpu_custom_call.1} parent=39 // pred_region
          %265 = dma.done [#allocation6], 32
        $region52: #{tpu_custom_call.1} parent=39 // pred_fallthru
          _
        // Predicated region
        $region53: #{tpu_custom_call.1} parent=39 // pred_check
          %p266 = pneg %p108
        $region54: #{tpu_custom_call.1} parent=39 // pred_check_branch
          %268 = sbr.rel (%p266) target = $region56
        $region55: #{tpu_custom_call.1} parent=39 // pred_region
          %269 = dma.done [#allocation9], 32
        $region56: #{tpu_custom_call.1} parent=39 // pred_fallthru
          _
        // Predicated region
        $region57: #{tpu_custom_call.1} parent=39 // pred_check
          %p270 = pneg %p129
        $region58: #{tpu_custom_call.1} parent=39 // pred_check_branch
          %272 = sbr.rel (%p270) target = $region60
        $region59: #{tpu_custom_call.1} parent=39 // pred_region
          %273 = dma.done [#allocation9], 32
        $region60: #{tpu_custom_call.1} parent=39 // pred_fallthru
          _
        %s274 = sand.u32 %s32, 1
        %s275 = scalar_lea.sflag [#allocation3], %s274
        %s276 = sand.u32 %s32, 1
        %s277 = smul.addr %s276, 3072
        %s278 = scalar_lea.vmem [#allocation2], %s277
        %p279 = pneg %p45
        %p280 = pneg %p42
        %p281 = pneg %p66
        %p282 = pneg %p63
        %p283 = pneg %p87
        %p284 = pneg %p84
        %p285 = pneg %p108
        %p286 = pneg %p105
        %p287 = pneg %p129
        %p288 = pneg %p126
        %p289 = pneg %p155
        %p290 = pneg %p152
        %s291 = sand.u32 %s142, 1
        %s292 = scalar_lea.sflag [#allocation4], %s291
        %s293 = sand.u32 %s142, 1
        %s294 = smul.addr %s293, 1024
        %s295 = scalar_lea.vmem [#allocation11], %s294
        %s296 = smul.u32 64, %s24
        %s297 = smul.u32 64, %s24
        %v298 = vld [vmem:[%s253] sm:$0xff]
        %v299 = vld [vmem:[%s253 + $0x8] sm:$0xff]
        %v300 = vld [vmem:[%s253 + $0x10] sm:$0xff]
        %v301 = vld [vmem:[%s253 + $0x18] sm:$0xff]
        %v302 = vld [vmem:[%s253 + $0x20] sm:$0xff]
        %v303 = vld [vmem:[%s253 + $0x28] sm:$0xff]
        %v304 = vld [vmem:[%s253 + $0x30] sm:$0xff]
        %v305 = vld [vmem:[%s253 + $0x38] sm:$0xff]
        %v306 = vld [vmem:[%s253 + $0x40] sm:$0xff]
        %v307 = vld [vmem:[%s253 + $0x48] sm:$0xff]
        %v308 = vld [vmem:[%s253 + $0x50] sm:$0xff]
        %v309 = vld [vmem:[%s253 + $0x58] sm:$0xff]
        %v310 = vld [vmem:[%s253 + $0x60] sm:$0xff]
        %v311 = vld [vmem:[%s253 + $0x68] sm:$0xff]
        %v312 = vld [vmem:[%s253 + $0x70] sm:$0xff]
        %v313 = vld [vmem:[%s253 + $0x78] sm:$0xff]
        %v314 = vld [vmem:[%s253 + $0x80] sm:$0xff]
        %v315 = vld [vmem:[%s253 + $0x88] sm:$0xff]
        %v316 = vld [vmem:[%s253 + $0x90] sm:$0xff]
        %v317 = vld [vmem:[%s253 + $0x98] sm:$0xff]
        %v318 = vld [vmem:[%s253 + $0xa0] sm:$0xff]
        %v319 = vld [vmem:[%s253 + $0xa8] sm:$0xff]
        %v320 = vld [vmem:[%s253 + $0xb0] sm:$0xff]
        %v321 = vld [vmem:[%s253 + $0xb8] sm:$0xff]
        %v322 = vld [vmem:[%s253 + $0xc0] sm:$0xff]
        %v323 = vld [vmem:[%s253 + $0xc8] sm:$0xff]
        %v324 = vld [vmem:[%s253 + $0xd0] sm:$0xff]
        %v325 = vld [vmem:[%s253 + $0xd8] sm:$0xff]
        %v326 = vld [vmem:[%s253 + $0xe0] sm:$0xff]
        %v327 = vld [vmem:[%s253 + $0xe8] sm:$0xff]
        %v328 = vld [vmem:[%s253 + $0xf0] sm:$0xff]
        %v329 = vld [vmem:[%s253 + $0xf8] sm:$0xff]
        %v330 = vld [vmem:[%s253 + $0x100] sm:$0xff]
        %v331 = vld [vmem:[%s253 + $0x108] sm:$0xff]
        %v332 = vld [vmem:[%s253 + $0x110] sm:$0xff]
        %v333 = vld [vmem:[%s253 + $0x118] sm:$0xff]
        %v334 = vld [vmem:[%s253 + $0x120] sm:$0xff]
        %v335 = vld [vmem:[%s253 + $0x128] sm:$0xff]
        %v336 = vld [vmem:[%s253 + $0x130] sm:$0xff]
        %v337 = vld [vmem:[%s253 + $0x138] sm:$0xff]
        %v338 = vld [vmem:[%s253 + $0x140] sm:$0xff]
        %v339 = vld [vmem:[%s253 + $0x148] sm:$0xff]
        %v340 = vld [vmem:[%s253 + $0x150] sm:$0xff]
        %v341 = vld [vmem:[%s253 + $0x158] sm:$0xff]
        %v342 = vld [vmem:[%s253 + $0x160] sm:$0xff]
        %v343 = vld [vmem:[%s253 + $0x168] sm:$0xff]
        %v344 = vld [vmem:[%s253 + $0x170] sm:$0xff]
        %v345 = vld [vmem:[%s253 + $0x178] sm:$0xff]
        %v346 = vld [vmem:[%s253 + $0x180] sm:$0xff]
        %v347 = vld [vmem:[%s253 + $0x188] sm:$0xff]
        %v348 = vld [vmem:[%s253 + $0x190] sm:$0xff]
        %v349 = vld [vmem:[%s253 + $0x198] sm:$0xff]
        %v350 = vld [vmem:[%s253 + $0x1a0] sm:$0xff]
        %v351 = vld [vmem:[%s253 + $0x1a8] sm:$0xff]
        %v352 = vld [vmem:[%s253 + $0x1b0] sm:$0xff]
        %v353 = vld [vmem:[%s253 + $0x1b8] sm:$0xff]
        %v354 = vld [vmem:[%s253 + $0x1c0] sm:$0xff]
        %v355 = vld [vmem:[%s253 + $0x1c8] sm:$0xff]
        %v356 = vld [vmem:[%s253 + $0x1d0] sm:$0xff]
        %v357 = vld [vmem:[%s253 + $0x1d8] sm:$0xff]
        %v358 = vld [vmem:[%s253 + $0x1e0] sm:$0xff]
        %v359 = vld [vmem:[%s253 + $0x1e8] sm:$0xff]
        %v360 = vld [vmem:[%s253 + $0x1f0] sm:$0xff]
        %v361 = vld [vmem:[%s253 + $0x1f8] sm:$0xff]
        %v362 = vld [vmem:[%s253 + $0x200] sm:$0xff]
        %v363 = vld [vmem:[%s253 + $0x208] sm:$0xff]
        %v364 = vld [vmem:[%s253 + $0x210] sm:$0xff]
        %v365 = vld [vmem:[%s253 + $0x218] sm:$0xff]
        %v366 = vld [vmem:[%s253 + $0x220] sm:$0xff]
        %v367 = vld [vmem:[%s253 + $0x228] sm:$0xff]
        %v368 = vld [vmem:[%s253 + $0x230] sm:$0xff]
        %v369 = vld [vmem:[%s253 + $0x238] sm:$0xff]
        %v370 = vld [vmem:[%s253 + $0x240] sm:$0xff]
        %v371 = vld [vmem:[%s253 + $0x248] sm:$0xff]
        %v372 = vld [vmem:[%s253 + $0x250] sm:$0xff]
        %v373 = vld [vmem:[%s253 + $0x258] sm:$0xff]
        %v374 = vld [vmem:[%s253 + $0x260] sm:$0xff]
        %v375 = vld [vmem:[%s253 + $0x268] sm:$0xff]
        %v376 = vld [vmem:[%s253 + $0x270] sm:$0xff]
        %v377 = vld [vmem:[%s253 + $0x278] sm:$0xff]
        %v378 = vld [vmem:[%s253 + $0x280] sm:$0xff]
        %v379 = vld [vmem:[%s253 + $0x288] sm:$0xff]
        %v380 = vld [vmem:[%s253 + $0x290] sm:$0xff]
        %v381 = vld [vmem:[%s253 + $0x298] sm:$0xff]
        %v382 = vld [vmem:[%s253 + $0x2a0] sm:$0xff]
        %v383 = vld [vmem:[%s253 + $0x2a8] sm:$0xff]
        %v384 = vld [vmem:[%s253 + $0x2b0] sm:$0xff]
        %v385 = vld [vmem:[%s253 + $0x2b8] sm:$0xff]
        %v386 = vld [vmem:[%s253 + $0x2c0] sm:$0xff]
        %v387 = vld [vmem:[%s253 + $0x2c8] sm:$0xff]
        %v388 = vld [vmem:[%s253 + $0x2d0] sm:$0xff]
        %v389 = vld [vmem:[%s253 + $0x2d8] sm:$0xff]
        %v390 = vld [vmem:[%s253 + $0x2e0] sm:$0xff]
        %v391 = vld [vmem:[%s253 + $0x2e8] sm:$0xff]
        %v392 = vld [vmem:[%s253 + $0x2f0] sm:$0xff]
        %v393 = vld [vmem:[%s253 + $0x2f8] sm:$0xff]
        %v394 = vld [vmem:[%s253 + $0x300] sm:$0xff]
        %v395 = vld [vmem:[%s253 + $0x308] sm:$0xff]
        %v396 = vld [vmem:[%s253 + $0x310] sm:$0xff]
        %v397 = vld [vmem:[%s253 + $0x318] sm:$0xff]
        %v398 = vld [vmem:[%s253 + $0x320] sm:$0xff]
        %v399 = vld [vmem:[%s253 + $0x328] sm:$0xff]
        %v400 = vld [vmem:[%s253 + $0x330] sm:$0xff]
        %v401 = vld [vmem:[%s253 + $0x338] sm:$0xff]
        %v402 = vld [vmem:[%s253 + $0x340] sm:$0xff]
        %v403 = vld [vmem:[%s253 + $0x348] sm:$0xff]
        %v404 = vld [vmem:[%s253 + $0x350] sm:$0xff]
        %v405 = vld [vmem:[%s253 + $0x358] sm:$0xff]
        %v406 = vld [vmem:[%s253 + $0x360] sm:$0xff]
        %v407 = vld [vmem:[%s253 + $0x368] sm:$0xff]
        %v408 = vld [vmem:[%s253 + $0x370] sm:$0xff]
        %v409 = vld [vmem:[%s253 + $0x378] sm:$0xff]
        %v410 = vld [vmem:[%s253 + $0x380] sm:$0xff]
        %v411 = vld [vmem:[%s253 + $0x388] sm:$0xff]
        %v412 = vld [vmem:[%s253 + $0x390] sm:$0xff]
        %v413 = vld [vmem:[%s253 + $0x398] sm:$0xff]
        %v414 = vld [vmem:[%s253 + $0x3a0] sm:$0xff]
        %v415 = vld [vmem:[%s253 + $0x3a8] sm:$0xff]
        %v416 = vld [vmem:[%s253 + $0x3b0] sm:$0xff]
        %v417 = vld [vmem:[%s253 + $0x3b8] sm:$0xff]
        %v418 = vld [vmem:[%s253 + $0x3c0] sm:$0xff]
        %v419 = vld [vmem:[%s253 + $0x3c8] sm:$0xff]
        %v420 = vld [vmem:[%s253 + $0x3d0] sm:$0xff]
        %v421 = vld [vmem:[%s253 + $0x3d8] sm:$0xff]
        %v422 = vld [vmem:[%s253 + $0x3e0] sm:$0xff]
        %v423 = vld [vmem:[%s253 + $0x3e8] sm:$0xff]
        %v424 = vld [vmem:[%s253 + $0x3f0] sm:$0xff]
        %v425 = vld [vmem:[%s253 + $0x3f8] sm:$0xff]
        %v426 = vld [vmem:[%s253 + $0x400] sm:$0xff]
        %v427 = vld [vmem:[%s253 + $0x408] sm:$0xff]
        %v428 = vld [vmem:[%s253 + $0x410] sm:$0xff]
        %v429 = vld [vmem:[%s253 + $0x418] sm:$0xff]
        %v430 = vld [vmem:[%s253 + $0x420] sm:$0xff]
        %v431 = vld [vmem:[%s253 + $0x428] sm:$0xff]
        %v432 = vld [vmem:[%s253 + $0x430] sm:$0xff]
        %v433 = vld [vmem:[%s253 + $0x438] sm:$0xff]
        %v434 = vld [vmem:[%s253 + $0x440] sm:$0xff]
        %v435 = vld [vmem:[%s253 + $0x448] sm:$0xff]
        %v436 = vld [vmem:[%s253 + $0x450] sm:$0xff]
        %v437 = vld [vmem:[%s253 + $0x458] sm:$0xff]
        %v438 = vld [vmem:[%s253 + $0x460] sm:$0xff]
        %v439 = vld [vmem:[%s253 + $0x468] sm:$0xff]
        %v440 = vld [vmem:[%s253 + $0x470] sm:$0xff]
        %v441 = vld [vmem:[%s253 + $0x478] sm:$0xff]
        %v442 = vld [vmem:[%s253 + $0x480] sm:$0xff]
        %v443 = vld [vmem:[%s253 + $0x488] sm:$0xff]
        %v444 = vld [vmem:[%s253 + $0x490] sm:$0xff]
        %v445 = vld [vmem:[%s253 + $0x498] sm:$0xff]
        %v446 = vld [vmem:[%s253 + $0x4a0] sm:$0xff]
        %v447 = vld [vmem:[%s253 + $0x4a8] sm:$0xff]
        %v448 = vld [vmem:[%s253 + $0x4b0] sm:$0xff]
        %v449 = vld [vmem:[%s253 + $0x4b8] sm:$0xff]
        %v450 = vld [vmem:[%s253 + $0x4c0] sm:$0xff]
        %v451 = vld [vmem:[%s253 + $0x4c8] sm:$0xff]
        %v452 = vld [vmem:[%s253 + $0x4d0] sm:$0xff]
        %v453 = vld [vmem:[%s253 + $0x4d8] sm:$0xff]
        %v454 = vld [vmem:[%s253 + $0x4e0] sm:$0xff]
        %v455 = vld [vmem:[%s253 + $0x4e8] sm:$0xff]
        %v456 = vld [vmem:[%s253 + $0x4f0] sm:$0xff]
        %v457 = vld [vmem:[%s253 + $0x4f8] sm:$0xff]
        %v458 = vld [vmem:[%s253 + $0x500] sm:$0xff]
        %v459 = vld [vmem:[%s253 + $0x508] sm:$0xff]
        %v460 = vld [vmem:[%s253 + $0x510] sm:$0xff]
        %v461 = vld [vmem:[%s253 + $0x518] sm:$0xff]
        %v462 = vld [vmem:[%s253 + $0x520] sm:$0xff]
        %v463 = vld [vmem:[%s253 + $0x528] sm:$0xff]
        %v464 = vld [vmem:[%s253 + $0x530] sm:$0xff]
        %v465 = vld [vmem:[%s253 + $0x538] sm:$0xff]
        %v466 = vld [vmem:[%s253 + $0x540] sm:$0xff]
        %v467 = vld [vmem:[%s253 + $0x548] sm:$0xff]
        %v468 = vld [vmem:[%s253 + $0x550] sm:$0xff]
        %v469 = vld [vmem:[%s253 + $0x558] sm:$0xff]
        %v470 = vld [vmem:[%s253 + $0x560] sm:$0xff]
        %v471 = vld [vmem:[%s253 + $0x568] sm:$0xff]
        %v472 = vld [vmem:[%s253 + $0x570] sm:$0xff]
        %v473 = vld [vmem:[%s253 + $0x578] sm:$0xff]
        %v474 = vld [vmem:[%s253 + $0x580] sm:$0xff]
        %v475 = vld [vmem:[%s253 + $0x588] sm:$0xff]
        %v476 = vld [vmem:[%s253 + $0x590] sm:$0xff]
        %v477 = vld [vmem:[%s253 + $0x598] sm:$0xff]
        %v478 = vld [vmem:[%s253 + $0x5a0] sm:$0xff]
        %v479 = vld [vmem:[%s253 + $0x5a8] sm:$0xff]
        %v480 = vld [vmem:[%s253 + $0x5b0] sm:$0xff]
        %v481 = vld [vmem:[%s253 + $0x5b8] sm:$0xff]
        %v482 = vld [vmem:[%s253 + $0x5c0] sm:$0xff]
        %v483 = vld [vmem:[%s253 + $0x5c8] sm:$0xff]
        %v484 = vld [vmem:[%s253 + $0x5d0] sm:$0xff]
        %v485 = vld [vmem:[%s253 + $0x5d8] sm:$0xff]
        %v486 = vld [vmem:[%s253 + $0x5e0] sm:$0xff]
        %v487 = vld [vmem:[%s253 + $0x5e8] sm:$0xff]
        %v488 = vld [vmem:[%s253 + $0x5f0] sm:$0xff]
        %v489 = vld [vmem:[%s253 + $0x5f8] sm:$0xff]
        %v490 = vld [vmem:[%s253 + $0x600] sm:$0xff]
        %v491 = vld [vmem:[%s253 + $0x608] sm:$0xff]
        %v492 = vld [vmem:[%s253 + $0x610] sm:$0xff]
        %v493 = vld [vmem:[%s253 + $0x618] sm:$0xff]
        %v494 = vld [vmem:[%s253 + $0x620] sm:$0xff]
        %v495 = vld [vmem:[%s253 + $0x628] sm:$0xff]
        %v496 = vld [vmem:[%s253 + $0x630] sm:$0xff]
        %v497 = vld [vmem:[%s253 + $0x638] sm:$0xff]
        %v498 = vld [vmem:[%s253 + $0x640] sm:$0xff]
        %v499 = vld [vmem:[%s253 + $0x648] sm:$0xff]
        %v500 = vld [vmem:[%s253 + $0x650] sm:$0xff]
        %v501 = vld [vmem:[%s253 + $0x658] sm:$0xff]
        %v502 = vld [vmem:[%s253 + $0x660] sm:$0xff]
        %v503 = vld [vmem:[%s253 + $0x668] sm:$0xff]
        %v504 = vld [vmem:[%s253 + $0x670] sm:$0xff]
        %v505 = vld [vmem:[%s253 + $0x678] sm:$0xff]
        %v506 = vld [vmem:[%s253 + $0x680] sm:$0xff]
        %v507 = vld [vmem:[%s253 + $0x688] sm:$0xff]
        %v508 = vld [vmem:[%s253 + $0x690] sm:$0xff]
        %v509 = vld [vmem:[%s253 + $0x698] sm:$0xff]
        %v510 = vld [vmem:[%s253 + $0x6a0] sm:$0xff]
        %v511 = vld [vmem:[%s253 + $0x6a8] sm:$0xff]
        %v512 = vld [vmem:[%s253 + $0x6b0] sm:$0xff]
        %v513 = vld [vmem:[%s253 + $0x6b8] sm:$0xff]
        %v514 = vld [vmem:[%s253 + $0x6c0] sm:$0xff]
        %v515 = vld [vmem:[%s253 + $0x6c8] sm:$0xff]
        %v516 = vld [vmem:[%s253 + $0x6d0] sm:$0xff]
        %v517 = vld [vmem:[%s253 + $0x6d8] sm:$0xff]
        %v518 = vld [vmem:[%s253 + $0x6e0] sm:$0xff]
        %v519 = vld [vmem:[%s253 + $0x6e8] sm:$0xff]
        %v520 = vld [vmem:[%s253 + $0x6f0] sm:$0xff]
        %v521 = vld [vmem:[%s253 + $0x6f8] sm:$0xff]
        %v522 = vld [vmem:[%s253 + $0x700] sm:$0xff]
        %v523 = vld [vmem:[%s253 + $0x708] sm:$0xff]
        %v524 = vld [vmem:[%s253 + $0x710] sm:$0xff]
        %v525 = vld [vmem:[%s253 + $0x718] sm:$0xff]
        %v526 = vld [vmem:[%s253 + $0x720] sm:$0xff]
        %v527 = vld [vmem:[%s253 + $0x728] sm:$0xff]
        %v528 = vld [vmem:[%s253 + $0x730] sm:$0xff]
        %v529 = vld [vmem:[%s253 + $0x738] sm:$0xff]
        %v530 = vld [vmem:[%s253 + $0x740] sm:$0xff]
        %v531 = vld [vmem:[%s253 + $0x748] sm:$0xff]
        %v532 = vld [vmem:[%s253 + $0x750] sm:$0xff]
        %v533 = vld [vmem:[%s253 + $0x758] sm:$0xff]
        %v534 = vld [vmem:[%s253 + $0x760] sm:$0xff]
        %v535 = vld [vmem:[%s253 + $0x768] sm:$0xff]
        %v536 = vld [vmem:[%s253 + $0x770] sm:$0xff]
        %v537 = vld [vmem:[%s253 + $0x778] sm:$0xff]
        %v538 = vld [vmem:[%s253 + $0x780] sm:$0xff]
        %v539 = vld [vmem:[%s253 + $0x788] sm:$0xff]
        %v540 = vld [vmem:[%s253 + $0x790] sm:$0xff]
        %v541 = vld [vmem:[%s253 + $0x798] sm:$0xff]
        %v542 = vld [vmem:[%s253 + $0x7a0] sm:$0xff]
        %v543 = vld [vmem:[%s253 + $0x7a8] sm:$0xff]
        %v544 = vld [vmem:[%s253 + $0x7b0] sm:$0xff]
        %v545 = vld [vmem:[%s253 + $0x7b8] sm:$0xff]
        %v546 = vld [vmem:[%s253 + $0x7c0] sm:$0xff]
        %v547 = vld [vmem:[%s253 + $0x7c8] sm:$0xff]
        %v548 = vld [vmem:[%s253 + $0x7d0] sm:$0xff]
        %v549 = vld [vmem:[%s253 + $0x7d8] sm:$0xff]
        %v550 = vld [vmem:[%s253 + $0x7e0] sm:$0xff]
        %v551 = vld [vmem:[%s253 + $0x7e8] sm:$0xff]
        %v552 = vld [vmem:[%s253 + $0x7f0] sm:$0xff]
        %v553 = vld [vmem:[%s253 + $0x7f8] sm:$0xff]
        %v554 = vld [vmem:[%s253 + $0x800] sm:$0xff]
        %v555 = vld [vmem:[%s253 + $0x808] sm:$0xff]
        %v556 = vld [vmem:[%s253 + $0x810] sm:$0xff]
        %v557 = vld [vmem:[%s253 + $0x818] sm:$0xff]
        %v558 = vld [vmem:[%s253 + $0x820] sm:$0xff]
        %v559 = vld [vmem:[%s253 + $0x828] sm:$0xff]
        %v560 = vld [vmem:[%s253 + $0x830] sm:$0xff]
        %v561 = vld [vmem:[%s253 + $0x838] sm:$0xff]
        %v562 = vld [vmem:[%s253 + $0x840] sm:$0xff]
        %v563 = vld [vmem:[%s253 + $0x848] sm:$0xff]
        %v564 = vld [vmem:[%s253 + $0x850] sm:$0xff]
        %v565 = vld [vmem:[%s253 + $0x858] sm:$0xff]
        %v566 = vld [vmem:[%s253 + $0x860] sm:$0xff]
        %v567 = vld [vmem:[%s253 + $0x868] sm:$0xff]
        %v568 = vld [vmem:[%s253 + $0x870] sm:$0xff]
        %v569 = vld [vmem:[%s253 + $0x878] sm:$0xff]
        %v570 = vld [vmem:[%s253 + $0x880] sm:$0xff]
        %v571 = vld [vmem:[%s253 + $0x888] sm:$0xff]
        %v572 = vld [vmem:[%s253 + $0x890] sm:$0xff]
        %v573 = vld [vmem:[%s253 + $0x898] sm:$0xff]
        %v574 = vld [vmem:[%s253 + $0x8a0] sm:$0xff]
        %v575 = vld [vmem:[%s253 + $0x8a8] sm:$0xff]
        %v576 = vld [vmem:[%s253 + $0x8b0] sm:$0xff]
        %v577 = vld [vmem:[%s253 + $0x8b8] sm:$0xff]
        %v578 = vld [vmem:[%s253 + $0x8c0] sm:$0xff]
        %v579 = vld [vmem:[%s253 + $0x8c8] sm:$0xff]
        %v580 = vld [vmem:[%s253 + $0x8d0] sm:$0xff]
        %v581 = vld [vmem:[%s253 + $0x8d8] sm:$0xff]
        %v582 = vld [vmem:[%s253 + $0x8e0] sm:$0xff]
        %v583 = vld [vmem:[%s253 + $0x8e8] sm:$0xff]
        %v584 = vld [vmem:[%s253 + $0x8f0] sm:$0xff]
        %v585 = vld [vmem:[%s253 + $0x8f8] sm:$0xff]
        %v586 = vld [vmem:[%s253 + $0x900] sm:$0xff]
        %v587 = vld [vmem:[%s253 + $0x908] sm:$0xff]
        %v588 = vld [vmem:[%s253 + $0x910] sm:$0xff]
        %v589 = vld [vmem:[%s253 + $0x918] sm:$0xff]
        %v590 = vld [vmem:[%s253 + $0x920] sm:$0xff]
        %v591 = vld [vmem:[%s253 + $0x928] sm:$0xff]
        %v592 = vld [vmem:[%s253 + $0x930] sm:$0xff]
        %v593 = vld [vmem:[%s253 + $0x938] sm:$0xff]
        %v594 = vld [vmem:[%s253 + $0x940] sm:$0xff]
        %v595 = vld [vmem:[%s253 + $0x948] sm:$0xff]
        %v596 = vld [vmem:[%s253 + $0x950] sm:$0xff]
        %v597 = vld [vmem:[%s253 + $0x958] sm:$0xff]
        %v598 = vld [vmem:[%s253 + $0x960] sm:$0xff]
        %v599 = vld [vmem:[%s253 + $0x968] sm:$0xff]
        %v600 = vld [vmem:[%s253 + $0x970] sm:$0xff]
        %v601 = vld [vmem:[%s253 + $0x978] sm:$0xff]
        %v602 = vld [vmem:[%s253 + $0x980] sm:$0xff]
        %v603 = vld [vmem:[%s253 + $0x988] sm:$0xff]
        %v604 = vld [vmem:[%s253 + $0x990] sm:$0xff]
        %v605 = vld [vmem:[%s253 + $0x998] sm:$0xff]
        %v606 = vld [vmem:[%s253 + $0x9a0] sm:$0xff]
        %v607 = vld [vmem:[%s253 + $0x9a8] sm:$0xff]
        %v608 = vld [vmem:[%s253 + $0x9b0] sm:$0xff]
        %v609 = vld [vmem:[%s253 + $0x9b8] sm:$0xff]
        %v610 = vld [vmem:[%s253 + $0x9c0] sm:$0xff]
        %v611 = vld [vmem:[%s253 + $0x9c8] sm:$0xff]
        %v612 = vld [vmem:[%s253 + $0x9d0] sm:$0xff]
        %v613 = vld [vmem:[%s253 + $0x9d8] sm:$0xff]
        %v614 = vld [vmem:[%s253 + $0x9e0] sm:$0xff]
        %v615 = vld [vmem:[%s253 + $0x9e8] sm:$0xff]
        %v616 = vld [vmem:[%s253 + $0x9f0] sm:$0xff]
        %v617 = vld [vmem:[%s253 + $0x9f8] sm:$0xff]
        %v618 = vld [vmem:[%s253 + $0xa00] sm:$0xff]
        %v619 = vld [vmem:[%s253 + $0xa08] sm:$0xff]
        %v620 = vld [vmem:[%s253 + $0xa10] sm:$0xff]
        %v621 = vld [vmem:[%s253 + $0xa18] sm:$0xff]
        %v622 = vld [vmem:[%s253 + $0xa20] sm:$0xff]
        %v623 = vld [vmem:[%s253 + $0xa28] sm:$0xff]
        %v624 = vld [vmem:[%s253 + $0xa30] sm:$0xff]
        %v625 = vld [vmem:[%s253 + $0xa38] sm:$0xff]
        %v626 = vld [vmem:[%s253 + $0xa40] sm:$0xff]
        %v627 = vld [vmem:[%s253 + $0xa48] sm:$0xff]
        %v628 = vld [vmem:[%s253 + $0xa50] sm:$0xff]
        %v629 = vld [vmem:[%s253 + $0xa58] sm:$0xff]
        %v630 = vld [vmem:[%s253 + $0xa60] sm:$0xff]
        %v631 = vld [vmem:[%s253 + $0xa68] sm:$0xff]
        %v632 = vld [vmem:[%s253 + $0xa70] sm:$0xff]
        %v633 = vld [vmem:[%s253 + $0xa78] sm:$0xff]
        %v634 = vld [vmem:[%s253 + $0xa80] sm:$0xff]
        %v635 = vld [vmem:[%s253 + $0xa88] sm:$0xff]
        %v636 = vld [vmem:[%s253 + $0xa90] sm:$0xff]
        %v637 = vld [vmem:[%s253 + $0xa98] sm:$0xff]
        %v638 = vld [vmem:[%s253 + $0xaa0] sm:$0xff]
        %v639 = vld [vmem:[%s253 + $0xaa8] sm:$0xff]
        %v640 = vld [vmem:[%s253 + $0xab0] sm:$0xff]
        %v641 = vld [vmem:[%s253 + $0xab8] sm:$0xff]
        %v642 = vld [vmem:[%s253 + $0xac0] sm:$0xff]
        %v643 = vld [vmem:[%s253 + $0xac8] sm:$0xff]
        %v644 = vld [vmem:[%s253 + $0xad0] sm:$0xff]
        %v645 = vld [vmem:[%s253 + $0xad8] sm:$0xff]
        %v646 = vld [vmem:[%s253 + $0xae0] sm:$0xff]
        %v647 = vld [vmem:[%s253 + $0xae8] sm:$0xff]
        %v648 = vld [vmem:[%s253 + $0xaf0] sm:$0xff]
        %v649 = vld [vmem:[%s253 + $0xaf8] sm:$0xff]
        %v650 = vld [vmem:[%s253 + $0xb00] sm:$0xff]
        %v651 = vld [vmem:[%s253 + $0xb08] sm:$0xff]
        %v652 = vld [vmem:[%s253 + $0xb10] sm:$0xff]
        %v653 = vld [vmem:[%s253 + $0xb18] sm:$0xff]
        %v654 = vld [vmem:[%s253 + $0xb20] sm:$0xff]
        %v655 = vld [vmem:[%s253 + $0xb28] sm:$0xff]
        %v656 = vld [vmem:[%s253 + $0xb30] sm:$0xff]
        %v657 = vld [vmem:[%s253 + $0xb38] sm:$0xff]
        %v658 = vld [vmem:[%s253 + $0xb40] sm:$0xff]
        %v659 = vld [vmem:[%s253 + $0xb48] sm:$0xff]
        %v660 = vld [vmem:[%s253 + $0xb50] sm:$0xff]
        %v661 = vld [vmem:[%s253 + $0xb58] sm:$0xff]
        %v662 = vld [vmem:[%s253 + $0xb60] sm:$0xff]
        %v663 = vld [vmem:[%s253 + $0xb68] sm:$0xff]
        %v664 = vld [vmem:[%s253 + $0xb70] sm:$0xff]
        %v665 = vld [vmem:[%s253 + $0xb78] sm:$0xff]
        %v666 = vld [vmem:[%s253 + $0xb80] sm:$0xff]
        %v667 = vld [vmem:[%s253 + $0xb88] sm:$0xff]
        %v668 = vld [vmem:[%s253 + $0xb90] sm:$0xff]
        %v669 = vld [vmem:[%s253 + $0xb98] sm:$0xff]
        %v670 = vld [vmem:[%s253 + $0xba0] sm:$0xff]
        %v671 = vld [vmem:[%s253 + $0xba8] sm:$0xff]
        %v672 = vld [vmem:[%s253 + $0xbb0] sm:$0xff]
        %v673 = vld [vmem:[%s253 + $0xbb8] sm:$0xff]
        %v674 = vld [vmem:[%s253 + $0xbc0] sm:$0xff]
        %v675 = vld [vmem:[%s253 + $0xbc8] sm:$0xff]
        %v676 = vld [vmem:[%s253 + $0xbd0] sm:$0xff]
        %v677 = vld [vmem:[%s253 + $0xbd8] sm:$0xff]
        %v678 = vld [vmem:[%s253 + $0xbe0] sm:$0xff]
        %v679 = vld [vmem:[%s253 + $0xbe8] sm:$0xff]
        %v680 = vld [vmem:[%s253 + $0xbf0] sm:$0xff]
        %v681 = vld [vmem:[%s253 + $0xbf8] sm:$0xff]
        %v682 = vld [vmem:[#allocation5] sm:$0xff]
        %v683 = vld [vmem:[#allocation5 + $0x8] sm:$0xff]
        %v684 = vld [vmem:[#allocation5 + $0x10] sm:$0xff]
        %v685 = vld [vmem:[#allocation5 + $0x18] sm:$0xff]
        %v686 = vld [vmem:[#allocation5 + $0x20] sm:$0xff]
        %v687 = vld [vmem:[#allocation5 + $0x28] sm:$0xff]
        %v688 = vld [vmem:[#allocation5 + $0x30] sm:$0xff]
        %v689 = vld [vmem:[#allocation5 + $0x38] sm:$0xff]
        %v690 = vld [vmem:[#allocation5 + $0x40] sm:$0xff]
        %v691 = vld [vmem:[#allocation5 + $0x48] sm:$0xff]
        %v692 = vld [vmem:[#allocation5 + $0x50] sm:$0xff]
        %v693 = vld [vmem:[#allocation5 + $0x58] sm:$0xff]
        %v694 = vld [vmem:[#allocation5 + $0x60] sm:$0xff]
        %v695 = vld [vmem:[#allocation5 + $0x68] sm:$0xff]
        %v696 = vld [vmem:[#allocation5 + $0x70] sm:$0xff]
        %v697 = vld [vmem:[#allocation5 + $0x78] sm:$0xff]
        %v698 = vld [vmem:[#allocation5 + $0x80] sm:$0xff]
        %v699 = vld [vmem:[#allocation5 + $0x88] sm:$0xff]
        %v700 = vld [vmem:[#allocation5 + $0x90] sm:$0xff]
        %v701 = vld [vmem:[#allocation5 + $0x98] sm:$0xff]
        %v702 = vld [vmem:[#allocation5 + $0xa0] sm:$0xff]
        %v703 = vld [vmem:[#allocation5 + $0xa8] sm:$0xff]
        %v704 = vld [vmem:[#allocation5 + $0xb0] sm:$0xff]
        %v705 = vld [vmem:[#allocation5 + $0xb8] sm:$0xff]
        %v706 = vld [vmem:[#allocation5 + $0xc0] sm:$0xff]
        %v707 = vld [vmem:[#allocation5 + $0xc8] sm:$0xff]
        %v708 = vld [vmem:[#allocation5 + $0xd0] sm:$0xff]
        %v709 = vld [vmem:[#allocation5 + $0xd8] sm:$0xff]
        %v710 = vld [vmem:[#allocation5 + $0xe0] sm:$0xff]
        %v711 = vld [vmem:[#allocation5 + $0xe8] sm:$0xff]
        %v712 = vld [vmem:[#allocation5 + $0xf0] sm:$0xff]
        %v713 = vld [vmem:[#allocation5 + $0xf8] sm:$0xff]
        %v714 = vld [vmem:[#allocation5 + $0x100] sm:$0xff]
        %v715 = vld [vmem:[#allocation5 + $0x108] sm:$0xff]
        %v716 = vld [vmem:[#allocation5 + $0x110] sm:$0xff]
        %v717 = vld [vmem:[#allocation5 + $0x118] sm:$0xff]
        %v718 = vld [vmem:[#allocation5 + $0x120] sm:$0xff]
        %v719 = vld [vmem:[#allocation5 + $0x128] sm:$0xff]
        %v720 = vld [vmem:[#allocation5 + $0x130] sm:$0xff]
        %v721 = vld [vmem:[#allocation5 + $0x138] sm:$0xff]
        %v722 = vld [vmem:[#allocation5 + $0x140] sm:$0xff]
        %v723 = vld [vmem:[#allocation5 + $0x148] sm:$0xff]
        %v724 = vld [vmem:[#allocation5 + $0x150] sm:$0xff]
        %v725 = vld [vmem:[#allocation5 + $0x158] sm:$0xff]
        %v726 = vld [vmem:[#allocation5 + $0x160] sm:$0xff]
        %v727 = vld [vmem:[#allocation5 + $0x168] sm:$0xff]
        %v728 = vld [vmem:[#allocation5 + $0x170] sm:$0xff]
        %v729 = vld [vmem:[#allocation5 + $0x178] sm:$0xff]
        %v730 = vld [vmem:[#allocation5 + $0x180] sm:$0xff]
        %v731 = vld [vmem:[#allocation5 + $0x188] sm:$0xff]
        %v732 = vld [vmem:[#allocation5 + $0x190] sm:$0xff]
        %v733 = vld [vmem:[#allocation5 + $0x198] sm:$0xff]
        %v734 = vld [vmem:[#allocation5 + $0x1a0] sm:$0xff]
        %v735 = vld [vmem:[#allocation5 + $0x1a8] sm:$0xff]
        %v736 = vld [vmem:[#allocation5 + $0x1b0] sm:$0xff]
        %v737 = vld [vmem:[#allocation5 + $0x1b8] sm:$0xff]
        %v738 = vld [vmem:[#allocation5 + $0x1c0] sm:$0xff]
        %v739 = vld [vmem:[#allocation5 + $0x1c8] sm:$0xff]
        %v740 = vld [vmem:[#allocation5 + $0x1d0] sm:$0xff]
        %v741 = vld [vmem:[#allocation5 + $0x1d8] sm:$0xff]
        %v742 = vld [vmem:[#allocation5 + $0x1e0] sm:$0xff]
        %v743 = vld [vmem:[#allocation5 + $0x1e8] sm:$0xff]
        %v744 = vld [vmem:[#allocation5 + $0x1f0] sm:$0xff]
        %v745 = vld [vmem:[#allocation5 + $0x1f8] sm:$0xff]
        %v746 = vld [vmem:[#allocation5 + $0x200] sm:$0xff]
        %v747 = vld [vmem:[#allocation5 + $0x208] sm:$0xff]
        %v748 = vld [vmem:[#allocation5 + $0x210] sm:$0xff]
        %v749 = vld [vmem:[#allocation5 + $0x218] sm:$0xff]
        %v750 = vld [vmem:[#allocation5 + $0x220] sm:$0xff]
        %v751 = vld [vmem:[#allocation5 + $0x228] sm:$0xff]
        %v752 = vld [vmem:[#allocation5 + $0x230] sm:$0xff]
        %v753 = vld [vmem:[#allocation5 + $0x238] sm:$0xff]
        %v754 = vld [vmem:[#allocation5 + $0x240] sm:$0xff]
        %v755 = vld [vmem:[#allocation5 + $0x248] sm:$0xff]
        %v756 = vld [vmem:[#allocation5 + $0x250] sm:$0xff]
        %v757 = vld [vmem:[#allocation5 + $0x258] sm:$0xff]
        %v758 = vld [vmem:[#allocation5 + $0x260] sm:$0xff]
        %v759 = vld [vmem:[#allocation5 + $0x268] sm:$0xff]
        %v760 = vld [vmem:[#allocation5 + $0x270] sm:$0xff]
        %v761 = vld [vmem:[#allocation5 + $0x278] sm:$0xff]
        %v762 = vld [vmem:[#allocation5 + $0x280] sm:$0xff]
        %v763 = vld [vmem:[#allocation5 + $0x288] sm:$0xff]
        %v764 = vld [vmem:[#allocation5 + $0x290] sm:$0xff]
        %v765 = vld [vmem:[#allocation5 + $0x298] sm:$0xff]
        %v766 = vld [vmem:[#allocation5 + $0x2a0] sm:$0xff]
        %v767 = vld [vmem:[#allocation5 + $0x2a8] sm:$0xff]
        %v768 = vld [vmem:[#allocation5 + $0x2b0] sm:$0xff]
        %v769 = vld [vmem:[#allocation5 + $0x2b8] sm:$0xff]
        %v770 = vld [vmem:[#allocation5 + $0x2c0] sm:$0xff]
        %v771 = vld [vmem:[#allocation5 + $0x2c8] sm:$0xff]
        %v772 = vld [vmem:[#allocation5 + $0x2d0] sm:$0xff]
        %v773 = vld [vmem:[#allocation5 + $0x2d8] sm:$0xff]
        %v774 = vld [vmem:[#allocation5 + $0x2e0] sm:$0xff]
        %v775 = vld [vmem:[#allocation5 + $0x2e8] sm:$0xff]
        %v776 = vld [vmem:[#allocation5 + $0x2f0] sm:$0xff]
        %v777 = vld [vmem:[#allocation5 + $0x2f8] sm:$0xff]
        %v778 = vld [vmem:[#allocation5 + $0x300] sm:$0xff]
        %v779 = vld [vmem:[#allocation5 + $0x308] sm:$0xff]
        %v780 = vld [vmem:[#allocation5 + $0x310] sm:$0xff]
        %v781 = vld [vmem:[#allocation5 + $0x318] sm:$0xff]
        %v782 = vld [vmem:[#allocation5 + $0x320] sm:$0xff]
        %v783 = vld [vmem:[#allocation5 + $0x328] sm:$0xff]
        %v784 = vld [vmem:[#allocation5 + $0x330] sm:$0xff]
        %v785 = vld [vmem:[#allocation5 + $0x338] sm:$0xff]
        %v786 = vld [vmem:[#allocation5 + $0x340] sm:$0xff]
        %v787 = vld [vmem:[#allocation5 + $0x348] sm:$0xff]
        %v788 = vld [vmem:[#allocation5 + $0x350] sm:$0xff]
        %v789 = vld [vmem:[#allocation5 + $0x358] sm:$0xff]
        %v790 = vld [vmem:[#allocation5 + $0x360] sm:$0xff]
        %v791 = vld [vmem:[#allocation5 + $0x368] sm:$0xff]
        %v792 = vld [vmem:[#allocation5 + $0x370] sm:$0xff]
        %v793 = vld [vmem:[#allocation5 + $0x378] sm:$0xff]
        %v794 = vld [vmem:[#allocation5 + $0x380] sm:$0xff]
        %v795 = vld [vmem:[#allocation5 + $0x388] sm:$0xff]
        %v796 = vld [vmem:[#allocation5 + $0x390] sm:$0xff]
        %v797 = vld [vmem:[#allocation5 + $0x398] sm:$0xff]
        %v798 = vld [vmem:[#allocation5 + $0x3a0] sm:$0xff]
        %v799 = vld [vmem:[#allocation5 + $0x3a8] sm:$0xff]
        %v800 = vld [vmem:[#allocation5 + $0x3b0] sm:$0xff]
        %v801 = vld [vmem:[#allocation5 + $0x3b8] sm:$0xff]
        %v802 = vld [vmem:[#allocation5 + $0x3c0] sm:$0xff]
        %v803 = vld [vmem:[#allocation5 + $0x3c8] sm:$0xff]
        %v804 = vld [vmem:[#allocation5 + $0x3d0] sm:$0xff]
        %v805 = vld [vmem:[#allocation5 + $0x3d8] sm:$0xff]
        %v806 = vld [vmem:[#allocation5 + $0x3e0] sm:$0xff]
        %v807 = vld [vmem:[#allocation5 + $0x3e8] sm:$0xff]
        %v808 = vld [vmem:[#allocation5 + $0x3f0] sm:$0xff]
        %v809 = vld [vmem:[#allocation5 + $0x3f8] sm:$0xff]
        %v810 = vld [vmem:[#allocation5 + $0x400] sm:$0xff]
        %v811 = vld [vmem:[#allocation5 + $0x408] sm:$0xff]
        %v812 = vld [vmem:[#allocation5 + $0x410] sm:$0xff]
        %v813 = vld [vmem:[#allocation5 + $0x418] sm:$0xff]
        %v814 = vld [vmem:[#allocation5 + $0x420] sm:$0xff]
        %v815 = vld [vmem:[#allocation5 + $0x428] sm:$0xff]
        %v816 = vld [vmem:[#allocation5 + $0x430] sm:$0xff]
        %v817 = vld [vmem:[#allocation5 + $0x438] sm:$0xff]
        %v818 = vld [vmem:[#allocation5 + $0x440] sm:$0xff]
        %v819 = vld [vmem:[#allocation5 + $0x448] sm:$0xff]
        %v820 = vld [vmem:[#allocation5 + $0x450] sm:$0xff]
        %v821 = vld [vmem:[#allocation5 + $0x458] sm:$0xff]
        %v822 = vld [vmem:[#allocation5 + $0x460] sm:$0xff]
        %v823 = vld [vmem:[#allocation5 + $0x468] sm:$0xff]
        %v824 = vld [vmem:[#allocation5 + $0x470] sm:$0xff]
        %v825 = vld [vmem:[#allocation5 + $0x478] sm:$0xff]
        %v826 = vld [vmem:[#allocation5 + $0x480] sm:$0xff]
        %v827 = vld [vmem:[#allocation5 + $0x488] sm:$0xff]
        %v828 = vld [vmem:[#allocation5 + $0x490] sm:$0xff]
        %v829 = vld [vmem:[#allocation5 + $0x498] sm:$0xff]
        %v830 = vld [vmem:[#allocation5 + $0x4a0] sm:$0xff]
        %v831 = vld [vmem:[#allocation5 + $0x4a8] sm:$0xff]
        %v832 = vld [vmem:[#allocation5 + $0x4b0] sm:$0xff]
        %v833 = vld [vmem:[#allocation5 + $0x4b8] sm:$0xff]
        %v834 = vld [vmem:[#allocation5 + $0x4c0] sm:$0xff]
        %v835 = vld [vmem:[#allocation5 + $0x4c8] sm:$0xff]
        %v836 = vld [vmem:[#allocation5 + $0x4d0] sm:$0xff]
        %v837 = vld [vmem:[#allocation5 + $0x4d8] sm:$0xff]
        %v838 = vld [vmem:[#allocation5 + $0x4e0] sm:$0xff]
        %v839 = vld [vmem:[#allocation5 + $0x4e8] sm:$0xff]
        %v840 = vld [vmem:[#allocation5 + $0x4f0] sm:$0xff]
        %v841 = vld [vmem:[#allocation5 + $0x4f8] sm:$0xff]
        %v842 = vld [vmem:[#allocation5 + $0x500] sm:$0xff]
        %v843 = vld [vmem:[#allocation5 + $0x508] sm:$0xff]
        %v844 = vld [vmem:[#allocation5 + $0x510] sm:$0xff]
        %v845 = vld [vmem:[#allocation5 + $0x518] sm:$0xff]
        %v846 = vld [vmem:[#allocation5 + $0x520] sm:$0xff]
        %v847 = vld [vmem:[#allocation5 + $0x528] sm:$0xff]
        %v848 = vld [vmem:[#allocation5 + $0x530] sm:$0xff]
        %v849 = vld [vmem:[#allocation5 + $0x538] sm:$0xff]
        %v850 = vld [vmem:[#allocation5 + $0x540] sm:$0xff]
        %v851 = vld [vmem:[#allocation5 + $0x548] sm:$0xff]
        %v852 = vld [vmem:[#allocation5 + $0x550] sm:$0xff]
        %v853 = vld [vmem:[#allocation5 + $0x558] sm:$0xff]
        %v854 = vld [vmem:[#allocation5 + $0x560] sm:$0xff]
        %v855 = vld [vmem:[#allocation5 + $0x568] sm:$0xff]
        %v856 = vld [vmem:[#allocation5 + $0x570] sm:$0xff]
        %v857 = vld [vmem:[#allocation5 + $0x578] sm:$0xff]
        %v858 = vld [vmem:[#allocation5 + $0x580] sm:$0xff]
        %v859 = vld [vmem:[#allocation5 + $0x588] sm:$0xff]
        %v860 = vld [vmem:[#allocation5 + $0x590] sm:$0xff]
        %v861 = vld [vmem:[#allocation5 + $0x598] sm:$0xff]
        %v862 = vld [vmem:[#allocation5 + $0x5a0] sm:$0xff]
        %v863 = vld [vmem:[#allocation5 + $0x5a8] sm:$0xff]
        %v864 = vld [vmem:[#allocation5 + $0x5b0] sm:$0xff]
        %v865 = vld [vmem:[#allocation5 + $0x5b8] sm:$0xff]
        %v866 = vld [vmem:[#allocation5 + $0x5c0] sm:$0xff]
        %v867 = vld [vmem:[#allocation5 + $0x5c8] sm:$0xff]
        %v868 = vld [vmem:[#allocation5 + $0x5d0] sm:$0xff]
        %v869 = vld [vmem:[#allocation5 + $0x5d8] sm:$0xff]
        %v870 = vld [vmem:[#allocation5 + $0x5e0] sm:$0xff]
        %v871 = vld [vmem:[#allocation5 + $0x5e8] sm:$0xff]
        %v872 = vld [vmem:[#allocation5 + $0x5f0] sm:$0xff]
        %v873 = vld [vmem:[#allocation5 + $0x5f8] sm:$0xff]
        %v874 = vld [vmem:[#allocation7] sm:$0x3]
        %v876 = vlaneseq
        %v877 = vshrl.u32 %v876, 7
        %v878 = vsub.s32 0, %v877
        %v879 = vrot.slane %v874, %v878
        %v880 = vlaneseq
        %v881 = vshrl.u32 %v880, 7
        %v882 = vsub.s32 1, %v881
        %v883 = vrot.slane %v874, %v882
        %886 = vmatprep.subr.mxu0 %v683
        %887 = vmatpush1.msra.mxu0 %v682
        %888 = vmatprep.subr.mxu0 %v685
        %889 = vmatpush1.msra.mxu0 %v684
        %890 = vmatprep.subr.mxu0 %v687
        %891 = vmatpush1.msra.mxu0 %v686
        %892 = vmatprep.subr.mxu0 %v689
        %893 = vmatpush1.msra.mxu0 %v688
        %894 = vmatprep.subr.mxu0 %v691
        %895 = vmatpush1.msra.mxu0 %v690
        %896 = vmatprep.subr.mxu0 %v693
        %897 = vmatpush1.msra.mxu0 %v692
        %898 = vmatprep.subr.mxu0 %v695
        %899 = vmatpush1.msra.mxu0 %v694
        %900 = vmatprep.subr.mxu0 %v697
        %901 = vmatpush1.msra.mxu0 %v696
        %902 = vmatprep.subr.mxu0 %v699
        %903 = vmatpush1.msra.mxu0 %v698
        %904 = vmatprep.subr.mxu0 %v701
        %905 = vmatpush1.msra.mxu0 %v700
        %906 = vmatprep.subr.mxu0 %v703
        %907 = vmatpush1.msra.mxu0 %v702
        %908 = vmatprep.subr.mxu0 %v705
        %909 = vmatpush1.msra.mxu0 %v704
        %910 = vmatprep.subr.mxu0 %v707
        %911 = vmatpush1.msra.mxu0 %v706
        %912 = vmatprep.subr.mxu0 %v709
        %913 = vmatpush1.msra.mxu0 %v708
        %914 = vmatprep.subr.mxu0 %v711
        %915 = vmatpush1.msra.mxu0 %v710
        %916 = vmatprep.subr.mxu0 %v713
        %917 = vmatpush1.msra.mxu0 %v712
        %918 = vmatprep.subr.mxu0 %v715
        %919 = vmatpush1.msra.mxu0 %v714
        %920 = vmatprep.subr.mxu0 %v717
        %921 = vmatpush1.msra.mxu0 %v716
        %922 = vmatprep.subr.mxu0 %v719
        %923 = vmatpush1.msra.mxu0 %v718
        %924 = vmatprep.subr.mxu0 %v721
        %925 = vmatpush1.msra.mxu0 %v720
        %926 = vmatprep.subr.mxu0 %v723
        %927 = vmatpush1.msra.mxu0 %v722
        %928 = vmatprep.subr.mxu0 %v725
        %929 = vmatpush1.msra.mxu0 %v724
        %930 = vmatprep.subr.mxu0 %v727
        %931 = vmatpush1.msra.mxu0 %v726
        %932 = vmatprep.subr.mxu0 %v729
        %933 = vmatpush1.msra.mxu0 %v728
        %934 = vmatprep.subr.mxu0 %v731
        %935 = vmatpush1.msra.mxu0 %v730
        %936 = vmatprep.subr.mxu0 %v733
        %937 = vmatpush1.msra.mxu0 %v732
        %938 = vmatprep.subr.mxu0 %v735
        %939 = vmatpush1.msra.mxu0 %v734
        %940 = vmatprep.subr.mxu0 %v737
        %941 = vmatpush1.msra.mxu0 %v736
        %942 = vmatprep.subr.mxu0 %v739
        %943 = vmatpush1.msra.mxu0 %v738
        %944 = vmatprep.subr.mxu0 %v741
        %945 = vmatpush1.msra.mxu0 %v740
        %946 = vmatprep.subr.mxu0 %v743
        %947 = vmatpush1.msra.mxu0 %v742
        %948 = vmatprep.subr.mxu0 %v745
        %949 = vmatpush1.msra.mxu0 %v744
        %950 = vmatprep.mubr.f32.mxu0 %v299
        %951 = vmatmul.mubr.f32.gmra.mrb[0].mxu0 %v298
        %v952 = vpop.f32.mrb[0].mxu0
        %v953 = vadd.f32 %v879, %v952
        %v954 = vpop.f32.mrb[0].mxu0
        %v955 = vadd.f32 %v883, %v954
        %956 = vmatprep.mubr.f32.mxu0 %v305
        %957 = vmatmul.mubr.f32.gmra.mrb[0].mxu0 %v304
        %v958 = vpop.f32.mrb[0].mxu0
        %v959 = vadd.f32 %v879, %v958
        %v960 = vpop.f32.mrb[0].mxu0
        %v961 = vadd.f32 %v883, %v960
        %962 = vmatprep.mubr.f32.mxu0 %v311
        %963 = vmatmul.mubr.f32.gmra.mrb[0].mxu0 %v310
        %v964 = vpop.f32.mrb[0].mxu0
        %v965 = vadd.f32 %v879, %v964
        %v966 = vpop.f32.mrb[0].mxu0
        %v967 = vadd.f32 %v883, %v966
        %968 = vmatprep.mubr.f32.mxu0 %v317
        %969 = vmatmul.mubr.f32.gmra.mrb[0].mxu0 %v316
        %v970 = vpop.f32.mrb[0].mxu0
        %v971 = vadd.f32 %v879, %v970
        %v972 = vpop.f32.mrb[0].mxu0
        %v973 = vadd.f32 %v883, %v972
        %974 = vmatprep.mubr.f32.mxu0 %v323
        %975 = vmatmul.mubr.f32.gmra.mrb[0].mxu0 %v322
        %v976 = vpop.f32.mrb[0].mxu0
        %v977 = vadd.f32 %v879, %v976
        %v978 = vpop.f32.mrb[0].mxu0
        %v979 = vadd.f32 %v883, %v978
        %980 = vmatprep.mubr.f32.mxu0 %v329
        %981 = vmatmul.mubr.f32.gmra.mrb[0].mxu0 %v328
        %v982 = vpop.f32.mrb[0].mxu0
        %v983 = vadd.f32 %v879, %v982
        %v984 = vpop.f32.mrb[0].mxu0
        %v985 = vadd.f32 %v883, %v984
        %986 = vmatprep.mubr.f32.mxu0 %v335
        %987 = vmatmul.mubr.f32.gmra.mrb[0].mxu0 %v334
        %v988 = vpop.f32.mrb[0].mxu0
        %v989 = vadd.f32 %v879, %v988
        %v990 = vpop.f32.mrb[0].mxu0
        %v991 = vadd.f32 %v883, %v990
        %992 = vmatprep.mubr.f32.mxu0 %v341
        %993 = vmatmul.mubr.f32.gmra.mrb[0].mxu0 %v340
        %v994 = vpop.f32.mrb[0].mxu0
        %v995 = vadd.f32 %v879, %v994
        %v996 = vpop.f32.mrb[0].mxu0
        %v997 = vadd.f32 %v883, %v996
        %998 = vmatprep.mubr.f32.mxu0 %v347
        %999 = vmatmul.mubr.f32.gmra.mrb[0].mxu0 %v346
        %v1000 = vpop.f32.mrb[0].mxu0
        %v1001 = vadd.f32 %v879, %v1000
        %v1002 = vpop.f32.mrb[0].mxu0
        %v1003 = vadd.f32 %v883, %v1002
        %1004 = vmatprep.mubr.f32.mxu0 %v353
        %1005 = vmatmul.mubr.f32.gmra.mrb[0].mxu0 %v352
        %v1006 = vpop.f32.mrb[0].mxu0
        %v1007 = vadd.f32 %v879, %v1006
        %v1008 = vpop.f32.mrb[0].mxu0
        %v1009 = vadd.f32 %v883, %v1008
        %1010 = vmatprep.mubr.f32.mxu0 %v359
        %1011 = vmatmul.mubr.f32.gmra.mrb[0].mxu0 %v358
        %v1012 = vpop.f32.mrb[0].mxu0
        %v1013 = vadd.f32 %v879, %v1012
        %v1014 = vpop.f32.mrb[0].mxu0
        %v1015 = vadd.f32 %v883, %v1014
        %1016 = vmatprep.mubr.f32.mxu0 %v365
        %1017 = vmatmul.mubr.f32.gmra.mrb[0].mxu0 %v364
        %v1018 = vpop.f32.mrb[0].mxu0
        %v1019 = vadd.f32 %v879, %v1018
        %v1020 = vpop.f32.mrb[0].mxu0
        %v1021 = vadd.f32 %v883, %v1020
        %1022 = vmatprep.mubr.f32.mxu0 %v371
        %1023 = vmatmul.mubr.f32.gmra.mrb[0].mxu0 %v370
        %v1024 = vpop.f32.mrb[0].mxu0
        %v1025 = vadd.f32 %v879, %v1024
        %v1026 = vpop.f32.mrb[0].mxu0
        %v1027 = vadd.f32 %v883, %v1026
        %1028 = vmatprep.mubr.f32.mxu0 %v377
        %1029 = vmatmul.mubr.f32.gmra.mrb[0].mxu0 %v376
        %v1030 = vpop.f32.mrb[0].mxu0
        %v1031 = vadd.f32 %v879, %v1030
        %v1032 = vpop.f32.mrb[0].mxu0
        %v1033 = vadd.f32 %v883, %v1032
        %1034 = vmatprep.mubr.f32.mxu0 %v383
        %1035 = vmatmul.mubr.f32.gmra.mrb[0].mxu0 %v382
        %v1036 = vpop.f32.mrb[0].mxu0
        %v1037 = vadd.f32 %v879, %v1036
        %v1038 = vpop.f32.mrb[0].mxu0
        %v1039 = vadd.f32 %v883, %v1038
        %1040 = vmatprep.mubr.f32.mxu0 %v389
        %1041 = vmatmul.mubr.f32.gmra.mrb[0].mxu0 %v388
        %v1042 = vpop.f32.mrb[0].mxu0
        %v1043 = vadd.f32 %v879, %v1042
        %v1044 = vpop.f32.mrb[0].mxu0
        %v1045 = vadd.f32 %v883, %v1044
        %1046 = vmatprep.mubr.f32.mxu0 %v395
        %1047 = vmatmul.mubr.f32.gmra.mrb[0].mxu0 %v394
        %v1048 = vpop.f32.mrb[0].mxu0
        %v1049 = vadd.f32 %v879, %v1048
        %v1050 = vpop.f32.mrb[0].mxu0
        %v1051 = vadd.f32 %v883, %v1050
        %1052 = vmatprep.mubr.f32.mxu0 %v401
        %1053 = vmatmul.mubr.f32.gmra.mrb[0].mxu0 %v400
        %v1054 = vpop.f32.mrb[0].mxu0
        %v1055 = vadd.f32 %v879, %v1054
        %v1056 = vpop.f32.mrb[0].mxu0
        %v1057 = vadd.f32 %v883, %v1056
        %1058 = vmatprep.mubr.f32.mxu0 %v407
        %1059 = vmatmul.mubr.f32.gmra.mrb[0].mxu0 %v406
        %v1060 = vpop.f32.mrb[0].mxu0
        %v1061 = vadd.f32 %v879, %v1060
        %v1062 = vpop.f32.mrb[0].mxu0
        %v1063 = vadd.f32 %v883, %v1062
        %1064 = vmatprep.mubr.f32.mxu0 %v413
        %1065 = vmatmul.mubr.f32.gmra.mrb[0].mxu0 %v412
        %v1066 = vpop.f32.mrb[0].mxu0
        %v1067 = vadd.f32 %v879, %v1066
        %v1068 = vpop.f32.mrb[0].mxu0
        %v1069 = vadd.f32 %v883, %v1068
        %1070 = vmatprep.mubr.f32.mxu0 %v419
        %1071 = vmatmul.mubr.f32.gmra.mrb[0].mxu0 %v418
        %v1072 = vpop.f32.mrb[0].mxu0
        %v1073 = vadd.f32 %v879, %v1072
        %v1074 = vpop.f32.mrb[0].mxu0
        %v1075 = vadd.f32 %v883, %v1074
        %1076 = vmatprep.mubr.f32.mxu0 %v425
        %1077 = vmatmul.mubr.f32.gmra.mrb[0].mxu0 %v424
        %v1078 = vpop.f32.mrb[0].mxu0
        %v1079 = vadd.f32 %v879, %v1078
        %v1080 = vpop.f32.mrb[0].mxu0
        %v1081 = vadd.f32 %v883, %v1080
        %1082 = vmatprep.mubr.f32.mxu0 %v431
        %1083 = vmatmul.mubr.f32.gmra.mrb[0].mxu0 %v430
        %v1084 = vpop.f32.mrb[0].mxu0
        %v1085 = vadd.f32 %v879, %v1084
        %v1086 = vpop.f32.mrb[0].mxu0
        %v1087 = vadd.f32 %v883, %v1086
        %1088 = vmatprep.mubr.f32.mxu0 %v437
        %1089 = vmatmul.mubr.f32.gmra.mrb[0].mxu0 %v436
        %v1090 = vpop.f32.mrb[0].mxu0
        %v1091 = vadd.f32 %v879, %v1090
        %v1092 = vpop.f32.mrb[0].mxu0
        %v1093 = vadd.f32 %v883, %v1092
        %1094 = vmatprep.mubr.f32.mxu0 %v443
        %1095 = vmatmul.mubr.f32.gmra.mrb[0].mxu0 %v442
        %v1096 = vpop.f32.mrb[0].mxu0
        %v1097 = vadd.f32 %v879, %v1096
        %v1098 = vpop.f32.mrb[0].mxu0
        %v1099 = vadd.f32 %v883, %v1098
        %1100 = vmatprep.mubr.f32.mxu0 %v449
        %1101 = vmatmul.mubr.f32.gmra.mrb[0].mxu0 %v448
        %v1102 = vpop.f32.mrb[0].mxu0
        %v1103 = vadd.f32 %v879, %v1102
        %v1104 = vpop.f32.mrb[0].mxu0
        %v1105 = vadd.f32 %v883, %v1104
        %1106 = vmatprep.mubr.f32.mxu0 %v455
        %1107 = vmatmul.mubr.f32.gmra.mrb[0].mxu0 %v454
        %v1108 = vpop.f32.mrb[0].mxu0
        %v1109 = vadd.f32 %v879, %v1108
        %v1110 = vpop.f32.mrb[0].mxu0
        %v1111 = vadd.f32 %v883, %v1110
        %1112 = vmatprep.mubr.f32.mxu0 %v461
        %1113 = vmatmul.mubr.f32.gmra.mrb[0].mxu0 %v460
        %v1114 = vpop.f32.mrb[0].mxu0
        %v1115 = vadd.f32 %v879, %v1114
        %v1116 = vpop.f32.mrb[0].mxu0
        %v1117 = vadd.f32 %v883, %v1116
        %1118 = vmatprep.mubr.f32.mxu0 %v467
        %1119 = vmatmul.mubr.f32.gmra.mrb[0].mxu0 %v466
        %v1120 = vpop.f32.mrb[0].mxu0
        %v1121 = vadd.f32 %v879, %v1120
        %v1122 = vpop.f32.mrb[0].mxu0
        %v1123 = vadd.f32 %v883, %v1122
        %1124 = vmatprep.mubr.f32.mxu0 %v473
        %1125 = vmatmul.mubr.f32.gmra.mrb[0].mxu0 %v472
        %v1126 = vpop.f32.mrb[0].mxu0
        %v1127 = vadd.f32 %v879, %v1126
        %v1128 = vpop.f32.mrb[0].mxu0
        %v1129 = vadd.f32 %v883, %v1128
        %1130 = vmatprep.mubr.f32.mxu0 %v479
        %1131 = vmatmul.mubr.f32.gmra.mrb[0].mxu0 %v478
        %v1132 = vpop.f32.mrb[0].mxu0
        %v1133 = vadd.f32 %v879, %v1132
        %v1134 = vpop.f32.mrb[0].mxu0
        %v1135 = vadd.f32 %v883, %v1134
        %1136 = vmatprep.mubr.f32.mxu0 %v485
        %1137 = vmatmul.mubr.f32.gmra.mrb[0].mxu0 %v484
        %v1138 = vpop.f32.mrb[0].mxu0
        %v1139 = vadd.f32 %v879, %v1138
        %v1140 = vpop.f32.mrb[0].mxu0
        %v1141 = vadd.f32 %v883, %v1140
        %1142 = vmatprep.mubr.f32.mxu0 %v491
        %1143 = vmatmul.mubr.f32.gmra.mrb[0].mxu0 %v490
        %v1144 = vpop.f32.mrb[0].mxu0
        %v1145 = vadd.f32 %v879, %v1144
        %v1146 = vpop.f32.mrb[0].mxu0
        %v1147 = vadd.f32 %v883, %v1146
        %1148 = vmatprep.mubr.f32.mxu0 %v497
        %1149 = vmatmul.mubr.f32.gmra.mrb[0].mxu0 %v496
        %v1150 = vpop.f32.mrb[0].mxu0
        %v1151 = vadd.f32 %v879, %v1150
        %v1152 = vpop.f32.mrb[0].mxu0
        %v1153 = vadd.f32 %v883, %v1152
        %1154 = vmatprep.mubr.f32.mxu0 %v503
        %1155 = vmatmul.mubr.f32.gmra.mrb[0].mxu0 %v502
        %v1156 = vpop.f32.mrb[0].mxu0
        %v1157 = vadd.f32 %v879, %v1156
        %v1158 = vpop.f32.mrb[0].mxu0
        %v1159 = vadd.f32 %v883, %v1158
        %1160 = vmatprep.mubr.f32.mxu0 %v509
        %1161 = vmatmul.mubr.f32.gmra.mrb[0].mxu0 %v508
        %v1162 = vpop.f32.mrb[0].mxu0
        %v1163 = vadd.f32 %v879, %v1162
        %v1164 = vpop.f32.mrb[0].mxu0
        %v1165 = vadd.f32 %v883, %v1164
        %1166 = vmatprep.mubr.f32.mxu0 %v515
        %1167 = vmatmul.mubr.f32.gmra.mrb[0].mxu0 %v514
        %v1168 = vpop.f32.mrb[0].mxu0
        %v1169 = vadd.f32 %v879, %v1168
        %v1170 = vpop.f32.mrb[0].mxu0
        %v1171 = vadd.f32 %v883, %v1170
        %1172 = vmatprep.mubr.f32.mxu0 %v521
        %1173 = vmatmul.mubr.f32.gmra.mrb[0].mxu0 %v520
        %v1174 = vpop.f32.mrb[0].mxu0
        %v1175 = vadd.f32 %v879, %v1174
        %v1176 = vpop.f32.mrb[0].mxu0
        %v1177 = vadd.f32 %v883, %v1176
        %1178 = vmatprep.mubr.f32.mxu0 %v527
        %1179 = vmatmul.mubr.f32.gmra.mrb[0].mxu0 %v526
        %v1180 = vpop.f32.mrb[0].mxu0
        %v1181 = vadd.f32 %v879, %v1180
        %v1182 = vpop.f32.mrb[0].mxu0
        %v1183 = vadd.f32 %v883, %v1182
        %1184 = vmatprep.mubr.f32.mxu0 %v533
        %1185 = vmatmul.mubr.f32.gmra.mrb[0].mxu0 %v532
        %v1186 = vpop.f32.mrb[0].mxu0
        %v1187 = vadd.f32 %v879, %v1186
        %v1188 = vpop.f32.mrb[0].mxu0
        %v1189 = vadd.f32 %v883, %v1188
        %1190 = vmatprep.mubr.f32.mxu0 %v539
        %1191 = vmatmul.mubr.f32.gmra.mrb[0].mxu0 %v538
        %v1192 = vpop.f32.mrb[0].mxu0
        %v1193 = vadd.f32 %v879, %v1192
        %v1194 = vpop.f32.mrb[0].mxu0
        %v1195 = vadd.f32 %v883, %v1194
        %1196 = vmatprep.mubr.f32.mxu0 %v545
        %1197 = vmatmul.mubr.f32.gmra.mrb[0].mxu0 %v544
        %v1198 = vpop.f32.mrb[0].mxu0
        %v1199 = vadd.f32 %v879, %v1198
        %v1200 = vpop.f32.mrb[0].mxu0
        %v1201 = vadd.f32 %v883, %v1200
        %1202 = vmatprep.mubr.f32.mxu0 %v551
        %1203 = vmatmul.mubr.f32.gmra.mrb[0].mxu0 %v550
        %v1204 = vpop.f32.mrb[0].mxu0
        %v1205 = vadd.f32 %v879, %v1204
        %v1206 = vpop.f32.mrb[0].mxu0
        %v1207 = vadd.f32 %v883, %v1206
        %1208 = vmatprep.mubr.f32.mxu0 %v557
        %1209 = vmatmul.mubr.f32.gmra.mrb[0].mxu0 %v556
        %v1210 = vpop.f32.mrb[0].mxu0
        %v1211 = vadd.f32 %v879, %v1210
        %v1212 = vpop.f32.mrb[0].mxu0
        %v1213 = vadd.f32 %v883, %v1212
        %1214 = vmatprep.mubr.f32.mxu0 %v563
        %1215 = vmatmul.mubr.f32.gmra.mrb[0].mxu0 %v562
        %v1216 = vpop.f32.mrb[0].mxu0
        %v1217 = vadd.f32 %v879, %v1216
        %v1218 = vpop.f32.mrb[0].mxu0
        %v1219 = vadd.f32 %v883, %v1218
        %1220 = vmatprep.mubr.f32.mxu0 %v569
        %1221 = vmatmul.mubr.f32.gmra.mrb[0].mxu0 %v568
        %v1222 = vpop.f32.mrb[0].mxu0
        %v1223 = vadd.f32 %v879, %v1222
        %v1224 = vpop.f32.mrb[0].mxu0
        %v1225 = vadd.f32 %v883, %v1224
        %1226 = vmatprep.mubr.f32.mxu0 %v575
        %1227 = vmatmul.mubr.f32.gmra.mrb[0].mxu0 %v574
        %v1228 = vpop.f32.mrb[0].mxu0
        %v1229 = vadd.f32 %v879, %v1228
        %v1230 = vpop.f32.mrb[0].mxu0
        %v1231 = vadd.f32 %v883, %v1230
        %1232 = vmatprep.mubr.f32.mxu0 %v581
        %1233 = vmatmul.mubr.f32.gmra.mrb[0].mxu0 %v580
        %v1234 = vpop.f32.mrb[0].mxu0
        %v1235 = vadd.f32 %v879, %v1234
        %v1236 = vpop.f32.mrb[0].mxu0
        %v1237 = vadd.f32 %v883, %v1236
        %1238 = vmatprep.mubr.f32.mxu0 %v587
        %1239 = vmatmul.mubr.f32.gmra.mrb[0].mxu0 %v586
        %v1240 = vpop.f32.mrb[0].mxu0
        %v1241 = vadd.f32 %v879, %v1240
        %v1242 = vpop.f32.mrb[0].mxu0
        %v1243 = vadd.f32 %v883, %v1242
        %1244 = vmatprep.mubr.f32.mxu0 %v593
        %1245 = vmatmul.mubr.f32.gmra.mrb[0].mxu0 %v592
        %v1246 = vpop.f32.mrb[0].mxu0
        %v1247 = vadd.f32 %v879, %v1246
        %v1248 = vpop.f32.mrb[0].mxu0
        %v1249 = vadd.f32 %v883, %v1248
        %1250 = vmatprep.mubr.f32.mxu0 %v599
        %1251 = vmatmul.mubr.f32.gmra.mrb[0].mxu0 %v598
        %v1252 = vpop.f32.mrb[0].mxu0
        %v1253 = vadd.f32 %v879, %v1252
        %v1254 = vpop.f32.mrb[0].mxu0
        %v1255 = vadd.f32 %v883, %v1254
        %1256 = vmatprep.mubr.f32.mxu0 %v605
        %1257 = vmatmul.mubr.f32.gmra.mrb[0].mxu0 %v604
        %v1258 = vpop.f32.mrb[0].mxu0
        %v1259 = vadd.f32 %v879, %v1258
        %v1260 = vpop.f32.mrb[0].mxu0
        %v1261 = vadd.f32 %v883, %v1260
        %1262 = vmatprep.mubr.f32.mxu0 %v611
        %1263 = vmatmul.mubr.f32.gmra.mrb[0].mxu0 %v610
        %v1264 = vpop.f32.mrb[0].mxu0
        %v1265 = vadd.f32 %v879, %v1264
        %v1266 = vpop.f32.mrb[0].mxu0
        %v1267 = vadd.f32 %v883, %v1266
        %1268 = vmatprep.mubr.f32.mxu0 %v617
        %1269 = vmatmul.mubr.f32.gmra.mrb[0].mxu0 %v616
        %v1270 = vpop.f32.mrb[0].mxu0
        %v1271 = vadd.f32 %v879, %v1270
        %v1272 = vpop.f32.mrb[0].mxu0
        %v1273 = vadd.f32 %v883, %v1272
        %1274 = vmatprep.mubr.f32.mxu0 %v623
        %1275 = vmatmul.mubr.f32.gmra.mrb[0].mxu0 %v622
        %v1276 = vpop.f32.mrb[0].mxu0
        %v1277 = vadd.f32 %v879, %v1276
        %v1278 = vpop.f32.mrb[0].mxu0
        %v1279 = vadd.f32 %v883, %v1278
        %1280 = vmatprep.mubr.f32.mxu0 %v629
        %1281 = vmatmul.mubr.f32.gmra.mrb[0].mxu0 %v628
        %v1282 = vpop.f32.mrb[0].mxu0
        %v1283 = vadd.f32 %v879, %v1282
        %v1284 = vpop.f32.mrb[0].mxu0
        %v1285 = vadd.f32 %v883, %v1284
        %1286 = vmatprep.mubr.f32.mxu0 %v635
        %1287 = vmatmul.mubr.f32.gmra.mrb[0].mxu0 %v634
        %v1288 = vpop.f32.mrb[0].mxu0
        %v1289 = vadd.f32 %v879, %v1288
        %v1290 = vpop.f32.mrb[0].mxu0
        %v1291 = vadd.f32 %v883, %v1290
        %1292 = vmatprep.mubr.f32.mxu0 %v641
        %1293 = vmatmul.mubr.f32.gmra.mrb[0].mxu0 %v640
        %v1294 = vpop.f32.mrb[0].mxu0
        %v1295 = vadd.f32 %v879, %v1294
        %v1296 = vpop.f32.mrb[0].mxu0
        %v1297 = vadd.f32 %v883, %v1296
        %1298 = vmatprep.mubr.f32.mxu0 %v647
        %1299 = vmatmul.mubr.f32.gmra.mrb[0].mxu0 %v646
        %v1300 = vpop.f32.mrb[0].mxu0
        %v1301 = vadd.f32 %v879, %v1300
        %v1302 = vpop.f32.mrb[0].mxu0
        %v1303 = vadd.f32 %v883, %v1302
        %1304 = vmatprep.mubr.f32.mxu0 %v653
        %1305 = vmatmul.mubr.f32.gmra.mrb[0].mxu0 %v652
        %v1306 = vpop.f32.mrb[0].mxu0
        %v1307 = vadd.f32 %v879, %v1306
        %v1308 = vpop.f32.mrb[0].mxu0
        %v1309 = vadd.f32 %v883, %v1308
        %1310 = vmatprep.mubr.f32.mxu0 %v659
        %1311 = vmatmul.mubr.f32.gmra.mrb[0].mxu0 %v658
        %v1312 = vpop.f32.mrb[0].mxu0
        %v1313 = vadd.f32 %v879, %v1312
        %v1314 = vpop.f32.mrb[0].mxu0
        %v1315 = vadd.f32 %v883, %v1314
        %1316 = vmatprep.mubr.f32.mxu0 %v665
        %1317 = vmatmul.mubr.f32.gmra.mrb[0].mxu0 %v664
        %v1318 = vpop.f32.mrb[0].mxu0
        %v1319 = vadd.f32 %v879, %v1318
        %v1320 = vpop.f32.mrb[0].mxu0
        %v1321 = vadd.f32 %v883, %v1320
        %1322 = vmatprep.mubr.f32.mxu0 %v671
        %1323 = vmatmul.mubr.f32.gmra.mrb[0].mxu0 %v670
        %v1324 = vpop.f32.mrb[0].mxu0
        %v1325 = vadd.f32 %v879, %v1324
        %v1326 = vpop.f32.mrb[0].mxu0
        %v1327 = vadd.f32 %v883, %v1326
        %1328 = vmatprep.mubr.f32.mxu0 %v677
        %1329 = vmatmul.mubr.f32.gmra.mrb[0].mxu0 %v676
        %v1330 = vpop.f32.mrb[0].mxu0
        %v1331 = vadd.f32 %v879, %v1330
        %v1332 = vpop.f32.mrb[0].mxu0
        %v1333 = vadd.f32 %v883, %v1332
        %1334 = vdwg.mxu0
        %1335 = vmatprep.subr.mxu0 %v747
        %1336 = vmatpush1.msra.mxu0 %v746
        %1337 = vmatprep.subr.mxu0 %v749
        %1338 = vmatpush1.msra.mxu0 %v748
        %1339 = vmatprep.subr.mxu0 %v751
        %1340 = vmatpush1.msra.mxu0 %v750
        %1341 = vmatprep.subr.mxu0 %v753
        %1342 = vmatpush1.msra.mxu0 %v752
        %1343 = vmatprep.subr.mxu0 %v755
        %1344 = vmatpush1.msra.mxu0 %v754
        %1345 = vmatprep.subr.mxu0 %v757
        %1346 = vmatpush1.msra.mxu0 %v756
        %1347 = vmatprep.subr.mxu0 %v759
        %1348 = vmatpush1.msra.mxu0 %v758
        %1349 = vmatprep.subr.mxu0 %v761
        %1350 = vmatpush1.msra.mxu0 %v760
        %1351 = vmatprep.subr.mxu0 %v763
        %1352 = vmatpush1.msra.mxu0 %v762
        %1353 = vmatprep.subr.mxu0 %v765
        %1354 = vmatpush1.msra.mxu0 %v764
        %1355 = vmatprep.subr.mxu0 %v767
        %1356 = vmatpush1.msra.mxu0 %v766
        %1357 = vmatprep.subr.mxu0 %v769
        %1358 = vmatpush1.msra.mxu0 %v768
        %1359 = vmatprep.subr.mxu0 %v771
        %1360 = vmatpush1.msra.mxu0 %v770
        %1361 = vmatprep.subr.mxu0 %v773
        %1362 = vmatpush1.msra.mxu0 %v772
        %1363 = vmatprep.subr.mxu0 %v775
        %1364 = vmatpush1.msra.mxu0 %v774
        %1365 = vmatprep.subr.mxu0 %v777
        %1366 = vmatpush1.msra.mxu0 %v776
        %1367 = vmatprep.subr.mxu0 %v779
        %1368 = vmatpush1.msra.mxu0 %v778
        %1369 = vmatprep.subr.mxu0 %v781
        %1370 = vmatpush1.msra.mxu0 %v780
        %1371 = vmatprep.subr.mxu0 %v783
        %1372 = vmatpush1.msra.mxu0 %v782
        %1373 = vmatprep.subr.mxu0 %v785
        %1374 = vmatpush1.msra.mxu0 %v784
        %1375 = vmatprep.subr.mxu0 %v787
        %1376 = vmatpush1.msra.mxu0 %v786
        %1377 = vmatprep.subr.mxu0 %v789
        %1378 = vmatpush1.msra.mxu0 %v788
        %1379 = vmatprep.subr.mxu0 %v791
        %1380 = vmatpush1.msra.mxu0 %v790
        %1381 = vmatprep.subr.mxu0 %v793
        %1382 = vmatpush1.msra.mxu0 %v792
        %1383 = vmatprep.subr.mxu0 %v795
        %1384 = vmatpush1.msra.mxu0 %v794
        %1385 = vmatprep.subr.mxu0 %v797
        %1386 = vmatpush1.msra.mxu0 %v796
        %1387 = vmatprep.subr.mxu0 %v799
        %1388 = vmatpush1.msra.mxu0 %v798
        %1389 = vmatprep.subr.mxu0 %v801
        %1390 = vmatpush1.msra.mxu0 %v800
        %1391 = vmatprep.subr.mxu0 %v803
        %1392 = vmatpush1.msra.mxu0 %v802
        %1393 = vmatprep.subr.mxu0 %v805
        %1394 = vmatpush1.msra.mxu0 %v804
        %1395 = vmatprep.subr.mxu0 %v807
        %1396 = vmatpush1.msra.mxu0 %v806
        %1397 = vmatprep.subr.mxu0 %v809
        %1398 = vmatpush1.msra.mxu0 %v808
        %1399 = vmatprep.mubr.f32.mxu0 %v301
        %1400 = vmatmul.mubr.f32.gmra.mrb[0].mxu0 %v300
        %v1401 = vpop.f32.mrb[0].mxu0
        %v1402 = vadd.f32 %v953, %v1401
        %v1403 = vpop.f32.mrb[0].mxu0
        %v1404 = vadd.f32 %v955, %v1403
        %1405 = vmatprep.mubr.f32.mxu0 %v307
        %1406 = vmatmul.mubr.f32.gmra.mrb[0].mxu0 %v306
        %v1407 = vpop.f32.mrb[0].mxu0
        %v1408 = vadd.f32 %v959, %v1407
        %v1409 = vpop.f32.mrb[0].mxu0
        %v1410 = vadd.f32 %v961, %v1409
        %1411 = vmatprep.mubr.f32.mxu0 %v313
        %1412 = vmatmul.mubr.f32.gmra.mrb[0].mxu0 %v312
        %v1413 = vpop.f32.mrb[0].mxu0
        %v1414 = vadd.f32 %v965, %v1413
        %v1415 = vpop.f32.mrb[0].mxu0
        %v1416 = vadd.f32 %v967, %v1415
        %1417 = vmatprep.mubr.f32.mxu0 %v319
        %1418 = vmatmul.mubr.f32.gmra.mrb[0].mxu0 %v318
        %v1419 = vpop.f32.mrb[0].mxu0
        %v1420 = vadd.f32 %v971, %v1419
        %v1421 = vpop.f32.mrb[0].mxu0
        %v1422 = vadd.f32 %v973, %v1421
        %1423 = vmatprep.mubr.f32.mxu0 %v325
        %1424 = vmatmul.mubr.f32.gmra.mrb[0].mxu0 %v324
        %v1425 = vpop.f32.mrb[0].mxu0
        %v1426 = vadd.f32 %v977, %v1425
        %v1427 = vpop.f32.mrb[0].mxu0
        %v1428 = vadd.f32 %v979, %v1427
        %1429 = vmatprep.mubr.f32.mxu0 %v331
        %1430 = vmatmul.mubr.f32.gmra.mrb[0].mxu0 %v330
        %v1431 = vpop.f32.mrb[0].mxu0
        %v1432 = vadd.f32 %v983, %v1431
        %v1433 = vpop.f32.mrb[0].mxu0
        %v1434 = vadd.f32 %v985, %v1433
        %1435 = vmatprep.mubr.f32.mxu0 %v337
        %1436 = vmatmul.mubr.f32.gmra.mrb[0].mxu0 %v336
        %v1437 = vpop.f32.mrb[0].mxu0
        %v1438 = vadd.f32 %v989, %v1437
        %v1439 = vpop.f32.mrb[0].mxu0
        %v1440 = vadd.f32 %v991, %v1439
        %1441 = vmatprep.mubr.f32.mxu0 %v343
        %1442 = vmatmul.mubr.f32.gmra.mrb[0].mxu0 %v342
        %v1443 = vpop.f32.mrb[0].mxu0
        %v1444 = vadd.f32 %v995, %v1443
        %v1445 = vpop.f32.mrb[0].mxu0
        %v1446 = vadd.f32 %v997, %v1445
        %1447 = vmatprep.mubr.f32.mxu0 %v349
        %1448 = vmatmul.mubr.f32.gmra.mrb[0].mxu0 %v348
        %v1449 = vpop.f32.mrb[0].mxu0
        %v1450 = vadd.f32 %v1001, %v1449
        %v1451 = vpop.f32.mrb[0].mxu0
        %v1452 = vadd.f32 %v1003, %v1451
        %1453 = vmatprep.mubr.f32.mxu0 %v355
        %1454 = vmatmul.mubr.f32.gmra.mrb[0].mxu0 %v354
        %v1455 = vpop.f32.mrb[0].mxu0
        %v1456 = vadd.f32 %v1007, %v1455
        %v1457 = vpop.f32.mrb[0].mxu0
        %v1458 = vadd.f32 %v1009, %v1457
        %1459 = vmatprep.mubr.f32.mxu0 %v361
        %1460 = vmatmul.mubr.f32.gmra.mrb[0].mxu0 %v360
        %v1461 = vpop.f32.mrb[0].mxu0
        %v1462 = vadd.f32 %v1013, %v1461
        %v1463 = vpop.f32.mrb[0].mxu0
        %v1464 = vadd.f32 %v1015, %v1463
        %1465 = vmatprep.mubr.f32.mxu0 %v367
        %1466 = vmatmul.mubr.f32.gmra.mrb[0].mxu0 %v366
        %v1467 = vpop.f32.mrb[0].mxu0
        %v1468 = vadd.f32 %v1019, %v1467
        %v1469 = vpop.f32.mrb[0].mxu0
        %v1470 = vadd.f32 %v1021, %v1469
        %1471 = vmatprep.mubr.f32.mxu0 %v373
        %1472 = vmatmul.mubr.f32.gmra.mrb[0].mxu0 %v372
        %v1473 = vpop.f32.mrb[0].mxu0
        %v1474 = vadd.f32 %v1025, %v1473
        %v1475 = vpop.f32.mrb[0].mxu0
        %v1476 = vadd.f32 %v1027, %v1475
        %1477 = vmatprep.mubr.f32.mxu0 %v379
        %1478 = vmatmul.mubr.f32.gmra.mrb[0].mxu0 %v378
        %v1479 = vpop.f32.mrb[0].mxu0
        %v1480 = vadd.f32 %v1031, %v1479
        %v1481 = vpop.f32.mrb[0].mxu0
        %v1482 = vadd.f32 %v1033, %v1481
        %1483 = vmatprep.mubr.f32.mxu0 %v385
        %1484 = vmatmul.mubr.f32.gmra.mrb[0].mxu0 %v384
        %v1485 = vpop.f32.mrb[0].mxu0
        %v1486 = vadd.f32 %v1037, %v1485
        %v1487 = vpop.f32.mrb[0].mxu0
        %v1488 = vadd.f32 %v1039, %v1487
        %1489 = vmatprep.mubr.f32.mxu0 %v391
        %1490 = vmatmul.mubr.f32.gmra.mrb[0].mxu0 %v390
        %v1491 = vpop.f32.mrb[0].mxu0
        %v1492 = vadd.f32 %v1043, %v1491
        %v1493 = vpop.f32.mrb[0].mxu0
        %v1494 = vadd.f32 %v1045, %v1493
        %1495 = vmatprep.mubr.f32.mxu0 %v397
        %1496 = vmatmul.mubr.f32.gmra.mrb[0].mxu0 %v396
        %v1497 = vpop.f32.mrb[0].mxu0
        %v1498 = vadd.f32 %v1049, %v1497
        %v1499 = vpop.f32.mrb[0].mxu0
        %v1500 = vadd.f32 %v1051, %v1499
        %1501 = vmatprep.mubr.f32.mxu0 %v403
        %1502 = vmatmul.mubr.f32.gmra.mrb[0].mxu0 %v402
        %v1503 = vpop.f32.mrb[0].mxu0
        %v1504 = vadd.f32 %v1055, %v1503
        %v1505 = vpop.f32.mrb[0].mxu0
        %v1506 = vadd.f32 %v1057, %v1505
        %1507 = vmatprep.mubr.f32.mxu0 %v409
        %1508 = vmatmul.mubr.f32.gmra.mrb[0].mxu0 %v408
        %v1509 = vpop.f32.mrb[0].mxu0
        %v1510 = vadd.f32 %v1061, %v1509
        %v1511 = vpop.f32.mrb[0].mxu0
        %v1512 = vadd.f32 %v1063, %v1511
        %1513 = vmatprep.mubr.f32.mxu0 %v415
        %1514 = vmatmul.mubr.f32.gmra.mrb[0].mxu0 %v414
        %v1515 = vpop.f32.mrb[0].mxu0
        %v1516 = vadd.f32 %v1067, %v1515
        %v1517 = vpop.f32.mrb[0].mxu0
        %v1518 = vadd.f32 %v1069, %v1517
        %1519 = vmatprep.mubr.f32.mxu0 %v421
        %1520 = vmatmul.mubr.f32.gmra.mrb[0].mxu0 %v420
        %v1521 = vpop.f32.mrb[0].mxu0
        %v1522 = vadd.f32 %v1073, %v1521
        %v1523 = vpop.f32.mrb[0].mxu0
        %v1524 = vadd.f32 %v1075, %v1523
        %1525 = vmatprep.mubr.f32.mxu0 %v427
        %1526 = vmatmul.mubr.f32.gmra.mrb[0].mxu0 %v426
        %v1527 = vpop.f32.mrb[0].mxu0
        %v1528 = vadd.f32 %v1079, %v1527
        %v1529 = vpop.f32.mrb[0].mxu0
        %v1530 = vadd.f32 %v1081, %v1529
        %1531 = vmatprep.mubr.f32.mxu0 %v433
        %1532 = vmatmul.mubr.f32.gmra.mrb[0].mxu0 %v432
        %v1533 = vpop.f32.mrb[0].mxu0
        %v1534 = vadd.f32 %v1085, %v1533
        %v1535 = vpop.f32.mrb[0].mxu0
        %v1536 = vadd.f32 %v1087, %v1535
        %1537 = vmatprep.mubr.f32.mxu0 %v439
        %1538 = vmatmul.mubr.f32.gmra.mrb[0].mxu0 %v438
        %v1539 = vpop.f32.mrb[0].mxu0
        %v1540 = vadd.f32 %v1091, %v1539
        %v1541 = vpop.f32.mrb[0].mxu0
        %v1542 = vadd.f32 %v1093, %v1541
        %1543 = vmatprep.mubr.f32.mxu0 %v445
        %1544 = vmatmul.mubr.f32.gmra.mrb[0].mxu0 %v444
        %v1545 = vpop.f32.mrb[0].mxu0
        %v1546 = vadd.f32 %v1097, %v1545
        %v1547 = vpop.f32.mrb[0].mxu0
        %v1548 = vadd.f32 %v1099, %v1547
        %1549 = vmatprep.mubr.f32.mxu0 %v451
        %1550 = vmatmul.mubr.f32.gmra.mrb[0].mxu0 %v450
        %v1551 = vpop.f32.mrb[0].mxu0
        %v1552 = vadd.f32 %v1103, %v1551
        %v1553 = vpop.f32.mrb[0].mxu0
        %v1554 = vadd.f32 %v1105, %v1553
        %1555 = vmatprep.mubr.f32.mxu0 %v457
        %1556 = vmatmul.mubr.f32.gmra.mrb[0].mxu0 %v456
        %v1557 = vpop.f32.mrb[0].mxu0
        %v1558 = vadd.f32 %v1109, %v1557
        %v1559 = vpop.f32.mrb[0].mxu0
        %v1560 = vadd.f32 %v1111, %v1559
        %1561 = vmatprep.mubr.f32.mxu0 %v463
        %1562 = vmatmul.mubr.f32.gmra.mrb[0].mxu0 %v462
        %v1563 = vpop.f32.mrb[0].mxu0
        %v1564 = vadd.f32 %v1115, %v1563
        %v1565 = vpop.f32.mrb[0].mxu0
        %v1566 = vadd.f32 %v1117, %v1565
        %1567 = vmatprep.mubr.f32.mxu0 %v469
        %1568 = vmatmul.mubr.f32.gmra.mrb[0].mxu0 %v468
        %v1569 = vpop.f32.mrb[0].mxu0
        %v1570 = vadd.f32 %v1121, %v1569
        %v1571 = vpop.f32.mrb[0].mxu0
        %v1572 = vadd.f32 %v1123, %v1571
        %1573 = vmatprep.mubr.f32.mxu0 %v475
        %1574 = vmatmul.mubr.f32.gmra.mrb[0].mxu0 %v474
        %v1575 = vpop.f32.mrb[0].mxu0
        %v1576 = vadd.f32 %v1127, %v1575
        %v1577 = vpop.f32.mrb[0].mxu0
        %v1578 = vadd.f32 %v1129, %v1577
        %1579 = vmatprep.mubr.f32.mxu0 %v481
        %1580 = vmatmul.mubr.f32.gmra.mrb[0].mxu0 %v480
        %v1581 = vpop.f32.mrb[0].mxu0
        %v1582 = vadd.f32 %v1133, %v1581
        %v1583 = vpop.f32.mrb[0].mxu0
        %v1584 = vadd.f32 %v1135, %v1583
        %1585 = vmatprep.mubr.f32.mxu0 %v487
        %1586 = vmatmul.mubr.f32.gmra.mrb[0].mxu0 %v486
        %v1587 = vpop.f32.mrb[0].mxu0
        %v1588 = vadd.f32 %v1139, %v1587
        %v1589 = vpop.f32.mrb[0].mxu0
        %v1590 = vadd.f32 %v1141, %v1589
        %1591 = vmatprep.mubr.f32.mxu0 %v493
        %1592 = vmatmul.mubr.f32.gmra.mrb[0].mxu0 %v492
        %v1593 = vpop.f32.mrb[0].mxu0
        %v1594 = vadd.f32 %v1145, %v1593
        %v1595 = vpop.f32.mrb[0].mxu0
        %v1596 = vadd.f32 %v1147, %v1595
        %1597 = vmatprep.mubr.f32.mxu0 %v499
        %1598 = vmatmul.mubr.f32.gmra.mrb[0].mxu0 %v498
        %v1599 = vpop.f32.mrb[0].mxu0
        %v1600 = vadd.f32 %v1151, %v1599
        %v1601 = vpop.f32.mrb[0].mxu0
        %v1602 = vadd.f32 %v1153, %v1601
        %1603 = vmatprep.mubr.f32.mxu0 %v505
        %1604 = vmatmul.mubr.f32.gmra.mrb[0].mxu0 %v504
        %v1605 = vpop.f32.mrb[0].mxu0
        %v1606 = vadd.f32 %v1157, %v1605
        %v1607 = vpop.f32.mrb[0].mxu0
        %v1608 = vadd.f32 %v1159, %v1607
        %1609 = vmatprep.mubr.f32.mxu0 %v511
        %1610 = vmatmul.mubr.f32.gmra.mrb[0].mxu0 %v510
        %v1611 = vpop.f32.mrb[0].mxu0
        %v1612 = vadd.f32 %v1163, %v1611
        %v1613 = vpop.f32.mrb[0].mxu0
        %v1614 = vadd.f32 %v1165, %v1613
        %1615 = vmatprep.mubr.f32.mxu0 %v517
        %1616 = vmatmul.mubr.f32.gmra.mrb[0].mxu0 %v516
        %v1617 = vpop.f32.mrb[0].mxu0
        %v1618 = vadd.f32 %v1169, %v1617
        %v1619 = vpop.f32.mrb[0].mxu0
        %v1620 = vadd.f32 %v1171, %v1619
        %1621 = vmatprep.mubr.f32.mxu0 %v523
        %1622 = vmatmul.mubr.f32.gmra.mrb[0].mxu0 %v522
        %v1623 = vpop.f32.mrb[0].mxu0
        %v1624 = vadd.f32 %v1175, %v1623
        %v1625 = vpop.f32.mrb[0].mxu0
        %v1626 = vadd.f32 %v1177, %v1625
        %1627 = vmatprep.mubr.f32.mxu0 %v529
        %1628 = vmatmul.mubr.f32.gmra.mrb[0].mxu0 %v528
        %v1629 = vpop.f32.mrb[0].mxu0
        %v1630 = vadd.f32 %v1181, %v1629
        %v1631 = vpop.f32.mrb[0].mxu0
        %v1632 = vadd.f32 %v1183, %v1631
        %1633 = vmatprep.mubr.f32.mxu0 %v535
        %1634 = vmatmul.mubr.f32.gmra.mrb[0].mxu0 %v534
        %v1635 = vpop.f32.mrb[0].mxu0
        %v1636 = vadd.f32 %v1187, %v1635
        %v1637 = vpop.f32.mrb[0].mxu0
        %v1638 = vadd.f32 %v1189, %v1637
        %1639 = vmatprep.mubr.f32.mxu0 %v541
        %1640 = vmatmul.mubr.f32.gmra.mrb[0].mxu0 %v540
        %v1641 = vpop.f32.mrb[0].mxu0
        %v1642 = vadd.f32 %v1193, %v1641
        %v1643 = vpop.f32.mrb[0].mxu0
        %v1644 = vadd.f32 %v1195, %v1643
        %1645 = vmatprep.mubr.f32.mxu0 %v547
        %1646 = vmatmul.mubr.f32.gmra.mrb[0].mxu0 %v546
        %v1647 = vpop.f32.mrb[0].mxu0
        %v1648 = vadd.f32 %v1199, %v1647
        %v1649 = vpop.f32.mrb[0].mxu0
        %v1650 = vadd.f32 %v1201, %v1649
        %1651 = vmatprep.mubr.f32.mxu0 %v553
        %1652 = vmatmul.mubr.f32.gmra.mrb[0].mxu0 %v552
        %v1653 = vpop.f32.mrb[0].mxu0
        %v1654 = vadd.f32 %v1205, %v1653
        %v1655 = vpop.f32.mrb[0].mxu0
        %v1656 = vadd.f32 %v1207, %v1655
        %1657 = vmatprep.mubr.f32.mxu0 %v559
        %1658 = vmatmul.mubr.f32.gmra.mrb[0].mxu0 %v558
        %v1659 = vpop.f32.mrb[0].mxu0
        %v1660 = vadd.f32 %v1211, %v1659
        %v1661 = vpop.f32.mrb[0].mxu0
        %v1662 = vadd.f32 %v1213, %v1661
        %1663 = vmatprep.mubr.f32.mxu0 %v565
        %1664 = vmatmul.mubr.f32.gmra.mrb[0].mxu0 %v564
        %v1665 = vpop.f32.mrb[0].mxu0
        %v1666 = vadd.f32 %v1217, %v1665
        %v1667 = vpop.f32.mrb[0].mxu0
        %v1668 = vadd.f32 %v1219, %v1667
        %1669 = vmatprep.mubr.f32.mxu0 %v571
        %1670 = vmatmul.mubr.f32.gmra.mrb[0].mxu0 %v570
        %v1671 = vpop.f32.mrb[0].mxu0
        %v1672 = vadd.f32 %v1223, %v1671
        %v1673 = vpop.f32.mrb[0].mxu0
        %v1674 = vadd.f32 %v1225, %v1673
        %1675 = vmatprep.mubr.f32.mxu0 %v577
        %1676 = vmatmul.mubr.f32.gmra.mrb[0].mxu0 %v576
        %v1677 = vpop.f32.mrb[0].mxu0
        %v1678 = vadd.f32 %v1229, %v1677
        %v1679 = vpop.f32.mrb[0].mxu0
        %v1680 = vadd.f32 %v1231, %v1679
        %1681 = vmatprep.mubr.f32.mxu0 %v583
        %1682 = vmatmul.mubr.f32.gmra.mrb[0].mxu0 %v582
        %v1683 = vpop.f32.mrb[0].mxu0
        %v1684 = vadd.f32 %v1235, %v1683
        %v1685 = vpop.f32.mrb[0].mxu0
        %v1686 = vadd.f32 %v1237, %v1685
        %1687 = vmatprep.mubr.f32.mxu0 %v589
        %1688 = vmatmul.mubr.f32.gmra.mrb[0].mxu0 %v588
        %v1689 = vpop.f32.mrb[0].mxu0
        %v1690 = vadd.f32 %v1241, %v1689
        %v1691 = vpop.f32.mrb[0].mxu0
        %v1692 = vadd.f32 %v1243, %v1691
        %1693 = vmatprep.mubr.f32.mxu0 %v595
        %1694 = vmatmul.mubr.f32.gmra.mrb[0].mxu0 %v594
        %v1695 = vpop.f32.mrb[0].mxu0
        %v1696 = vadd.f32 %v1247, %v1695
        %v1697 = vpop.f32.mrb[0].mxu0
        %v1698 = vadd.f32 %v1249, %v1697
        %1699 = vmatprep.mubr.f32.mxu0 %v601
        %1700 = vmatmul.mubr.f32.gmra.mrb[0].mxu0 %v600
        %v1701 = vpop.f32.mrb[0].mxu0
        %v1702 = vadd.f32 %v1253, %v1701
        %v1703 = vpop.f32.mrb[0].mxu0
        %v1704 = vadd.f32 %v1255, %v1703
        %1705 = vmatprep.mubr.f32.mxu0 %v607
        %1706 = vmatmul.mubr.f32.gmra.mrb[0].mxu0 %v606
        %v1707 = vpop.f32.mrb[0].mxu0
        %v1708 = vadd.f32 %v1259, %v1707
        %v1709 = vpop.f32.mrb[0].mxu0
        %v1710 = vadd.f32 %v1261, %v1709
        %1711 = vmatprep.mubr.f32.mxu0 %v613
        %1712 = vmatmul.mubr.f32.gmra.mrb[0].mxu0 %v612
        %v1713 = vpop.f32.mrb[0].mxu0
        %v1714 = vadd.f32 %v1265, %v1713
        %v1715 = vpop.f32.mrb[0].mxu0
        %v1716 = vadd.f32 %v1267, %v1715
        %1717 = vmatprep.mubr.f32.mxu0 %v619
        %1718 = vmatmul.mubr.f32.gmra.mrb[0].mxu0 %v618
        %v1719 = vpop.f32.mrb[0].mxu0
        %v1720 = vadd.f32 %v1271, %v1719
        %v1721 = vpop.f32.mrb[0].mxu0
        %v1722 = vadd.f32 %v1273, %v1721
        %1723 = vmatprep.mubr.f32.mxu0 %v625
        %1724 = vmatmul.mubr.f32.gmra.mrb[0].mxu0 %v624
        %v1725 = vpop.f32.mrb[0].mxu0
        %v1726 = vadd.f32 %v1277, %v1725
        %v1727 = vpop.f32.mrb[0].mxu0
        %v1728 = vadd.f32 %v1279, %v1727
        %1729 = vmatprep.mubr.f32.mxu0 %v631
        %1730 = vmatmul.mubr.f32.gmra.mrb[0].mxu0 %v630
        %v1731 = vpop.f32.mrb[0].mxu0
        %v1732 = vadd.f32 %v1283, %v1731
        %v1733 = vpop.f32.mrb[0].mxu0
        %v1734 = vadd.f32 %v1285, %v1733
        %1735 = vmatprep.mubr.f32.mxu0 %v637
        %1736 = vmatmul.mubr.f32.gmra.mrb[0].mxu0 %v636
        %v1737 = vpop.f32.mrb[0].mxu0
        %v1738 = vadd.f32 %v1289, %v1737
        %v1739 = vpop.f32.mrb[0].mxu0
        %v1740 = vadd.f32 %v1291, %v1739
        %1741 = vmatprep.mubr.f32.mxu0 %v643
        %1742 = vmatmul.mubr.f32.gmra.mrb[0].mxu0 %v642
        %v1743 = vpop.f32.mrb[0].mxu0
        %v1744 = vadd.f32 %v1295, %v1743
        %v1745 = vpop.f32.mrb[0].mxu0
        %v1746 = vadd.f32 %v1297, %v1745
        %1747 = vmatprep.mubr.f32.mxu0 %v649
        %1748 = vmatmul.mubr.f32.gmra.mrb[0].mxu0 %v648
        %v1749 = vpop.f32.mrb[0].mxu0
        %v1750 = vadd.f32 %v1301, %v1749
        %v1751 = vpop.f32.mrb[0].mxu0
        %v1752 = vadd.f32 %v1303, %v1751
        %1753 = vmatprep.mubr.f32.mxu0 %v655
        %1754 = vmatmul.mubr.f32.gmra.mrb[0].mxu0 %v654
        %v1755 = vpop.f32.mrb[0].mxu0
        %v1756 = vadd.f32 %v1307, %v1755
        %v1757 = vpop.f32.mrb[0].mxu0
        %v1758 = vadd.f32 %v1309, %v1757
        %1759 = vmatprep.mubr.f32.mxu0 %v661
        %1760 = vmatmul.mubr.f32.gmra.mrb[0].mxu0 %v660
        %v1761 = vpop.f32.mrb[0].mxu0
        %v1762 = vadd.f32 %v1313, %v1761
        %v1763 = vpop.f32.mrb[0].mxu0
        %v1764 = vadd.f32 %v1315, %v1763
        %1765 = vmatprep.mubr.f32.mxu0 %v667
        %1766 = vmatmul.mubr.f32.gmra.mrb[0].mxu0 %v666
        %v1767 = vpop.f32.mrb[0].mxu0
        %v1768 = vadd.f32 %v1319, %v1767
        %v1769 = vpop.f32.mrb[0].mxu0
        %v1770 = vadd.f32 %v1321, %v1769
        %1771 = vmatprep.mubr.f32.mxu0 %v673
        %1772 = vmatmul.mubr.f32.gmra.mrb[0].mxu0 %v672
        %v1773 = vpop.f32.mrb[0].mxu0
        %v1774 = vadd.f32 %v1325, %v1773
        %v1775 = vpop.f32.mrb[0].mxu0
        %v1776 = vadd.f32 %v1327, %v1775
        %1777 = vmatprep.mubr.f32.mxu0 %v679
        %1778 = vmatmul.mubr.f32.gmra.mrb[0].mxu0 %v678
        %v1779 = vpop.f32.mrb[0].mxu0
        %v1780 = vadd.f32 %v1331, %v1779
        %v1781 = vpop.f32.mrb[0].mxu0
        %v1782 = vadd.f32 %v1333, %v1781
        %1783 = vdwg.mxu0
        %1784 = vmatprep.subr.mxu0 %v811
        %1785 = vmatpush1.msra.mxu0 %v810
        %1786 = vmatprep.subr.mxu0 %v813
        %1787 = vmatpush1.msra.mxu0 %v812
        %1788 = vmatprep.subr.mxu0 %v815
        %1789 = vmatpush1.msra.mxu0 %v814
        %1790 = vmatprep.subr.mxu0 %v817
        %1791 = vmatpush1.msra.mxu0 %v816
        %1792 = vmatprep.subr.mxu0 %v819
        %1793 = vmatpush1.msra.mxu0 %v818
        %1794 = vmatprep.subr.mxu0 %v821
        %1795 = vmatpush1.msra.mxu0 %v820
        %1796 = vmatprep.subr.mxu0 %v823
        %1797 = vmatpush1.msra.mxu0 %v822
        %1798 = vmatprep.subr.mxu0 %v825
        %1799 = vmatpush1.msra.mxu0 %v824
        %1800 = vmatprep.subr.mxu0 %v827
        %1801 = vmatpush1.msra.mxu0 %v826
        %1802 = vmatprep.subr.mxu0 %v829
        %1803 = vmatpush1.msra.mxu0 %v828
        %1804 = vmatprep.subr.mxu0 %v831
        %1805 = vmatpush1.msra.mxu0 %v830
        %1806 = vmatprep.subr.mxu0 %v833
        %1807 = vmatpush1.msra.mxu0 %v832
        %1808 = vmatprep.subr.mxu0 %v835
        %1809 = vmatpush1.msra.mxu0 %v834
        %1810 = vmatprep.subr.mxu0 %v837
        %1811 = vmatpush1.msra.mxu0 %v836
        %1812 = vmatprep.subr.mxu0 %v839
        %1813 = vmatpush1.msra.mxu0 %v838
        %1814 = vmatprep.subr.mxu0 %v841
        %1815 = vmatpush1.msra.mxu0 %v840
        %1816 = vmatprep.subr.mxu0 %v843
        %1817 = vmatpush1.msra.mxu0 %v842
        %1818 = vmatprep.subr.mxu0 %v845
        %1819 = vmatpush1.msra.mxu0 %v844
        %1820 = vmatprep.subr.mxu0 %v847
        %1821 = vmatpush1.msra.mxu0 %v846
        %1822 = vmatprep.subr.mxu0 %v849
        %1823 = vmatpush1.msra.mxu0 %v848
        %1824 = vmatprep.subr.mxu0 %v851
        %1825 = vmatpush1.msra.mxu0 %v850
        %1826 = vmatprep.subr.mxu0 %v853
        %1827 = vmatpush1.msra.mxu0 %v852
        %1828 = vmatprep.subr.mxu0 %v855
        %1829 = vmatpush1.msra.mxu0 %v854
        %1830 = vmatprep.subr.mxu0 %v857
        %1831 = vmatpush1.msra.mxu0 %v856
        %1832 = vmatprep.subr.mxu0 %v859
        %1833 = vmatpush1.msra.mxu0 %v858
        %1834 = vmatprep.subr.mxu0 %v861
        %1835 = vmatpush1.msra.mxu0 %v860
        %1836 = vmatprep.subr.mxu0 %v863
        %1837 = vmatpush1.msra.mxu0 %v862
        %1838 = vmatprep.subr.mxu0 %v865
        %1839 = vmatpush1.msra.mxu0 %v864
        %1840 = vmatprep.subr.mxu0 %v867
        %1841 = vmatpush1.msra.mxu0 %v866
        %1842 = vmatprep.subr.mxu0 %v869
        %1843 = vmatpush1.msra.mxu0 %v868
        %1844 = vmatprep.subr.mxu0 %v871
        %1845 = vmatpush1.msra.mxu0 %v870
        %1846 = vmatprep.subr.mxu0 %v873
        %1847 = vmatpush1.msra.mxu0 %v872
        %1848 = vmatprep.mubr.f32.mxu0 %v303
        %1849 = vmatmul.mubr.f32.gmra.mrb[0].mxu0 %v302
        %v1850 = vpop.f32.mrb[0].mxu0
        %v1851 = vadd.f32 %v1402, %v1850
        %v1852 = vpop.f32.mrb[0].mxu0
        %v1853 = vadd.f32 %v1404, %v1852
        %1854 = vmatprep.mubr.f32.mxu0 %v309
        %1855 = vmatmul.mubr.f32.gmra.mrb[0].mxu0 %v308
        %v1856 = vpop.f32.mrb[0].mxu0
        %v1857 = vadd.f32 %v1408, %v1856
        %v1858 = vpop.f32.mrb[0].mxu0
        %v1859 = vadd.f32 %v1410, %v1858
        %1860 = vmatprep.mubr.f32.mxu0 %v315
        %1861 = vmatmul.mubr.f32.gmra.mrb[0].mxu0 %v314
        %v1862 = vpop.f32.mrb[0].mxu0
        %v1863 = vadd.f32 %v1414, %v1862
        %v1864 = vpop.f32.mrb[0].mxu0
        %v1865 = vadd.f32 %v1416, %v1864
        %1866 = vmatprep.mubr.f32.mxu0 %v321
        %1867 = vmatmul.mubr.f32.gmra.mrb[0].mxu0 %v320
        %v1868 = vpop.f32.mrb[0].mxu0
        %v1869 = vadd.f32 %v1420, %v1868
        %v1870 = vpop.f32.mrb[0].mxu0
        %v1871 = vadd.f32 %v1422, %v1870
        %1872 = vmatprep.mubr.f32.mxu0 %v327
        %1873 = vmatmul.mubr.f32.gmra.mrb[0].mxu0 %v326
        %v1874 = vpop.f32.mrb[0].mxu0
        %v1875 = vadd.f32 %v1426, %v1874
        %v1876 = vpop.f32.mrb[0].mxu0
        %v1877 = vadd.f32 %v1428, %v1876
        %1878 = vmatprep.mubr.f32.mxu0 %v333
        %1879 = vmatmul.mubr.f32.gmra.mrb[0].mxu0 %v332
        %v1880 = vpop.f32.mrb[0].mxu0
        %v1881 = vadd.f32 %v1432, %v1880
        %v1882 = vpop.f32.mrb[0].mxu0
        %v1883 = vadd.f32 %v1434, %v1882
        %1884 = vmatprep.mubr.f32.mxu0 %v339
        %1885 = vmatmul.mubr.f32.gmra.mrb[0].mxu0 %v338
        %v1886 = vpop.f32.mrb[0].mxu0
        %v1887 = vadd.f32 %v1438, %v1886
        %v1888 = vpop.f32.mrb[0].mxu0
        %v1889 = vadd.f32 %v1440, %v1888
        %1890 = vmatprep.mubr.f32.mxu0 %v345
        %1891 = vmatmul.mubr.f32.gmra.mrb[0].mxu0 %v344
        %v1892 = vpop.f32.mrb[0].mxu0
        %v1893 = vadd.f32 %v1444, %v1892
        %v1894 = vpop.f32.mrb[0].mxu0
        %v1895 = vadd.f32 %v1446, %v1894
        %1896 = vmatprep.mubr.f32.mxu0 %v351
        %1897 = vmatmul.mubr.f32.gmra.mrb[0].mxu0 %v350
        %v1898 = vpop.f32.mrb[0].mxu0
        %v1899 = vadd.f32 %v1450, %v1898
        %v1900 = vpop.f32.mrb[0].mxu0
        %v1901 = vadd.f32 %v1452, %v1900
        %1902 = vmatprep.mubr.f32.mxu0 %v357
        %1903 = vmatmul.mubr.f32.gmra.mrb[0].mxu0 %v356
        %v1904 = vpop.f32.mrb[0].mxu0
        %v1905 = vadd.f32 %v1456, %v1904
        %v1906 = vpop.f32.mrb[0].mxu0
        %v1907 = vadd.f32 %v1458, %v1906
        %1908 = vmatprep.mubr.f32.mxu0 %v363
        %1909 = vmatmul.mubr.f32.gmra.mrb[0].mxu0 %v362
        %v1910 = vpop.f32.mrb[0].mxu0
        %v1911 = vadd.f32 %v1462, %v1910
        %v1912 = vpop.f32.mrb[0].mxu0
        %v1913 = vadd.f32 %v1464, %v1912
        %1914 = vmatprep.mubr.f32.mxu0 %v369
        %1915 = vmatmul.mubr.f32.gmra.mrb[0].mxu0 %v368
        %v1916 = vpop.f32.mrb[0].mxu0
        %v1917 = vadd.f32 %v1468, %v1916
        %v1918 = vpop.f32.mrb[0].mxu0
        %v1919 = vadd.f32 %v1470, %v1918
        %1920 = vmatprep.mubr.f32.mxu0 %v375
        %1921 = vmatmul.mubr.f32.gmra.mrb[0].mxu0 %v374
        %v1922 = vpop.f32.mrb[0].mxu0
        %v1923 = vadd.f32 %v1474, %v1922
        %v1924 = vpop.f32.mrb[0].mxu0
        %v1925 = vadd.f32 %v1476, %v1924
        %1926 = vmatprep.mubr.f32.mxu0 %v381
        %1927 = vmatmul.mubr.f32.gmra.mrb[0].mxu0 %v380
        %v1928 = vpop.f32.mrb[0].mxu0
        %v1929 = vadd.f32 %v1480, %v1928
        %v1930 = vpop.f32.mrb[0].mxu0
        %v1931 = vadd.f32 %v1482, %v1930
        %1932 = vmatprep.mubr.f32.mxu0 %v387
        %1933 = vmatmul.mubr.f32.gmra.mrb[0].mxu0 %v386
        %v1934 = vpop.f32.mrb[0].mxu0
        %v1935 = vadd.f32 %v1486, %v1934
        %v1936 = vpop.f32.mrb[0].mxu0
        %v1937 = vadd.f32 %v1488, %v1936
        %1938 = vmatprep.mubr.f32.mxu0 %v393
        %1939 = vmatmul.mubr.f32.gmra.mrb[0].mxu0 %v392
        %v1940 = vpop.f32.mrb[0].mxu0
        %v1941 = vadd.f32 %v1492, %v1940
        %v1942 = vpop.f32.mrb[0].mxu0
        %v1943 = vadd.f32 %v1494, %v1942
        %1944 = vmatprep.mubr.f32.mxu0 %v399
        %1945 = vmatmul.mubr.f32.gmra.mrb[0].mxu0 %v398
        %v1946 = vpop.f32.mrb[0].mxu0
        %v1947 = vadd.f32 %v1498, %v1946
        %v1948 = vpop.f32.mrb[0].mxu0
        %v1949 = vadd.f32 %v1500, %v1948
        %1950 = vmatprep.mubr.f32.mxu0 %v405
        %1951 = vmatmul.mubr.f32.gmra.mrb[0].mxu0 %v404
        %v1952 = vpop.f32.mrb[0].mxu0
        %v1953 = vadd.f32 %v1504, %v1952
        %v1954 = vpop.f32.mrb[0].mxu0
        %v1955 = vadd.f32 %v1506, %v1954
        %1956 = vmatprep.mubr.f32.mxu0 %v411
        %1957 = vmatmul.mubr.f32.gmra.mrb[0].mxu0 %v410
        %v1958 = vpop.f32.mrb[0].mxu0
        %v1959 = vadd.f32 %v1510, %v1958
        %v1960 = vpop.f32.mrb[0].mxu0
        %v1961 = vadd.f32 %v1512, %v1960
        %1962 = vmatprep.mubr.f32.mxu0 %v417
        %1963 = vmatmul.mubr.f32.gmra.mrb[0].mxu0 %v416
        %v1964 = vpop.f32.mrb[0].mxu0
        %v1965 = vadd.f32 %v1516, %v1964
        %v1966 = vpop.f32.mrb[0].mxu0
        %v1967 = vadd.f32 %v1518, %v1966
        %1968 = vmatprep.mubr.f32.mxu0 %v423
        %1969 = vmatmul.mubr.f32.gmra.mrb[0].mxu0 %v422
        %v1970 = vpop.f32.mrb[0].mxu0
        %v1971 = vadd.f32 %v1522, %v1970
        %v1972 = vpop.f32.mrb[0].mxu0
        %v1973 = vadd.f32 %v1524, %v1972
        %1974 = vmatprep.mubr.f32.mxu0 %v429
        %1975 = vmatmul.mubr.f32.gmra.mrb[0].mxu0 %v428
        %v1976 = vpop.f32.mrb[0].mxu0
        %v1977 = vadd.f32 %v1528, %v1976
        %v1978 = vpop.f32.mrb[0].mxu0
        %v1979 = vadd.f32 %v1530, %v1978
        %1980 = vmatprep.mubr.f32.mxu0 %v435
        %1981 = vmatmul.mubr.f32.gmra.mrb[0].mxu0 %v434
        %v1982 = vpop.f32.mrb[0].mxu0
        %v1983 = vadd.f32 %v1534, %v1982
        %v1984 = vpop.f32.mrb[0].mxu0
        %v1985 = vadd.f32 %v1536, %v1984
        %1986 = vmatprep.mubr.f32.mxu0 %v441
        %1987 = vmatmul.mubr.f32.gmra.mrb[0].mxu0 %v440
        %v1988 = vpop.f32.mrb[0].mxu0
        %v1989 = vadd.f32 %v1540, %v1988
        %v1990 = vpop.f32.mrb[0].mxu0
        %v1991 = vadd.f32 %v1542, %v1990
        %1992 = vmatprep.mubr.f32.mxu0 %v447
        %1993 = vmatmul.mubr.f32.gmra.mrb[0].mxu0 %v446
        %v1994 = vpop.f32.mrb[0].mxu0
        %v1995 = vadd.f32 %v1546, %v1994
        %v1996 = vpop.f32.mrb[0].mxu0
        %v1997 = vadd.f32 %v1548, %v1996
        %1998 = vmatprep.mubr.f32.mxu0 %v453
        %1999 = vmatmul.mubr.f32.gmra.mrb[0].mxu0 %v452
        %v2000 = vpop.f32.mrb[0].mxu0
        %v2001 = vadd.f32 %v1552, %v2000
        %v2002 = vpop.f32.mrb[0].mxu0
        %v2003 = vadd.f32 %v1554, %v2002
        %2004 = vmatprep.mubr.f32.mxu0 %v459
        %2005 = vmatmul.mubr.f32.gmra.mrb[0].mxu0 %v458
        %v2006 = vpop.f32.mrb[0].mxu0
        %v2007 = vadd.f32 %v1558, %v2006
        %v2008 = vpop.f32.mrb[0].mxu0
        %v2009 = vadd.f32 %v1560, %v2008
        %2010 = vmatprep.mubr.f32.mxu0 %v465
        %2011 = vmatmul.mubr.f32.gmra.mrb[0].mxu0 %v464
        %v2012 = vpop.f32.mrb[0].mxu0
        %v2013 = vadd.f32 %v1564, %v2012
        %v2014 = vpop.f32.mrb[0].mxu0
        %v2015 = vadd.f32 %v1566, %v2014
        %2016 = vmatprep.mubr.f32.mxu0 %v471
        %2017 = vmatmul.mubr.f32.gmra.mrb[0].mxu0 %v470
        %v2018 = vpop.f32.mrb[0].mxu0
        %v2019 = vadd.f32 %v1570, %v2018
        %v2020 = vpop.f32.mrb[0].mxu0
        %v2021 = vadd.f32 %v1572, %v2020
        %2022 = vmatprep.mubr.f32.mxu0 %v477
        %2023 = vmatmul.mubr.f32.gmra.mrb[0].mxu0 %v476
        %v2024 = vpop.f32.mrb[0].mxu0
        %v2025 = vadd.f32 %v1576, %v2024
        %v2026 = vpop.f32.mrb[0].mxu0
        %v2027 = vadd.f32 %v1578, %v2026
        %2028 = vmatprep.mubr.f32.mxu0 %v483
        %2029 = vmatmul.mubr.f32.gmra.mrb[0].mxu0 %v482
        %v2030 = vpop.f32.mrb[0].mxu0
        %v2031 = vadd.f32 %v1582, %v2030
        %v2032 = vpop.f32.mrb[0].mxu0
        %v2033 = vadd.f32 %v1584, %v2032
        %2034 = vmatprep.mubr.f32.mxu0 %v489
        %2035 = vmatmul.mubr.f32.gmra.mrb[0].mxu0 %v488
        %v2036 = vpop.f32.mrb[0].mxu0
        %v2037 = vadd.f32 %v1588, %v2036
        %v2038 = vpop.f32.mrb[0].mxu0
        %v2039 = vadd.f32 %v1590, %v2038
        %2040 = vmatprep.mubr.f32.mxu0 %v495
        %2041 = vmatmul.mubr.f32.gmra.mrb[0].mxu0 %v494
        %v2042 = vpop.f32.mrb[0].mxu0
        %v2043 = vadd.f32 %v1594, %v2042
        %v2044 = vpop.f32.mrb[0].mxu0
        %v2045 = vadd.f32 %v1596, %v2044
        %2046 = vmatprep.mubr.f32.mxu0 %v501
        %2047 = vmatmul.mubr.f32.gmra.mrb[0].mxu0 %v500
        %v2048 = vpop.f32.mrb[0].mxu0
        %v2049 = vadd.f32 %v1600, %v2048
        %v2050 = vpop.f32.mrb[0].mxu0
        %v2051 = vadd.f32 %v1602, %v2050
        %2052 = vmatprep.mubr.f32.mxu0 %v507
        %2053 = vmatmul.mubr.f32.gmra.mrb[0].mxu0 %v506
        %v2054 = vpop.f32.mrb[0].mxu0
        %v2055 = vadd.f32 %v1606, %v2054
        %v2056 = vpop.f32.mrb[0].mxu0
        %v2057 = vadd.f32 %v1608, %v2056
        %2058 = vmatprep.mubr.f32.mxu0 %v513
        %2059 = vmatmul.mubr.f32.gmra.mrb[0].mxu0 %v512
        %v2060 = vpop.f32.mrb[0].mxu0
        %v2061 = vadd.f32 %v1612, %v2060
        %v2062 = vpop.f32.mrb[0].mxu0
        %v2063 = vadd.f32 %v1614, %v2062
        %2064 = vmatprep.mubr.f32.mxu0 %v519
        %2065 = vmatmul.mubr.f32.gmra.mrb[0].mxu0 %v518
        %v2066 = vpop.f32.mrb[0].mxu0
        %v2067 = vadd.f32 %v1618, %v2066
        %v2068 = vpop.f32.mrb[0].mxu0
        %v2069 = vadd.f32 %v1620, %v2068
        %2070 = vmatprep.mubr.f32.mxu0 %v525
        %2071 = vmatmul.mubr.f32.gmra.mrb[0].mxu0 %v524
        %v2072 = vpop.f32.mrb[0].mxu0
        %v2073 = vadd.f32 %v1624, %v2072
        %v2074 = vpop.f32.mrb[0].mxu0
        %v2075 = vadd.f32 %v1626, %v2074
        %2076 = vmatprep.mubr.f32.mxu0 %v531
        %2077 = vmatmul.mubr.f32.gmra.mrb[0].mxu0 %v530
        %v2078 = vpop.f32.mrb[0].mxu0
        %v2079 = vadd.f32 %v1630, %v2078
        %v2080 = vpop.f32.mrb[0].mxu0
        %v2081 = vadd.f32 %v1632, %v2080
        %2082 = vmatprep.mubr.f32.mxu0 %v537
        %2083 = vmatmul.mubr.f32.gmra.mrb[0].mxu0 %v536
        %v2084 = vpop.f32.mrb[0].mxu0
        %v2085 = vadd.f32 %v1636, %v2084
        %v2086 = vpop.f32.mrb[0].mxu0
        %v2087 = vadd.f32 %v1638, %v2086
        %2088 = vmatprep.mubr.f32.mxu0 %v543
        %2089 = vmatmul.mubr.f32.gmra.mrb[0].mxu0 %v542
        %v2090 = vpop.f32.mrb[0].mxu0
        %v2091 = vadd.f32 %v1642, %v2090
        %v2092 = vpop.f32.mrb[0].mxu0
        %v2093 = vadd.f32 %v1644, %v2092
        %2094 = vmatprep.mubr.f32.mxu0 %v549
        %2095 = vmatmul.mubr.f32.gmra.mrb[0].mxu0 %v548
        %v2096 = vpop.f32.mrb[0].mxu0
        %v2097 = vadd.f32 %v1648, %v2096
        %v2098 = vpop.f32.mrb[0].mxu0
        %v2099 = vadd.f32 %v1650, %v2098
        %2100 = vmatprep.mubr.f32.mxu0 %v555
        %2101 = vmatmul.mubr.f32.gmra.mrb[0].mxu0 %v554
        %v2102 = vpop.f32.mrb[0].mxu0
        %v2103 = vadd.f32 %v1654, %v2102
        %v2104 = vpop.f32.mrb[0].mxu0
        %v2105 = vadd.f32 %v1656, %v2104
        %2106 = vmatprep.mubr.f32.mxu0 %v561
        %2107 = vmatmul.mubr.f32.gmra.mrb[0].mxu0 %v560
        %v2108 = vpop.f32.mrb[0].mxu0
        %v2109 = vadd.f32 %v1660, %v2108
        %v2110 = vpop.f32.mrb[0].mxu0
        %v2111 = vadd.f32 %v1662, %v2110
        %2112 = vmatprep.mubr.f32.mxu0 %v567
        %2113 = vmatmul.mubr.f32.gmra.mrb[0].mxu0 %v566
        %v2114 = vpop.f32.mrb[0].mxu0
        %v2115 = vadd.f32 %v1666, %v2114
        %v2116 = vpop.f32.mrb[0].mxu0
        %v2117 = vadd.f32 %v1668, %v2116
        %2118 = vmatprep.mubr.f32.mxu0 %v573
        %2119 = vmatmul.mubr.f32.gmra.mrb[0].mxu0 %v572
        %v2120 = vpop.f32.mrb[0].mxu0
        %v2121 = vadd.f32 %v1672, %v2120
        %v2122 = vpop.f32.mrb[0].mxu0
        %v2123 = vadd.f32 %v1674, %v2122
        %2124 = vmatprep.mubr.f32.mxu0 %v579
        %2125 = vmatmul.mubr.f32.gmra.mrb[0].mxu0 %v578
        %v2126 = vpop.f32.mrb[0].mxu0
        %v2127 = vadd.f32 %v1678, %v2126
        %v2128 = vpop.f32.mrb[0].mxu0
        %v2129 = vadd.f32 %v1680, %v2128
        %2130 = vmatprep.mubr.f32.mxu0 %v585
        %2131 = vmatmul.mubr.f32.gmra.mrb[0].mxu0 %v584
        %v2132 = vpop.f32.mrb[0].mxu0
        %v2133 = vadd.f32 %v1684, %v2132
        %v2134 = vpop.f32.mrb[0].mxu0
        %v2135 = vadd.f32 %v1686, %v2134
        %2136 = vmatprep.mubr.f32.mxu0 %v591
        %2137 = vmatmul.mubr.f32.gmra.mrb[0].mxu0 %v590
        %v2138 = vpop.f32.mrb[0].mxu0
        %v2139 = vadd.f32 %v1690, %v2138
        %v2140 = vpop.f32.mrb[0].mxu0
        %v2141 = vadd.f32 %v1692, %v2140
        %2142 = vmatprep.mubr.f32.mxu0 %v597
        %2143 = vmatmul.mubr.f32.gmra.mrb[0].mxu0 %v596
        %v2144 = vpop.f32.mrb[0].mxu0
        %v2145 = vadd.f32 %v1696, %v2144
        %v2146 = vpop.f32.mrb[0].mxu0
        %v2147 = vadd.f32 %v1698, %v2146
        %2148 = vmatprep.mubr.f32.mxu0 %v603
        %2149 = vmatmul.mubr.f32.gmra.mrb[0].mxu0 %v602
        %v2150 = vpop.f32.mrb[0].mxu0
        %v2151 = vadd.f32 %v1702, %v2150
        %v2152 = vpop.f32.mrb[0].mxu0
        %v2153 = vadd.f32 %v1704, %v2152
        %2154 = vmatprep.mubr.f32.mxu0 %v609
        %2155 = vmatmul.mubr.f32.gmra.mrb[0].mxu0 %v608
        %v2156 = vpop.f32.mrb[0].mxu0
        %v2157 = vadd.f32 %v1708, %v2156
        %v2158 = vpop.f32.mrb[0].mxu0
        %v2159 = vadd.f32 %v1710, %v2158
        %2160 = vmatprep.mubr.f32.mxu0 %v615
        %2161 = vmatmul.mubr.f32.gmra.mrb[0].mxu0 %v614
        %v2162 = vpop.f32.mrb[0].mxu0
        %v2163 = vadd.f32 %v1714, %v2162
        %v2164 = vpop.f32.mrb[0].mxu0
        %v2165 = vadd.f32 %v1716, %v2164
        %2166 = vmatprep.mubr.f32.mxu0 %v621
        %2167 = vmatmul.mubr.f32.gmra.mrb[0].mxu0 %v620
        %v2168 = vpop.f32.mrb[0].mxu0
        %v2169 = vadd.f32 %v1720, %v2168
        %v2170 = vpop.f32.mrb[0].mxu0
        %v2171 = vadd.f32 %v1722, %v2170
        %2172 = vmatprep.mubr.f32.mxu0 %v627
        %2173 = vmatmul.mubr.f32.gmra.mrb[0].mxu0 %v626
        %v2174 = vpop.f32.mrb[0].mxu0
        %v2175 = vadd.f32 %v1726, %v2174
        %v2176 = vpop.f32.mrb[0].mxu0
        %v2177 = vadd.f32 %v1728, %v2176
        %2178 = vmatprep.mubr.f32.mxu0 %v633
        %2179 = vmatmul.mubr.f32.gmra.mrb[0].mxu0 %v632
        %v2180 = vpop.f32.mrb[0].mxu0
        %v2181 = vadd.f32 %v1732, %v2180
        %v2182 = vpop.f32.mrb[0].mxu0
        %v2183 = vadd.f32 %v1734, %v2182
        %2184 = vmatprep.mubr.f32.mxu0 %v639
        %2185 = vmatmul.mubr.f32.gmra.mrb[0].mxu0 %v638
        %v2186 = vpop.f32.mrb[0].mxu0
        %v2187 = vadd.f32 %v1738, %v2186
        %v2188 = vpop.f32.mrb[0].mxu0
        %v2189 = vadd.f32 %v1740, %v2188
        %2190 = vmatprep.mubr.f32.mxu0 %v645
        %2191 = vmatmul.mubr.f32.gmra.mrb[0].mxu0 %v644
        %v2192 = vpop.f32.mrb[0].mxu0
        %v2193 = vadd.f32 %v1744, %v2192
        %v2194 = vpop.f32.mrb[0].mxu0
        %v2195 = vadd.f32 %v1746, %v2194
        %2196 = vmatprep.mubr.f32.mxu0 %v651
        %2197 = vmatmul.mubr.f32.gmra.mrb[0].mxu0 %v650
        %v2198 = vpop.f32.mrb[0].mxu0
        %v2199 = vadd.f32 %v1750, %v2198
        %v2200 = vpop.f32.mrb[0].mxu0
        %v2201 = vadd.f32 %v1752, %v2200
        %2202 = vmatprep.mubr.f32.mxu0 %v657
        %2203 = vmatmul.mubr.f32.gmra.mrb[0].mxu0 %v656
        %v2204 = vpop.f32.mrb[0].mxu0
        %v2205 = vadd.f32 %v1756, %v2204
        %v2206 = vpop.f32.mrb[0].mxu0
        %v2207 = vadd.f32 %v1758, %v2206
        %2208 = vmatprep.mubr.f32.mxu0 %v663
        %2209 = vmatmul.mubr.f32.gmra.mrb[0].mxu0 %v662
        %v2210 = vpop.f32.mrb[0].mxu0
        %v2211 = vadd.f32 %v1762, %v2210
        %v2212 = vpop.f32.mrb[0].mxu0
        %v2213 = vadd.f32 %v1764, %v2212
        %2214 = vmatprep.mubr.f32.mxu0 %v669
        %2215 = vmatmul.mubr.f32.gmra.mrb[0].mxu0 %v668
        %v2216 = vpop.f32.mrb[0].mxu0
        %v2217 = vadd.f32 %v1768, %v2216
        %v2218 = vpop.f32.mrb[0].mxu0
        %v2219 = vadd.f32 %v1770, %v2218
        %2220 = vmatprep.mubr.f32.mxu0 %v675
        %2221 = vmatmul.mubr.f32.gmra.mrb[0].mxu0 %v674
        %v2222 = vpop.f32.mrb[0].mxu0
        %v2223 = vadd.f32 %v1774, %v2222
        %v2224 = vpop.f32.mrb[0].mxu0
        %v2225 = vadd.f32 %v1776, %v2224
        %2226 = vmatprep.mubr.f32.mxu0 %v681
        %2227 = vmatmul.mubr.f32.gmra.mrb[0].mxu0 %v680
        %v2228 = vpop.f32.mrb[0].mxu0
        %v2229 = vadd.f32 %v1780, %v2228
        %v2230 = vpop.f32.mrb[0].mxu0
        %v2231 = vadd.f32 %v1782, %v2230
        %2232 = vdwg.mxu0
        %v2233 = vadd.f32 %v1851, %v1853
        %2234 = vadd.xlane.f32.xlu0 %v2233
        %v2235 = vpop.xlane.xlu0 %2234
        %v2236 = vadd.f32 %v1857, %v1859
        %2237 = vadd.xlane.f32.xlu0 %v2236
        %v2238 = vpop.xlane.xlu0 %2237
        %v2239 = vadd.f32 %v1863, %v1865
        %2240 = vadd.xlane.f32.xlu0 %v2239
        %v2241 = vpop.xlane.xlu0 %2240
        %v2242 = vadd.f32 %v1869, %v1871
        %2243 = vadd.xlane.f32.xlu0 %v2242
        %v2244 = vpop.xlane.xlu0 %2243
        %v2245 = vadd.f32 %v1875, %v1877
        %2246 = vadd.xlane.f32.xlu0 %v2245
        %v2247 = vpop.xlane.xlu0 %2246
        %v2248 = vadd.f32 %v1881, %v1883
        %2249 = vadd.xlane.f32.xlu0 %v2248
        %v2250 = vpop.xlane.xlu0 %2249
        %v2251 = vadd.f32 %v1887, %v1889
        %2252 = vadd.xlane.f32.xlu0 %v2251
        %v2253 = vpop.xlane.xlu0 %2252
        %v2254 = vadd.f32 %v1893, %v1895
        %2255 = vadd.xlane.f32.xlu0 %v2254
        %v2256 = vpop.xlane.xlu0 %2255
        %v2257 = vadd.f32 %v1899, %v1901
        %2258 = vadd.xlane.f32.xlu0 %v2257
        %v2259 = vpop.xlane.xlu0 %2258
        %v2260 = vadd.f32 %v1905, %v1907
        %2261 = vadd.xlane.f32.xlu0 %v2260
        %v2262 = vpop.xlane.xlu0 %2261
        %v2263 = vadd.f32 %v1911, %v1913
        %2264 = vadd.xlane.f32.xlu0 %v2263
        %v2265 = vpop.xlane.xlu0 %2264
        %v2266 = vadd.f32 %v1917, %v1919
        %2267 = vadd.xlane.f32.xlu0 %v2266
        %v2268 = vpop.xlane.xlu0 %2267
        %v2269 = vadd.f32 %v1923, %v1925
        %2270 = vadd.xlane.f32.xlu0 %v2269
        %v2271 = vpop.xlane.xlu0 %2270
        %v2272 = vadd.f32 %v1929, %v1931
        %2273 = vadd.xlane.f32.xlu0 %v2272
        %v2274 = vpop.xlane.xlu0 %2273
        %v2275 = vadd.f32 %v1935, %v1937
        %2276 = vadd.xlane.f32.xlu0 %v2275
        %v2277 = vpop.xlane.xlu0 %2276
        %v2278 = vadd.f32 %v1941, %v1943
        %2279 = vadd.xlane.f32.xlu0 %v2278
        %v2280 = vpop.xlane.xlu0 %2279
        %v2281 = vadd.f32 %v1947, %v1949
        %2282 = vadd.xlane.f32.xlu0 %v2281
        %v2283 = vpop.xlane.xlu0 %2282
        %v2284 = vadd.f32 %v1953, %v1955
        %2285 = vadd.xlane.f32.xlu0 %v2284
        %v2286 = vpop.xlane.xlu0 %2285
        %v2287 = vadd.f32 %v1959, %v1961
        %2288 = vadd.xlane.f32.xlu0 %v2287
        %v2289 = vpop.xlane.xlu0 %2288
        %v2290 = vadd.f32 %v1965, %v1967
        %2291 = vadd.xlane.f32.xlu0 %v2290
        %v2292 = vpop.xlane.xlu0 %2291
        %v2293 = vadd.f32 %v1971, %v1973
        %2294 = vadd.xlane.f32.xlu0 %v2293
        %v2295 = vpop.xlane.xlu0 %2294
        %v2296 = vadd.f32 %v1977, %v1979
        %2297 = vadd.xlane.f32.xlu0 %v2296
        %v2298 = vpop.xlane.xlu0 %2297
        %v2299 = vadd.f32 %v1983, %v1985
        %2300 = vadd.xlane.f32.xlu0 %v2299
        %v2301 = vpop.xlane.xlu0 %2300
        %v2302 = vadd.f32 %v1989, %v1991
        %2303 = vadd.xlane.f32.xlu0 %v2302
        %v2304 = vpop.xlane.xlu0 %2303
        %v2305 = vadd.f32 %v1995, %v1997
        %2306 = vadd.xlane.f32.xlu0 %v2305
        %v2307 = vpop.xlane.xlu0 %2306
        %v2308 = vadd.f32 %v2001, %v2003
        %2309 = vadd.xlane.f32.xlu0 %v2308
        %v2310 = vpop.xlane.xlu0 %2309
        %v2311 = vadd.f32 %v2007, %v2009
        %2312 = vadd.xlane.f32.xlu0 %v2311
        %v2313 = vpop.xlane.xlu0 %2312
        %v2314 = vadd.f32 %v2013, %v2015
        %2315 = vadd.xlane.f32.xlu0 %v2314
        %v2316 = vpop.xlane.xlu0 %2315
        %v2317 = vadd.f32 %v2019, %v2021
        %2318 = vadd.xlane.f32.xlu0 %v2317
        %v2319 = vpop.xlane.xlu0 %2318
        %v2320 = vadd.f32 %v2025, %v2027
        %2321 = vadd.xlane.f32.xlu0 %v2320
        %v2322 = vpop.xlane.xlu0 %2321
        %v2323 = vadd.f32 %v2031, %v2033
        %2324 = vadd.xlane.f32.xlu0 %v2323
        %v2325 = vpop.xlane.xlu0 %2324
        %v2326 = vadd.f32 %v2037, %v2039
        %2327 = vadd.xlane.f32.xlu0 %v2326
        %v2328 = vpop.xlane.xlu0 %2327
        %v2329 = vadd.f32 %v2043, %v2045
        %2330 = vadd.xlane.f32.xlu0 %v2329
        %v2331 = vpop.xlane.xlu0 %2330
        %v2332 = vadd.f32 %v2049, %v2051
        %2333 = vadd.xlane.f32.xlu0 %v2332
        %v2334 = vpop.xlane.xlu0 %2333
        %v2335 = vadd.f32 %v2055, %v2057
        %2336 = vadd.xlane.f32.xlu0 %v2335
        %v2337 = vpop.xlane.xlu0 %2336
        %v2338 = vadd.f32 %v2061, %v2063
        %2339 = vadd.xlane.f32.xlu0 %v2338
        %v2340 = vpop.xlane.xlu0 %2339
        %v2341 = vadd.f32 %v2067, %v2069
        %2342 = vadd.xlane.f32.xlu0 %v2341
        %v2343 = vpop.xlane.xlu0 %2342
        %v2344 = vadd.f32 %v2073, %v2075
        %2345 = vadd.xlane.f32.xlu0 %v2344
        %v2346 = vpop.xlane.xlu0 %2345
        %v2347 = vadd.f32 %v2079, %v2081
        %2348 = vadd.xlane.f32.xlu0 %v2347
        %v2349 = vpop.xlane.xlu0 %2348
        %v2350 = vadd.f32 %v2085, %v2087
        %2351 = vadd.xlane.f32.xlu0 %v2350
        %v2352 = vpop.xlane.xlu0 %2351
        %v2353 = vadd.f32 %v2091, %v2093
        %2354 = vadd.xlane.f32.xlu0 %v2353
        %v2355 = vpop.xlane.xlu0 %2354
        %v2356 = vadd.f32 %v2097, %v2099
        %2357 = vadd.xlane.f32.xlu0 %v2356
        %v2358 = vpop.xlane.xlu0 %2357
        %v2359 = vadd.f32 %v2103, %v2105
        %2360 = vadd.xlane.f32.xlu0 %v2359
        %v2361 = vpop.xlane.xlu0 %2360
        %v2362 = vadd.f32 %v2109, %v2111
        %2363 = vadd.xlane.f32.xlu0 %v2362
        %v2364 = vpop.xlane.xlu0 %2363
        %v2365 = vadd.f32 %v2115, %v2117
        %2366 = vadd.xlane.f32.xlu0 %v2365
        %v2367 = vpop.xlane.xlu0 %2366
        %v2368 = vadd.f32 %v2121, %v2123
        %2369 = vadd.xlane.f32.xlu0 %v2368
        %v2370 = vpop.xlane.xlu0 %2369
        %v2371 = vadd.f32 %v2127, %v2129
        %2372 = vadd.xlane.f32.xlu0 %v2371
        %v2373 = vpop.xlane.xlu0 %2372
        %v2374 = vadd.f32 %v2133, %v2135
        %2375 = vadd.xlane.f32.xlu0 %v2374
        %v2376 = vpop.xlane.xlu0 %2375
        %v2377 = vadd.f32 %v2139, %v2141
        %2378 = vadd.xlane.f32.xlu0 %v2377
        %v2379 = vpop.xlane.xlu0 %2378
        %v2380 = vadd.f32 %v2145, %v2147
        %2381 = vadd.xlane.f32.xlu0 %v2380
        %v2382 = vpop.xlane.xlu0 %2381
        %v2383 = vadd.f32 %v2151, %v2153
        %2384 = vadd.xlane.f32.xlu0 %v2383
        %v2385 = vpop.xlane.xlu0 %2384
        %v2386 = vadd.f32 %v2157, %v2159
        %2387 = vadd.xlane.f32.xlu0 %v2386
        %v2388 = vpop.xlane.xlu0 %2387
        %v2389 = vadd.f32 %v2163, %v2165
        %2390 = vadd.xlane.f32.xlu0 %v2389
        %v2391 = vpop.xlane.xlu0 %2390
        %v2392 = vadd.f32 %v2169, %v2171
        %2393 = vadd.xlane.f32.xlu0 %v2392
        %v2394 = vpop.xlane.xlu0 %2393
        %v2395 = vadd.f32 %v2175, %v2177
        %2396 = vadd.xlane.f32.xlu0 %v2395
        %v2397 = vpop.xlane.xlu0 %2396
        %v2398 = vadd.f32 %v2181, %v2183
        %2399 = vadd.xlane.f32.xlu0 %v2398
        %v2400 = vpop.xlane.xlu0 %2399
        %v2401 = vadd.f32 %v2187, %v2189
        %2402 = vadd.xlane.f32.xlu0 %v2401
        %v2403 = vpop.xlane.xlu0 %2402
        %v2404 = vadd.f32 %v2193, %v2195
        %2405 = vadd.xlane.f32.xlu0 %v2404
        %v2406 = vpop.xlane.xlu0 %2405
        %v2407 = vadd.f32 %v2199, %v2201
        %2408 = vadd.xlane.f32.xlu0 %v2407
        %v2409 = vpop.xlane.xlu0 %2408
        %v2410 = vadd.f32 %v2205, %v2207
        %2411 = vadd.xlane.f32.xlu0 %v2410
        %v2412 = vpop.xlane.xlu0 %2411
        %v2413 = vadd.f32 %v2211, %v2213
        %2414 = vadd.xlane.f32.xlu0 %v2413
        %v2415 = vpop.xlane.xlu0 %2414
        %v2416 = vadd.f32 %v2217, %v2219
        %2417 = vadd.xlane.f32.xlu0 %v2416
        %v2418 = vpop.xlane.xlu0 %2417
        %v2419 = vadd.f32 %v2223, %v2225
        %2420 = vadd.xlane.f32.xlu0 %v2419
        %v2421 = vpop.xlane.xlu0 %2420
        %v2422 = vadd.f32 %v2229, %v2231
        %2423 = vadd.xlane.f32.xlu0 %v2422
        %v2424 = vpop.xlane.xlu0 %2423
        %v2425 = vmul.f32 %v1851, %v1851
        %v2426 = vmul.f32 %v1853, %v1853
        %v2427 = vmul.f32 %v1857, %v1857
        %v2428 = vmul.f32 %v1859, %v1859
        %v2429 = vmul.f32 %v1863, %v1863
        %v2430 = vmul.f32 %v1865, %v1865
        %v2431 = vmul.f32 %v1869, %v1869
        %v2432 = vmul.f32 %v1871, %v1871
        %v2433 = vmul.f32 %v1875, %v1875
        %v2434 = vmul.f32 %v1877, %v1877
        %v2435 = vmul.f32 %v1881, %v1881
        %v2436 = vmul.f32 %v1883, %v1883
        %v2437 = vmul.f32 %v1887, %v1887
        %v2438 = vmul.f32 %v1889, %v1889
        %v2439 = vmul.f32 %v1893, %v1893
        %v2440 = vmul.f32 %v1895, %v1895
        %v2441 = vmul.f32 %v1899, %v1899
        %v2442 = vmul.f32 %v1901, %v1901
        %v2443 = vmul.f32 %v1905, %v1905
        %v2444 = vmul.f32 %v1907, %v1907
        %v2445 = vmul.f32 %v1911, %v1911
        %v2446 = vmul.f32 %v1913, %v1913
        %v2447 = vmul.f32 %v1917, %v1917
        %v2448 = vmul.f32 %v1919, %v1919
        %v2449 = vmul.f32 %v1923, %v1923
        %v2450 = vmul.f32 %v1925, %v1925
        %v2451 = vmul.f32 %v1929, %v1929
        %v2452 = vmul.f32 %v1931, %v1931
        %v2453 = vmul.f32 %v1935, %v1935
        %v2454 = vmul.f32 %v1937, %v1937
        %v2455 = vmul.f32 %v1941, %v1941
        %v2456 = vmul.f32 %v1943, %v1943
        %v2457 = vmul.f32 %v1947, %v1947
        %v2458 = vmul.f32 %v1949, %v1949
        %v2459 = vmul.f32 %v1953, %v1953
        %v2460 = vmul.f32 %v1955, %v1955
        %v2461 = vmul.f32 %v1959, %v1959
        %v2462 = vmul.f32 %v1961, %v1961
        %v2463 = vmul.f32 %v1965, %v1965
        %v2464 = vmul.f32 %v1967, %v1967
        %v2465 = vmul.f32 %v1971, %v1971
        %v2466 = vmul.f32 %v1973, %v1973
        %v2467 = vmul.f32 %v1977, %v1977
        %v2468 = vmul.f32 %v1979, %v1979
        %v2469 = vmul.f32 %v1983, %v1983
        %v2470 = vmul.f32 %v1985, %v1985
        %v2471 = vmul.f32 %v1989, %v1989
        %v2472 = vmul.f32 %v1991, %v1991
        %v2473 = vmul.f32 %v1995, %v1995
        %v2474 = vmul.f32 %v1997, %v1997
        %v2475 = vmul.f32 %v2001, %v2001
        %v2476 = vmul.f32 %v2003, %v2003
        %v2477 = vmul.f32 %v2007, %v2007
        %v2478 = vmul.f32 %v2009, %v2009
        %v2479 = vmul.f32 %v2013, %v2013
        %v2480 = vmul.f32 %v2015, %v2015
        %v2481 = vmul.f32 %v2019, %v2019
        %v2482 = vmul.f32 %v2021, %v2021
        %v2483 = vmul.f32 %v2025, %v2025
        %v2484 = vmul.f32 %v2027, %v2027
        %v2485 = vmul.f32 %v2031, %v2031
        %v2486 = vmul.f32 %v2033, %v2033
        %v2487 = vmul.f32 %v2037, %v2037
        %v2488 = vmul.f32 %v2039, %v2039
        %v2489 = vmul.f32 %v2043, %v2043
        %v2490 = vmul.f32 %v2045, %v2045
        %v2491 = vmul.f32 %v2049, %v2049
        %v2492 = vmul.f32 %v2051, %v2051
        %v2493 = vmul.f32 %v2055, %v2055
        %v2494 = vmul.f32 %v2057, %v2057
        %v2495 = vmul.f32 %v2061, %v2061
        %v2496 = vmul.f32 %v2063, %v2063
        %v2497 = vmul.f32 %v2067, %v2067
        %v2498 = vmul.f32 %v2069, %v2069
        %v2499 = vmul.f32 %v2073, %v2073
        %v2500 = vmul.f32 %v2075, %v2075
        %v2501 = vmul.f32 %v2079, %v2079
        %v2502 = vmul.f32 %v2081, %v2081
        %v2503 = vmul.f32 %v2085, %v2085
        %v2504 = vmul.f32 %v2087, %v2087
        %v2505 = vmul.f32 %v2091, %v2091
        %v2506 = vmul.f32 %v2093, %v2093
        %v2507 = vmul.f32 %v2097, %v2097
        %v2508 = vmul.f32 %v2099, %v2099
        %v2509 = vmul.f32 %v2103, %v2103
        %v2510 = vmul.f32 %v2105, %v2105
        %v2511 = vmul.f32 %v2109, %v2109
        %v2512 = vmul.f32 %v2111, %v2111
        %v2513 = vmul.f32 %v2115, %v2115
        %v2514 = vmul.f32 %v2117, %v2117
        %v2515 = vmul.f32 %v2121, %v2121
        %v2516 = vmul.f32 %v2123, %v2123
        %v2517 = vmul.f32 %v2127, %v2127
        %v2518 = vmul.f32 %v2129, %v2129
        %v2519 = vmul.f32 %v2133, %v2133
        %v2520 = vmul.f32 %v2135, %v2135
        %v2521 = vmul.f32 %v2139, %v2139
        %v2522 = vmul.f32 %v2141, %v2141
        %v2523 = vmul.f32 %v2145, %v2145
        %v2524 = vmul.f32 %v2147, %v2147
        %v2525 = vmul.f32 %v2151, %v2151
        %v2526 = vmul.f32 %v2153, %v2153
        %v2527 = vmul.f32 %v2157, %v2157
        %v2528 = vmul.f32 %v2159, %v2159
        %v2529 = vmul.f32 %v2163, %v2163
        %v2530 = vmul.f32 %v2165, %v2165
        %v2531 = vmul.f32 %v2169, %v2169
        %v2532 = vmul.f32 %v2171, %v2171
        %v2533 = vmul.f32 %v2175, %v2175
        %v2534 = vmul.f32 %v2177, %v2177
        %v2535 = vmul.f32 %v2181, %v2181
        %v2536 = vmul.f32 %v2183, %v2183
        %v2537 = vmul.f32 %v2187, %v2187
        %v2538 = vmul.f32 %v2189, %v2189
        %v2539 = vmul.f32 %v2193, %v2193
        %v2540 = vmul.f32 %v2195, %v2195
        %v2541 = vmul.f32 %v2199, %v2199
        %v2542 = vmul.f32 %v2201, %v2201
        %v2543 = vmul.f32 %v2205, %v2205
        %v2544 = vmul.f32 %v2207, %v2207
        %v2545 = vmul.f32 %v2211, %v2211
        %v2546 = vmul.f32 %v2213, %v2213
        %v2547 = vmul.f32 %v2217, %v2217
        %v2548 = vmul.f32 %v2219, %v2219
        %v2549 = vmul.f32 %v2223, %v2223
        %v2550 = vmul.f32 %v2225, %v2225
        %v2551 = vmul.f32 %v2229, %v2229
        %v2552 = vmul.f32 %v2231, %v2231
        %v2553 = vadd.f32 %v2425, %v2426
        %2554 = vadd.xlane.f32.xlu0 %v2553
        %v2555 = vpop.xlane.xlu0 %2554
        %v2556 = vadd.f32 %v2427, %v2428
        %2557 = vadd.xlane.f32.xlu0 %v2556
        %v2558 = vpop.xlane.xlu0 %2557
        %v2559 = vadd.f32 %v2429, %v2430
        %2560 = vadd.xlane.f32.xlu0 %v2559
        %v2561 = vpop.xlane.xlu0 %2560
        %v2562 = vadd.f32 %v2431, %v2432
        %2563 = vadd.xlane.f32.xlu0 %v2562
        %v2564 = vpop.xlane.xlu0 %2563
        %v2565 = vadd.f32 %v2433, %v2434
        %2566 = vadd.xlane.f32.xlu0 %v2565
        %v2567 = vpop.xlane.xlu0 %2566
        %v2568 = vadd.f32 %v2435, %v2436
        %2569 = vadd.xlane.f32.xlu0 %v2568
        %v2570 = vpop.xlane.xlu0 %2569
        %v2571 = vadd.f32 %v2437, %v2438
        %2572 = vadd.xlane.f32.xlu0 %v2571
        %v2573 = vpop.xlane.xlu0 %2572
        %v2574 = vadd.f32 %v2439, %v2440
        %2575 = vadd.xlane.f32.xlu0 %v2574
        %v2576 = vpop.xlane.xlu0 %2575
        %v2577 = vadd.f32 %v2441, %v2442
        %2578 = vadd.xlane.f32.xlu0 %v2577
        %v2579 = vpop.xlane.xlu0 %2578
        %v2580 = vadd.f32 %v2443, %v2444
        %2581 = vadd.xlane.f32.xlu0 %v2580
        %v2582 = vpop.xlane.xlu0 %2581
        %v2583 = vadd.f32 %v2445, %v2446
        %2584 = vadd.xlane.f32.xlu0 %v2583
        %v2585 = vpop.xlane.xlu0 %2584
        %v2586 = vadd.f32 %v2447, %v2448
        %2587 = vadd.xlane.f32.xlu0 %v2586
        %v2588 = vpop.xlane.xlu0 %2587
        %v2589 = vadd.f32 %v2449, %v2450
        %2590 = vadd.xlane.f32.xlu0 %v2589
        %v2591 = vpop.xlane.xlu0 %2590
        %v2592 = vadd.f32 %v2451, %v2452
        %2593 = vadd.xlane.f32.xlu0 %v2592
        %v2594 = vpop.xlane.xlu0 %2593
        %v2595 = vadd.f32 %v2453, %v2454
        %2596 = vadd.xlane.f32.xlu0 %v2595
        %v2597 = vpop.xlane.xlu0 %2596
        %v2598 = vadd.f32 %v2455, %v2456
        %2599 = vadd.xlane.f32.xlu0 %v2598
        %v2600 = vpop.xlane.xlu0 %2599
        %v2601 = vadd.f32 %v2457, %v2458
        %2602 = vadd.xlane.f32.xlu0 %v2601
        %v2603 = vpop.xlane.xlu0 %2602
        %v2604 = vadd.f32 %v2459, %v2460
        %2605 = vadd.xlane.f32.xlu0 %v2604
        %v2606 = vpop.xlane.xlu0 %2605
        %v2607 = vadd.f32 %v2461, %v2462
        %2608 = vadd.xlane.f32.xlu0 %v2607
        %v2609 = vpop.xlane.xlu0 %2608
        %v2610 = vadd.f32 %v2463, %v2464
        %2611 = vadd.xlane.f32.xlu0 %v2610
        %v2612 = vpop.xlane.xlu0 %2611
        %v2613 = vadd.f32 %v2465, %v2466
        %2614 = vadd.xlane.f32.xlu0 %v2613
        %v2615 = vpop.xlane.xlu0 %2614
        %v2616 = vadd.f32 %v2467, %v2468
        %2617 = vadd.xlane.f32.xlu0 %v2616
        %v2618 = vpop.xlane.xlu0 %2617
        %v2619 = vadd.f32 %v2469, %v2470
        %2620 = vadd.xlane.f32.xlu0 %v2619
        %v2621 = vpop.xlane.xlu0 %2620
        %v2622 = vadd.f32 %v2471, %v2472
        %2623 = vadd.xlane.f32.xlu0 %v2622
        %v2624 = vpop.xlane.xlu0 %2623
        %v2625 = vadd.f32 %v2473, %v2474
        %2626 = vadd.xlane.f32.xlu0 %v2625
        %v2627 = vpop.xlane.xlu0 %2626
        %v2628 = vadd.f32 %v2475, %v2476
        %2629 = vadd.xlane.f32.xlu0 %v2628
        %v2630 = vpop.xlane.xlu0 %2629
        %v2631 = vadd.f32 %v2477, %v2478
        %2632 = vadd.xlane.f32.xlu0 %v2631
        %v2633 = vpop.xlane.xlu0 %2632
        %v2634 = vadd.f32 %v2479, %v2480
        %2635 = vadd.xlane.f32.xlu0 %v2634
        %v2636 = vpop.xlane.xlu0 %2635
        %v2637 = vadd.f32 %v2481, %v2482
        %2638 = vadd.xlane.f32.xlu0 %v2637
        %v2639 = vpop.xlane.xlu0 %2638
        %v2640 = vadd.f32 %v2483, %v2484
        %2641 = vadd.xlane.f32.xlu0 %v2640
        %v2642 = vpop.xlane.xlu0 %2641
        %v2643 = vadd.f32 %v2485, %v2486
        %2644 = vadd.xlane.f32.xlu0 %v2643
        %v2645 = vpop.xlane.xlu0 %2644
        %v2646 = vadd.f32 %v2487, %v2488
        %2647 = vadd.xlane.f32.xlu0 %v2646
        %v2648 = vpop.xlane.xlu0 %2647
        %v2649 = vadd.f32 %v2489, %v2490
        %2650 = vadd.xlane.f32.xlu0 %v2649
        %v2651 = vpop.xlane.xlu0 %2650
        %v2652 = vadd.f32 %v2491, %v2492
        %2653 = vadd.xlane.f32.xlu0 %v2652
        %v2654 = vpop.xlane.xlu0 %2653
        %v2655 = vadd.f32 %v2493, %v2494
        %2656 = vadd.xlane.f32.xlu0 %v2655
        %v2657 = vpop.xlane.xlu0 %2656
        %v2658 = vadd.f32 %v2495, %v2496
        %2659 = vadd.xlane.f32.xlu0 %v2658
        %v2660 = vpop.xlane.xlu0 %2659
        %v2661 = vadd.f32 %v2497, %v2498
        %2662 = vadd.xlane.f32.xlu0 %v2661
        %v2663 = vpop.xlane.xlu0 %2662
        %v2664 = vadd.f32 %v2499, %v2500
        %2665 = vadd.xlane.f32.xlu0 %v2664
        %v2666 = vpop.xlane.xlu0 %2665
        %v2667 = vadd.f32 %v2501, %v2502
        %2668 = vadd.xlane.f32.xlu0 %v2667
        %v2669 = vpop.xlane.xlu0 %2668
        %v2670 = vadd.f32 %v2503, %v2504
        %2671 = vadd.xlane.f32.xlu0 %v2670
        %v2672 = vpop.xlane.xlu0 %2671
        %v2673 = vadd.f32 %v2505, %v2506
        %2674 = vadd.xlane.f32.xlu0 %v2673
        %v2675 = vpop.xlane.xlu0 %2674
        %v2676 = vadd.f32 %v2507, %v2508
        %2677 = vadd.xlane.f32.xlu0 %v2676
        %v2678 = vpop.xlane.xlu0 %2677
        %v2679 = vadd.f32 %v2509, %v2510
        %2680 = vadd.xlane.f32.xlu0 %v2679
        %v2681 = vpop.xlane.xlu0 %2680
        %v2682 = vadd.f32 %v2511, %v2512
        %2683 = vadd.xlane.f32.xlu0 %v2682
        %v2684 = vpop.xlane.xlu0 %2683
        %v2685 = vadd.f32 %v2513, %v2514
        %2686 = vadd.xlane.f32.xlu0 %v2685
        %v2687 = vpop.xlane.xlu0 %2686
        %v2688 = vadd.f32 %v2515, %v2516
        %2689 = vadd.xlane.f32.xlu0 %v2688
        %v2690 = vpop.xlane.xlu0 %2689
        %v2691 = vadd.f32 %v2517, %v2518
        %2692 = vadd.xlane.f32.xlu0 %v2691
        %v2693 = vpop.xlane.xlu0 %2692
        %v2694 = vadd.f32 %v2519, %v2520
        %2695 = vadd.xlane.f32.xlu0 %v2694
        %v2696 = vpop.xlane.xlu0 %2695
        %v2697 = vadd.f32 %v2521, %v2522
        %2698 = vadd.xlane.f32.xlu0 %v2697
        %v2699 = vpop.xlane.xlu0 %2698
        %v2700 = vadd.f32 %v2523, %v2524
        %2701 = vadd.xlane.f32.xlu0 %v2700
        %v2702 = vpop.xlane.xlu0 %2701
        %v2703 = vadd.f32 %v2525, %v2526
        %2704 = vadd.xlane.f32.xlu0 %v2703
        %v2705 = vpop.xlane.xlu0 %2704
        %v2706 = vadd.f32 %v2527, %v2528
        %2707 = vadd.xlane.f32.xlu0 %v2706
        %v2708 = vpop.xlane.xlu0 %2707
        %v2709 = vadd.f32 %v2529, %v2530
        %2710 = vadd.xlane.f32.xlu0 %v2709
        %v2711 = vpop.xlane.xlu0 %2710
        %v2712 = vadd.f32 %v2531, %v2532
        %2713 = vadd.xlane.f32.xlu0 %v2712
        %v2714 = vpop.xlane.xlu0 %2713
        %v2715 = vadd.f32 %v2533, %v2534
        %2716 = vadd.xlane.f32.xlu0 %v2715
        %v2717 = vpop.xlane.xlu0 %2716
        %v2718 = vadd.f32 %v2535, %v2536
        %2719 = vadd.xlane.f32.xlu0 %v2718
        %v2720 = vpop.xlane.xlu0 %2719
        %v2721 = vadd.f32 %v2537, %v2538
        %2722 = vadd.xlane.f32.xlu0 %v2721
        %v2723 = vpop.xlane.xlu0 %2722
        %v2724 = vadd.f32 %v2539, %v2540
        %2725 = vadd.xlane.f32.xlu0 %v2724
        %v2726 = vpop.xlane.xlu0 %2725
        %v2727 = vadd.f32 %v2541, %v2542
        %2728 = vadd.xlane.f32.xlu0 %v2727
        %v2729 = vpop.xlane.xlu0 %2728
        %v2730 = vadd.f32 %v2543, %v2544
        %2731 = vadd.xlane.f32.xlu0 %v2730
        %v2732 = vpop.xlane.xlu0 %2731
        %v2733 = vadd.f32 %v2545, %v2546
        %2734 = vadd.xlane.f32.xlu0 %v2733
        %v2735 = vpop.xlane.xlu0 %2734
        %v2736 = vadd.f32 %v2547, %v2548
        %2737 = vadd.xlane.f32.xlu0 %v2736
        %v2738 = vpop.xlane.xlu0 %2737
        %v2739 = vadd.f32 %v2549, %v2550
        %2740 = vadd.xlane.f32.xlu0 %v2739
        %v2741 = vpop.xlane.xlu0 %2740
        %v2742 = vadd.f32 %v2551, %v2552
        %2743 = vadd.xlane.f32.xlu0 %v2742
        %v2744 = vpop.xlane.xlu0 %2743
        %v2745 = vmul.f32 %v2235, 0.00390625
        %v2746 = vmul.f32 %v2238, 0.00390625
        %v2747 = vmul.f32 %v2241, 0.00390625
        %v2748 = vmul.f32 %v2244, 0.00390625
        %v2749 = vmul.f32 %v2247, 0.00390625
        %v2750 = vmul.f32 %v2250, 0.00390625
        %v2751 = vmul.f32 %v2253, 0.00390625
        %v2752 = vmul.f32 %v2256, 0.00390625
        %v2753 = vmul.f32 %v2259, 0.00390625
        %v2754 = vmul.f32 %v2262, 0.00390625
        %v2755 = vmul.f32 %v2265, 0.00390625
        %v2756 = vmul.f32 %v2268, 0.00390625
        %v2757 = vmul.f32 %v2271, 0.00390625
        %v2758 = vmul.f32 %v2274, 0.00390625
        %v2759 = vmul.f32 %v2277, 0.00390625
        %v2760 = vmul.f32 %v2280, 0.00390625
        %v2761 = vmul.f32 %v2283, 0.00390625
        %v2762 = vmul.f32 %v2286, 0.00390625
        %v2763 = vmul.f32 %v2289, 0.00390625
        %v2764 = vmul.f32 %v2292, 0.00390625
        %v2765 = vmul.f32 %v2295, 0.00390625
        %v2766 = vmul.f32 %v2298, 0.00390625
        %v2767 = vmul.f32 %v2301, 0.00390625
        %v2768 = vmul.f32 %v2304, 0.00390625
        %v2769 = vmul.f32 %v2307, 0.00390625
        %v2770 = vmul.f32 %v2310, 0.00390625
        %v2771 = vmul.f32 %v2313, 0.00390625
        %v2772 = vmul.f32 %v2316, 0.00390625
        %v2773 = vmul.f32 %v2319, 0.00390625
        %v2774 = vmul.f32 %v2322, 0.00390625
        %v2775 = vmul.f32 %v2325, 0.00390625
        %v2776 = vmul.f32 %v2328, 0.00390625
        %v2777 = vmul.f32 %v2331, 0.00390625
        %v2778 = vmul.f32 %v2334, 0.00390625
        %v2779 = vmul.f32 %v2337, 0.00390625
        %v2780 = vmul.f32 %v2340, 0.00390625
        %v2781 = vmul.f32 %v2343, 0.00390625
        %v2782 = vmul.f32 %v2346, 0.00390625
        %v2783 = vmul.f32 %v2349, 0.00390625
        %v2784 = vmul.f32 %v2352, 0.00390625
        %v2785 = vmul.f32 %v2355, 0.00390625
        %v2786 = vmul.f32 %v2358, 0.00390625
        %v2787 = vmul.f32 %v2361, 0.00390625
        %v2788 = vmul.f32 %v2364, 0.00390625
        %v2789 = vmul.f32 %v2367, 0.00390625
        %v2790 = vmul.f32 %v2370, 0.00390625
        %v2791 = vmul.f32 %v2373, 0.00390625
        %v2792 = vmul.f32 %v2376, 0.00390625
        %v2793 = vmul.f32 %v2379, 0.00390625
        %v2794 = vmul.f32 %v2382, 0.00390625
        %v2795 = vmul.f32 %v2385, 0.00390625
        %v2796 = vmul.f32 %v2388, 0.00390625
        %v2797 = vmul.f32 %v2391, 0.00390625
        %v2798 = vmul.f32 %v2394, 0.00390625
        %v2799 = vmul.f32 %v2397, 0.00390625
        %v2800 = vmul.f32 %v2400, 0.00390625
        %v2801 = vmul.f32 %v2403, 0.00390625
        %v2802 = vmul.f32 %v2406, 0.00390625
        %v2803 = vmul.f32 %v2409, 0.00390625
        %v2804 = vmul.f32 %v2412, 0.00390625
        %v2805 = vmul.f32 %v2415, 0.00390625
        %v2806 = vmul.f32 %v2418, 0.00390625
        %v2807 = vmul.f32 %v2421, 0.00390625
        %v2808 = vmul.f32 %v2424, 0.00390625
        %v2809 = vmul.f32 %v2555, 0.00390625
        %v2810 = vmul.f32 %v2558, 0.00390625
        %v2811 = vmul.f32 %v2561, 0.00390625
        %v2812 = vmul.f32 %v2564, 0.00390625
        %v2813 = vmul.f32 %v2567, 0.00390625
        %v2814 = vmul.f32 %v2570, 0.00390625
        %v2815 = vmul.f32 %v2573, 0.00390625
        %v2816 = vmul.f32 %v2576, 0.00390625
        %v2817 = vmul.f32 %v2579, 0.00390625
        %v2818 = vmul.f32 %v2582, 0.00390625
        %v2819 = vmul.f32 %v2585, 0.00390625
        %v2820 = vmul.f32 %v2588, 0.00390625
        %v2821 = vmul.f32 %v2591, 0.00390625
        %v2822 = vmul.f32 %v2594, 0.00390625
        %v2823 = vmul.f32 %v2597, 0.00390625
        %v2824 = vmul.f32 %v2600, 0.00390625
        %v2825 = vmul.f32 %v2603, 0.00390625
        %v2826 = vmul.f32 %v2606, 0.00390625
        %v2827 = vmul.f32 %v2609, 0.00390625
        %v2828 = vmul.f32 %v2612, 0.00390625
        %v2829 = vmul.f32 %v2615, 0.00390625
        %v2830 = vmul.f32 %v2618, 0.00390625
        %v2831 = vmul.f32 %v2621, 0.00390625
        %v2832 = vmul.f32 %v2624, 0.00390625
        %v2833 = vmul.f32 %v2627, 0.00390625
        %v2834 = vmul.f32 %v2630, 0.00390625
        %v2835 = vmul.f32 %v2633, 0.00390625
        %v2836 = vmul.f32 %v2636, 0.00390625
        %v2837 = vmul.f32 %v2639, 0.00390625
        %v2838 = vmul.f32 %v2642, 0.00390625
        %v2839 = vmul.f32 %v2645, 0.00390625
        %v2840 = vmul.f32 %v2648, 0.00390625
        %v2841 = vmul.f32 %v2651, 0.00390625
        %v2842 = vmul.f32 %v2654, 0.00390625
        %v2843 = vmul.f32 %v2657, 0.00390625
        %v2844 = vmul.f32 %v2660, 0.00390625
        %v2845 = vmul.f32 %v2663, 0.00390625
        %v2846 = vmul.f32 %v2666, 0.00390625
        %v2847 = vmul.f32 %v2669, 0.00390625
        %v2848 = vmul.f32 %v2672, 0.00390625
        %v2849 = vmul.f32 %v2675, 0.00390625
        %v2850 = vmul.f32 %v2678, 0.00390625
        %v2851 = vmul.f32 %v2681, 0.00390625
        %v2852 = vmul.f32 %v2684, 0.00390625
        %v2853 = vmul.f32 %v2687, 0.00390625
        %v2854 = vmul.f32 %v2690, 0.00390625
        %v2855 = vmul.f32 %v2693, 0.00390625
        %v2856 = vmul.f32 %v2696, 0.00390625
        %v2857 = vmul.f32 %v2699, 0.00390625
        %v2858 = vmul.f32 %v2702, 0.00390625
        %v2859 = vmul.f32 %v2705, 0.00390625
        %v2860 = vmul.f32 %v2708, 0.00390625
        %v2861 = vmul.f32 %v2711, 0.00390625
        %v2862 = vmul.f32 %v2714, 0.00390625
        %v2863 = vmul.f32 %v2717, 0.00390625
        %v2864 = vmul.f32 %v2720, 0.00390625
        %v2865 = vmul.f32 %v2723, 0.00390625
        %v2866 = vmul.f32 %v2726, 0.00390625
        %v2867 = vmul.f32 %v2729, 0.00390625
        %v2868 = vmul.f32 %v2732, 0.00390625
        %v2869 = vmul.f32 %v2735, 0.00390625
        %v2870 = vmul.f32 %v2738, 0.00390625
        %v2871 = vmul.f32 %v2741, 0.00390625
        %v2872 = vmul.f32 %v2744, 0.00390625
        %v2873 = vmul.f32 %v2745, %v2745
        %v2874 = vmul.f32 %v2746, %v2746
        %v2875 = vmul.f32 %v2747, %v2747
        %v2876 = vmul.f32 %v2748, %v2748
        %v2877 = vmul.f32 %v2749, %v2749
        %v2878 = vmul.f32 %v2750, %v2750
        %v2879 = vmul.f32 %v2751, %v2751
        %v2880 = vmul.f32 %v2752, %v2752
        %v2881 = vmul.f32 %v2753, %v2753
        %v2882 = vmul.f32 %v2754, %v2754
        %v2883 = vmul.f32 %v2755, %v2755
        %v2884 = vmul.f32 %v2756, %v2756
        %v2885 = vmul.f32 %v2757, %v2757
        %v2886 = vmul.f32 %v2758, %v2758
        %v2887 = vmul.f32 %v2759, %v2759
        %v2888 = vmul.f32 %v2760, %v2760
        %v2889 = vmul.f32 %v2761, %v2761
        %v2890 = vmul.f32 %v2762, %v2762
        %v2891 = vmul.f32 %v2763, %v2763
        %v2892 = vmul.f32 %v2764, %v2764
        %v2893 = vmul.f32 %v2765, %v2765
        %v2894 = vmul.f32 %v2766, %v2766
        %v2895 = vmul.f32 %v2767, %v2767
        %v2896 = vmul.f32 %v2768, %v2768
        %v2897 = vmul.f32 %v2769, %v2769
        %v2898 = vmul.f32 %v2770, %v2770
        %v2899 = vmul.f32 %v2771, %v2771
        %v2900 = vmul.f32 %v2772, %v2772
        %v2901 = vmul.f32 %v2773, %v2773
        %v2902 = vmul.f32 %v2774, %v2774
        %v2903 = vmul.f32 %v2775, %v2775
        %v2904 = vmul.f32 %v2776, %v2776
        %v2905 = vmul.f32 %v2777, %v2777
        %v2906 = vmul.f32 %v2778, %v2778
        %v2907 = vmul.f32 %v2779, %v2779
        %v2908 = vmul.f32 %v2780, %v2780
        %v2909 = vmul.f32 %v2781, %v2781
        %v2910 = vmul.f32 %v2782, %v2782
        %v2911 = vmul.f32 %v2783, %v2783
        %v2912 = vmul.f32 %v2784, %v2784
        %v2913 = vmul.f32 %v2785, %v2785
        %v2914 = vmul.f32 %v2786, %v2786
        %v2915 = vmul.f32 %v2787, %v2787
        %v2916 = vmul.f32 %v2788, %v2788
        %v2917 = vmul.f32 %v2789, %v2789
        %v2918 = vmul.f32 %v2790, %v2790
        %v2919 = vmul.f32 %v2791, %v2791
        %v2920 = vmul.f32 %v2792, %v2792
        %v2921 = vmul.f32 %v2793, %v2793
        %v2922 = vmul.f32 %v2794, %v2794
        %v2923 = vmul.f32 %v2795, %v2795
        %v2924 = vmul.f32 %v2796, %v2796
        %v2925 = vmul.f32 %v2797, %v2797
        %v2926 = vmul.f32 %v2798, %v2798
        %v2927 = vmul.f32 %v2799, %v2799
        %v2928 = vmul.f32 %v2800, %v2800
        %v2929 = vmul.f32 %v2801, %v2801
        %v2930 = vmul.f32 %v2802, %v2802
        %v2931 = vmul.f32 %v2803, %v2803
        %v2932 = vmul.f32 %v2804, %v2804
        %v2933 = vmul.f32 %v2805, %v2805
        %v2934 = vmul.f32 %v2806, %v2806
        %v2935 = vmul.f32 %v2807, %v2807
        %v2936 = vmul.f32 %v2808, %v2808
        %v2937 = vsub.f32 %v2809, %v2873
        %v2938 = vsub.f32 %v2810, %v2874
        %v2939 = vsub.f32 %v2811, %v2875
        %v2940 = vsub.f32 %v2812, %v2876
        %v2941 = vsub.f32 %v2813, %v2877
        %v2942 = vsub.f32 %v2814, %v2878
        %v2943 = vsub.f32 %v2815, %v2879
        %v2944 = vsub.f32 %v2816, %v2880
        %v2945 = vsub.f32 %v2817, %v2881
        %v2946 = vsub.f32 %v2818, %v2882
        %v2947 = vsub.f32 %v2819, %v2883
        %v2948 = vsub.f32 %v2820, %v2884
        %v2949 = vsub.f32 %v2821, %v2885
        %v2950 = vsub.f32 %v2822, %v2886
        %v2951 = vsub.f32 %v2823, %v2887
        %v2952 = vsub.f32 %v2824, %v2888
        %v2953 = vsub.f32 %v2825, %v2889
        %v2954 = vsub.f32 %v2826, %v2890
        %v2955 = vsub.f32 %v2827, %v2891
        %v2956 = vsub.f32 %v2828, %v2892
        %v2957 = vsub.f32 %v2829, %v2893
        %v2958 = vsub.f32 %v2830, %v2894
        %v2959 = vsub.f32 %v2831, %v2895
        %v2960 = vsub.f32 %v2832, %v2896
        %v2961 = vsub.f32 %v2833, %v2897
        %v2962 = vsub.f32 %v2834, %v2898
        %v2963 = vsub.f32 %v2835, %v2899
        %v2964 = vsub.f32 %v2836, %v2900
        %v2965 = vsub.f32 %v2837, %v2901
        %v2966 = vsub.f32 %v2838, %v2902
        %v2967 = vsub.f32 %v2839, %v2903
        %v2968 = vsub.f32 %v2840, %v2904
        %v2969 = vsub.f32 %v2841, %v2905
        %v2970 = vsub.f32 %v2842, %v2906
        %v2971 = vsub.f32 %v2843, %v2907
        %v2972 = vsub.f32 %v2844, %v2908
        %v2973 = vsub.f32 %v2845, %v2909
        %v2974 = vsub.f32 %v2846, %v2910
        %v2975 = vsub.f32 %v2847, %v2911
        %v2976 = vsub.f32 %v2848, %v2912
        %v2977 = vsub.f32 %v2849, %v2913
        %v2978 = vsub.f32 %v2850, %v2914
        %v2979 = vsub.f32 %v2851, %v2915
        %v2980 = vsub.f32 %v2852, %v2916
        %v2981 = vsub.f32 %v2853, %v2917
        %v2982 = vsub.f32 %v2854, %v2918
        %v2983 = vsub.f32 %v2855, %v2919
        %v2984 = vsub.f32 %v2856, %v2920
        %v2985 = vsub.f32 %v2857, %v2921
        %v2986 = vsub.f32 %v2858, %v2922
        %v2987 = vsub.f32 %v2859, %v2923
        %v2988 = vsub.f32 %v2860, %v2924
        %v2989 = vsub.f32 %v2861, %v2925
        %v2990 = vsub.f32 %v2862, %v2926
        %v2991 = vsub.f32 %v2863, %v2927
        %v2992 = vsub.f32 %v2864, %v2928
        %v2993 = vsub.f32 %v2865, %v2929
        %v2994 = vsub.f32 %v2866, %v2930
        %v2995 = vsub.f32 %v2867, %v2931
        %v2996 = vsub.f32 %v2868, %v2932
        %v2997 = vsub.f32 %v2869, %v2933
        %v2998 = vsub.f32 %v2870, %v2934
        %v2999 = vsub.f32 %v2871, %v2935
        %v3000 = vsub.f32 %v2872, %v2936
        %v3001 = vmax.f32 %v2937, 0.0
        %v3002 = vmax.f32 %v2938, 0.0
        %v3003 = vmax.f32 %v2939, 0.0
        %v3004 = vmax.f32 %v2940, 0.0
        %v3005 = vmax.f32 %v2941, 0.0
        %v3006 = vmax.f32 %v2942, 0.0
        %v3007 = vmax.f32 %v2943, 0.0
        %v3008 = vmax.f32 %v2944, 0.0
        %v3009 = vmax.f32 %v2945, 0.0
        %v3010 = vmax.f32 %v2946, 0.0
        %v3011 = vmax.f32 %v2947, 0.0
        %v3012 = vmax.f32 %v2948, 0.0
        %v3013 = vmax.f32 %v2949, 0.0
        %v3014 = vmax.f32 %v2950, 0.0
        %v3015 = vmax.f32 %v2951, 0.0
        %v3016 = vmax.f32 %v2952, 0.0
        %v3017 = vmax.f32 %v2953, 0.0
        %v3018 = vmax.f32 %v2954, 0.0
        %v3019 = vmax.f32 %v2955, 0.0
        %v3020 = vmax.f32 %v2956, 0.0
        %v3021 = vmax.f32 %v2957, 0.0
        %v3022 = vmax.f32 %v2958, 0.0
        %v3023 = vmax.f32 %v2959, 0.0
        %v3024 = vmax.f32 %v2960, 0.0
        %v3025 = vmax.f32 %v2961, 0.0
        %v3026 = vmax.f32 %v2962, 0.0
        %v3027 = vmax.f32 %v2963, 0.0
        %v3028 = vmax.f32 %v2964, 0.0
        %v3029 = vmax.f32 %v2965, 0.0
        %v3030 = vmax.f32 %v2966, 0.0
        %v3031 = vmax.f32 %v2967, 0.0
        %v3032 = vmax.f32 %v2968, 0.0
        %v3033 = vmax.f32 %v2969, 0.0
        %v3034 = vmax.f32 %v2970, 0.0
        %v3035 = vmax.f32 %v2971, 0.0
        %v3036 = vmax.f32 %v2972, 0.0
        %v3037 = vmax.f32 %v2973, 0.0
        %v3038 = vmax.f32 %v2974, 0.0
        %v3039 = vmax.f32 %v2975, 0.0
        %v3040 = vmax.f32 %v2976, 0.0
        %v3041 = vmax.f32 %v2977, 0.0
        %v3042 = vmax.f32 %v2978, 0.0
        %v3043 = vmax.f32 %v2979, 0.0
        %v3044 = vmax.f32 %v2980, 0.0
        %v3045 = vmax.f32 %v2981, 0.0
        %v3046 = vmax.f32 %v2982, 0.0
        %v3047 = vmax.f32 %v2983, 0.0
        %v3048 = vmax.f32 %v2984, 0.0
        %v3049 = vmax.f32 %v2985, 0.0
        %v3050 = vmax.f32 %v2986, 0.0
        %v3051 = vmax.f32 %v2987, 0.0
        %v3052 = vmax.f32 %v2988, 0.0
        %v3053 = vmax.f32 %v2989, 0.0
        %v3054 = vmax.f32 %v2990, 0.0
        %v3055 = vmax.f32 %v2991, 0.0
        %v3056 = vmax.f32 %v2992, 0.0
        %v3057 = vmax.f32 %v2993, 0.0
        %v3058 = vmax.f32 %v2994, 0.0
        %v3059 = vmax.f32 %v2995, 0.0
        %v3060 = vmax.f32 %v2996, 0.0
        %v3061 = vmax.f32 %v2997, 0.0
        %v3062 = vmax.f32 %v2998, 0.0
        %v3063 = vmax.f32 %v2999, 0.0
        %v3064 = vmax.f32 %v3000, 0.0
        %v3065 = vsub.f32 %v1851, %v2745
        %v3066 = vsub.f32 %v1853, %v2745
        %v3067 = vsub.f32 %v1857, %v2746
        %v3068 = vsub.f32 %v1859, %v2746
        %v3069 = vsub.f32 %v1863, %v2747
        %v3070 = vsub.f32 %v1865, %v2747
        %v3071 = vsub.f32 %v1869, %v2748
        %v3072 = vsub.f32 %v1871, %v2748
        %v3073 = vsub.f32 %v1875, %v2749
        %v3074 = vsub.f32 %v1877, %v2749
        %v3075 = vsub.f32 %v1881, %v2750
        %v3076 = vsub.f32 %v1883, %v2750
        %v3077 = vsub.f32 %v1887, %v2751
        %v3078 = vsub.f32 %v1889, %v2751
        %v3079 = vsub.f32 %v1893, %v2752
        %v3080 = vsub.f32 %v1895, %v2752
        %v3081 = vsub.f32 %v1899, %v2753
        %v3082 = vsub.f32 %v1901, %v2753
        %v3083 = vsub.f32 %v1905, %v2754
        %v3084 = vsub.f32 %v1907, %v2754
        %v3085 = vsub.f32 %v1911, %v2755
        %v3086 = vsub.f32 %v1913, %v2755
        %v3087 = vsub.f32 %v1917, %v2756
        %v3088 = vsub.f32 %v1919, %v2756
        %v3089 = vsub.f32 %v1923, %v2757
        %v3090 = vsub.f32 %v1925, %v2757
        %v3091 = vsub.f32 %v1929, %v2758
        %v3092 = vsub.f32 %v1931, %v2758
        %v3093 = vsub.f32 %v1935, %v2759
        %v3094 = vsub.f32 %v1937, %v2759
        %v3095 = vsub.f32 %v1941, %v2760
        %v3096 = vsub.f32 %v1943, %v2760
        %v3097 = vsub.f32 %v1947, %v2761
        %v3098 = vsub.f32 %v1949, %v2761
        %v3099 = vsub.f32 %v1953, %v2762
        %v3100 = vsub.f32 %v1955, %v2762
        %v3101 = vsub.f32 %v1959, %v2763
        %v3102 = vsub.f32 %v1961, %v2763
        %v3103 = vsub.f32 %v1965, %v2764
        %v3104 = vsub.f32 %v1967, %v2764
        %v3105 = vsub.f32 %v1971, %v2765
        %v3106 = vsub.f32 %v1973, %v2765
        %v3107 = vsub.f32 %v1977, %v2766
        %v3108 = vsub.f32 %v1979, %v2766
        %v3109 = vsub.f32 %v1983, %v2767
        %v3110 = vsub.f32 %v1985, %v2767
        %v3111 = vsub.f32 %v1989, %v2768
        %v3112 = vsub.f32 %v1991, %v2768
        %v3113 = vsub.f32 %v1995, %v2769
        %v3114 = vsub.f32 %v1997, %v2769
        %v3115 = vsub.f32 %v2001, %v2770
        %v3116 = vsub.f32 %v2003, %v2770
        %v3117 = vsub.f32 %v2007, %v2771
        %v3118 = vsub.f32 %v2009, %v2771
        %v3119 = vsub.f32 %v2013, %v2772
        %v3120 = vsub.f32 %v2015, %v2772
        %v3121 = vsub.f32 %v2019, %v2773
        %v3122 = vsub.f32 %v2021, %v2773
        %v3123 = vsub.f32 %v2025, %v2774
        %v3124 = vsub.f32 %v2027, %v2774
        %v3125 = vsub.f32 %v2031, %v2775
        %v3126 = vsub.f32 %v2033, %v2775
        %v3127 = vsub.f32 %v2037, %v2776
        %v3128 = vsub.f32 %v2039, %v2776
        %v3129 = vsub.f32 %v2043, %v2777
        %v3130 = vsub.f32 %v2045, %v2777
        %v3131 = vsub.f32 %v2049, %v2778
        %v3132 = vsub.f32 %v2051, %v2778
        %v3133 = vsub.f32 %v2055, %v2779
        %v3134 = vsub.f32 %v2057, %v2779
        %v3135 = vsub.f32 %v2061, %v2780
        %v3136 = vsub.f32 %v2063, %v2780
        %v3137 = vsub.f32 %v2067, %v2781
        %v3138 = vsub.f32 %v2069, %v2781
        %v3139 = vsub.f32 %v2073, %v2782
        %v3140 = vsub.f32 %v2075, %v2782
        %v3141 = vsub.f32 %v2079, %v2783
        %v3142 = vsub.f32 %v2081, %v2783
        %v3143 = vsub.f32 %v2085, %v2784
        %v3144 = vsub.f32 %v2087, %v2784
        %v3145 = vsub.f32 %v2091, %v2785
        %v3146 = vsub.f32 %v2093, %v2785
        %v3147 = vsub.f32 %v2097, %v2786
        %v3148 = vsub.f32 %v2099, %v2786
        %v3149 = vsub.f32 %v2103, %v2787
        %v3150 = vsub.f32 %v2105, %v2787
        %v3151 = vsub.f32 %v2109, %v2788
        %v3152 = vsub.f32 %v2111, %v2788
        %v3153 = vsub.f32 %v2115, %v2789
        %v3154 = vsub.f32 %v2117, %v2789
        %v3155 = vsub.f32 %v2121, %v2790
        %v3156 = vsub.f32 %v2123, %v2790
        %v3157 = vsub.f32 %v2127, %v2791
        %v3158 = vsub.f32 %v2129, %v2791
        %v3159 = vsub.f32 %v2133, %v2792
        %v3160 = vsub.f32 %v2135, %v2792
        %v3161 = vsub.f32 %v2139, %v2793
        %v3162 = vsub.f32 %v2141, %v2793
        %v3163 = vsub.f32 %v2145, %v2794
        %v3164 = vsub.f32 %v2147, %v2794
        %v3165 = vsub.f32 %v2151, %v2795
        %v3166 = vsub.f32 %v2153, %v2795
        %v3167 = vsub.f32 %v2157, %v2796
        %v3168 = vsub.f32 %v2159, %v2796
        %v3169 = vsub.f32 %v2163, %v2797
        %v3170 = vsub.f32 %v2165, %v2797
        %v3171 = vsub.f32 %v2169, %v2798
        %v3172 = vsub.f32 %v2171, %v2798
        %v3173 = vsub.f32 %v2175, %v2799
        %v3174 = vsub.f32 %v2177, %v2799
        %v3175 = vsub.f32 %v2181, %v2800
        %v3176 = vsub.f32 %v2183, %v2800
        %v3177 = vsub.f32 %v2187, %v2801
        %v3178 = vsub.f32 %v2189, %v2801
        %v3179 = vsub.f32 %v2193, %v2802
        %v3180 = vsub.f32 %v2195, %v2802
        %v3181 = vsub.f32 %v2199, %v2803
        %v3182 = vsub.f32 %v2201, %v2803
        %v3183 = vsub.f32 %v2205, %v2804
        %v3184 = vsub.f32 %v2207, %v2804
        %v3185 = vsub.f32 %v2211, %v2805
        %v3186 = vsub.f32 %v2213, %v2805
        %v3187 = vsub.f32 %v2217, %v2806
        %v3188 = vsub.f32 %v2219, %v2806
        %v3189 = vsub.f32 %v2223, %v2807
        %v3190 = vsub.f32 %v2225, %v2807
        %v3191 = vsub.f32 %v2229, %v2808
        %v3192 = vsub.f32 %v2231, %v2808
        %v3193 = vadd.f32 %v3001, 1e-12
        %v3194 = vadd.f32 %v3002, 1e-12
        %v3195 = vadd.f32 %v3003, 1e-12
        %v3196 = vadd.f32 %v3004, 1e-12
        %v3197 = vadd.f32 %v3005, 1e-12
        %v3198 = vadd.f32 %v3006, 1e-12
        %v3199 = vadd.f32 %v3007, 1e-12
        %v3200 = vadd.f32 %v3008, 1e-12
        %v3201 = vadd.f32 %v3009, 1e-12
        %v3202 = vadd.f32 %v3010, 1e-12
        %v3203 = vadd.f32 %v3011, 1e-12
        %v3204 = vadd.f32 %v3012, 1e-12
        %v3205 = vadd.f32 %v3013, 1e-12
        %v3206 = vadd.f32 %v3014, 1e-12
        %v3207 = vadd.f32 %v3015, 1e-12
        %v3208 = vadd.f32 %v3016, 1e-12
        %v3209 = vadd.f32 %v3017, 1e-12
        %v3210 = vadd.f32 %v3018, 1e-12
        %v3211 = vadd.f32 %v3019, 1e-12
        %v3212 = vadd.f32 %v3020, 1e-12
        %v3213 = vadd.f32 %v3021, 1e-12
        %v3214 = vadd.f32 %v3022, 1e-12
        %v3215 = vadd.f32 %v3023, 1e-12
        %v3216 = vadd.f32 %v3024, 1e-12
        %v3217 = vadd.f32 %v3025, 1e-12
        %v3218 = vadd.f32 %v3026, 1e-12
        %v3219 = vadd.f32 %v3027, 1e-12
        %v3220 = vadd.f32 %v3028, 1e-12
        %v3221 = vadd.f32 %v3029, 1e-12
        %v3222 = vadd.f32 %v3030, 1e-12
        %v3223 = vadd.f32 %v3031, 1e-12
        %v3224 = vadd.f32 %v3032, 1e-12
        %v3225 = vadd.f32 %v3033, 1e-12
        %v3226 = vadd.f32 %v3034, 1e-12
        %v3227 = vadd.f32 %v3035, 1e-12
        %v3228 = vadd.f32 %v3036, 1e-12
        %v3229 = vadd.f32 %v3037, 1e-12
        %v3230 = vadd.f32 %v3038, 1e-12
        %v3231 = vadd.f32 %v3039, 1e-12
        %v3232 = vadd.f32 %v3040, 1e-12
        %v3233 = vadd.f32 %v3041, 1e-12
        %v3234 = vadd.f32 %v3042, 1e-12
        %v3235 = vadd.f32 %v3043, 1e-12
        %v3236 = vadd.f32 %v3044, 1e-12
        %v3237 = vadd.f32 %v3045, 1e-12
        %v3238 = vadd.f32 %v3046, 1e-12
        %v3239 = vadd.f32 %v3047, 1e-12
        %v3240 = vadd.f32 %v3048, 1e-12
        %v3241 = vadd.f32 %v3049, 1e-12
        %v3242 = vadd.f32 %v3050, 1e-12
        %v3243 = vadd.f32 %v3051, 1e-12
        %v3244 = vadd.f32 %v3052, 1e-12
        %v3245 = vadd.f32 %v3053, 1e-12
        %v3246 = vadd.f32 %v3054, 1e-12
        %v3247 = vadd.f32 %v3055, 1e-12
        %v3248 = vadd.f32 %v3056, 1e-12
        %v3249 = vadd.f32 %v3057, 1e-12
        %v3250 = vadd.f32 %v3058, 1e-12
        %v3251 = vadd.f32 %v3059, 1e-12
        %v3252 = vadd.f32 %v3060, 1e-12
        %v3253 = vadd.f32 %v3061, 1e-12
        %v3254 = vadd.f32 %v3062, 1e-12
        %v3255 = vadd.f32 %v3063, 1e-12
        %v3256 = vadd.f32 %v3064, 1e-12
        %v3257 = vrsqrt.pop %v3193
        %v3258 = vrsqrt.pop %v3194
        %v3259 = vrsqrt.pop %v3195
        %v3260 = vrsqrt.pop %v3196
        %v3261 = vrsqrt.pop %v3197
        %v3262 = vrsqrt.pop %v3198
        %v3263 = vrsqrt.pop %v3199
        %v3264 = vrsqrt.pop %v3200
        %v3265 = vrsqrt.pop %v3201
        %v3266 = vrsqrt.pop %v3202
        %v3267 = vrsqrt.pop %v3203
        %v3268 = vrsqrt.pop %v3204
        %v3269 = vrsqrt.pop %v3205
        %v3270 = vrsqrt.pop %v3206
        %v3271 = vrsqrt.pop %v3207
        %v3272 = vrsqrt.pop %v3208
        %v3273 = vrsqrt.pop %v3209
        %v3274 = vrsqrt.pop %v3210
        %v3275 = vrsqrt.pop %v3211
        %v3276 = vrsqrt.pop %v3212
        %v3277 = vrsqrt.pop %v3213
        %v3278 = vrsqrt.pop %v3214
        %v3279 = vrsqrt.pop %v3215
        %v3280 = vrsqrt.pop %v3216
        %v3281 = vrsqrt.pop %v3217
        %v3282 = vrsqrt.pop %v3218
        %v3283 = vrsqrt.pop %v3219
        %v3284 = vrsqrt.pop %v3220
        %v3285 = vrsqrt.pop %v3221
        %v3286 = vrsqrt.pop %v3222
        %v3287 = vrsqrt.pop %v3223
        %v3288 = vrsqrt.pop %v3224
        %v3289 = vrsqrt.pop %v3225
        %v3290 = vrsqrt.pop %v3226
        %v3291 = vrsqrt.pop %v3227
        %v3292 = vrsqrt.pop %v3228
        %v3293 = vrsqrt.pop %v3229
        %v3294 = vrsqrt.pop %v3230
        %v3295 = vrsqrt.pop %v3231
        %v3296 = vrsqrt.pop %v3232
        %v3297 = vrsqrt.pop %v3233
        %v3298 = vrsqrt.pop %v3234
        %v3299 = vrsqrt.pop %v3235
        %v3300 = vrsqrt.pop %v3236
        %v3301 = vrsqrt.pop %v3237
        %v3302 = vrsqrt.pop %v3238
        %v3303 = vrsqrt.pop %v3239
        %v3304 = vrsqrt.pop %v3240
        %v3305 = vrsqrt.pop %v3241
        %v3306 = vrsqrt.pop %v3242
        %v3307 = vrsqrt.pop %v3243
        %v3308 = vrsqrt.pop %v3244
        %v3309 = vrsqrt.pop %v3245
        %v3310 = vrsqrt.pop %v3246
        %v3311 = vrsqrt.pop %v3247
        %v3312 = vrsqrt.pop %v3248
        %v3313 = vrsqrt.pop %v3249
        %v3314 = vrsqrt.pop %v3250
        %v3315 = vrsqrt.pop %v3251
        %v3316 = vrsqrt.pop %v3252
        %v3317 = vrsqrt.pop %v3253
        %v3318 = vrsqrt.pop %v3254
        %v3319 = vrsqrt.pop %v3255
        %v3320 = vrsqrt.pop %v3256
        %v3321 = vmul.f32 %v3065, %v3257
        %v3322 = vmul.f32 %v3066, %v3257
        %v3323 = vmul.f32 %v3067, %v3258
        %v3324 = vmul.f32 %v3068, %v3258
        %v3325 = vmul.f32 %v3069, %v3259
        %v3326 = vmul.f32 %v3070, %v3259
        %v3327 = vmul.f32 %v3071, %v3260
        %v3328 = vmul.f32 %v3072, %v3260
        %v3329 = vmul.f32 %v3073, %v3261
        %v3330 = vmul.f32 %v3074, %v3261
        %v3331 = vmul.f32 %v3075, %v3262
        %v3332 = vmul.f32 %v3076, %v3262
        %v3333 = vmul.f32 %v3077, %v3263
        %v3334 = vmul.f32 %v3078, %v3263
        %v3335 = vmul.f32 %v3079, %v3264
        %v3336 = vmul.f32 %v3080, %v3264
        %v3337 = vmul.f32 %v3081, %v3265
        %v3338 = vmul.f32 %v3082, %v3265
        %v3339 = vmul.f32 %v3083, %v3266
        %v3340 = vmul.f32 %v3084, %v3266
        %v3341 = vmul.f32 %v3085, %v3267
        %v3342 = vmul.f32 %v3086, %v3267
        %v3343 = vmul.f32 %v3087, %v3268
        %v3344 = vmul.f32 %v3088, %v3268
        %v3345 = vmul.f32 %v3089, %v3269
        %v3346 = vmul.f32 %v3090, %v3269
        %v3347 = vmul.f32 %v3091, %v3270
        %v3348 = vmul.f32 %v3092, %v3270
        %v3349 = vmul.f32 %v3093, %v3271
        %v3350 = vmul.f32 %v3094, %v3271
        %v3351 = vmul.f32 %v3095, %v3272
        %v3352 = vmul.f32 %v3096, %v3272
        %v3353 = vmul.f32 %v3097, %v3273
        %v3354 = vmul.f32 %v3098, %v3273
        %v3355 = vmul.f32 %v3099, %v3274
        %v3356 = vmul.f32 %v3100, %v3274
        %v3357 = vmul.f32 %v3101, %v3275
        %v3358 = vmul.f32 %v3102, %v3275
        %v3359 = vmul.f32 %v3103, %v3276
        %v3360 = vmul.f32 %v3104, %v3276
        %v3361 = vmul.f32 %v3105, %v3277
        %v3362 = vmul.f32 %v3106, %v3277
        %v3363 = vmul.f32 %v3107, %v3278
        %v3364 = vmul.f32 %v3108, %v3278
        %v3365 = vmul.f32 %v3109, %v3279
        %v3366 = vmul.f32 %v3110, %v3279
        %v3367 = vmul.f32 %v3111, %v3280
        %v3368 = vmul.f32 %v3112, %v3280
        %v3369 = vmul.f32 %v3113, %v3281
        %v3370 = vmul.f32 %v3114, %v3281
        %v3371 = vmul.f32 %v3115, %v3282
        %v3372 = vmul.f32 %v3116, %v3282
        %v3373 = vmul.f32 %v3117, %v3283
        %v3374 = vmul.f32 %v3118, %v3283
        %v3375 = vmul.f32 %v3119, %v3284
        %v3376 = vmul.f32 %v3120, %v3284
        %v3377 = vmul.f32 %v3121, %v3285
        %v3378 = vmul.f32 %v3122, %v3285
        %v3379 = vmul.f32 %v3123, %v3286
        %v3380 = vmul.f32 %v3124, %v3286
        %v3381 = vmul.f32 %v3125, %v3287
        %v3382 = vmul.f32 %v3126, %v3287
        %v3383 = vmul.f32 %v3127, %v3288
        %v3384 = vmul.f32 %v3128, %v3288
        %v3385 = vmul.f32 %v3129, %v3289
        %v3386 = vmul.f32 %v3130, %v3289
        %v3387 = vmul.f32 %v3131, %v3290
        %v3388 = vmul.f32 %v3132, %v3290
        %v3389 = vmul.f32 %v3133, %v3291
        %v3390 = vmul.f32 %v3134, %v3291
        %v3391 = vmul.f32 %v3135, %v3292
        %v3392 = vmul.f32 %v3136, %v3292
        %v3393 = vmul.f32 %v3137, %v3293
        %v3394 = vmul.f32 %v3138, %v3293
        %v3395 = vmul.f32 %v3139, %v3294
        %v3396 = vmul.f32 %v3140, %v3294
        %v3397 = vmul.f32 %v3141, %v3295
        %v3398 = vmul.f32 %v3142, %v3295
        %v3399 = vmul.f32 %v3143, %v3296
        %v3400 = vmul.f32 %v3144, %v3296
        %v3401 = vmul.f32 %v3145, %v3297
        %v3402 = vmul.f32 %v3146, %v3297
        %v3403 = vmul.f32 %v3147, %v3298
        %v3404 = vmul.f32 %v3148, %v3298
        %v3405 = vmul.f32 %v3149, %v3299
        %v3406 = vmul.f32 %v3150, %v3299
        %v3407 = vmul.f32 %v3151, %v3300
        %v3408 = vmul.f32 %v3152, %v3300
        %v3409 = vmul.f32 %v3153, %v3301
        %v3410 = vmul.f32 %v3154, %v3301
        %v3411 = vmul.f32 %v3155, %v3302
        %v3412 = vmul.f32 %v3156, %v3302
        %v3413 = vmul.f32 %v3157, %v3303
        %v3414 = vmul.f32 %v3158, %v3303
        %v3415 = vmul.f32 %v3159, %v3304
        %v3416 = vmul.f32 %v3160, %v3304
        %v3417 = vmul.f32 %v3161, %v3305
        %v3418 = vmul.f32 %v3162, %v3305
        %v3419 = vmul.f32 %v3163, %v3306
        %v3420 = vmul.f32 %v3164, %v3306
        %v3421 = vmul.f32 %v3165, %v3307
        %v3422 = vmul.f32 %v3166, %v3307
        %v3423 = vmul.f32 %v3167, %v3308
        %v3424 = vmul.f32 %v3168, %v3308
        %v3425 = vmul.f32 %v3169, %v3309
        %v3426 = vmul.f32 %v3170, %v3309
        %v3427 = vmul.f32 %v3171, %v3310
        %v3428 = vmul.f32 %v3172, %v3310
        %v3429 = vmul.f32 %v3173, %v3311
        %v3430 = vmul.f32 %v3174, %v3311
        %v3431 = vmul.f32 %v3175, %v3312
        %v3432 = vmul.f32 %v3176, %v3312
        %v3433 = vmul.f32 %v3177, %v3313
        %v3434 = vmul.f32 %v3178, %v3313
        %v3435 = vmul.f32 %v3179, %v3314
        %v3436 = vmul.f32 %v3180, %v3314
        %v3437 = vmul.f32 %v3181, %v3315
        %v3438 = vmul.f32 %v3182, %v3315
        %v3439 = vmul.f32 %v3183, %v3316
        %v3440 = vmul.f32 %v3184, %v3316
        %v3441 = vmul.f32 %v3185, %v3317
        %v3442 = vmul.f32 %v3186, %v3317
        %v3443 = vmul.f32 %v3187, %v3318
        %v3444 = vmul.f32 %v3188, %v3318
        %v3445 = vmul.f32 %v3189, %v3319
        %v3446 = vmul.f32 %v3190, %v3319
        %v3447 = vmul.f32 %v3191, %v3320
        %v3448 = vmul.f32 %v3192, %v3320
        %v3449 = vld [vmem:[#allocation8] sm:$0x3]
        %v3451 = vlaneseq
        %v3452 = vshrl.u32 %v3451, 7
        %v3453 = vsub.s32 0, %v3452
        %v3454 = vrot.slane %v3449, %v3453
        %v3455 = vlaneseq
        %v3456 = vshrl.u32 %v3455, 7
        %v3457 = vsub.s32 1, %v3456
        %v3458 = vrot.slane %v3449, %v3457
        %v3461 = vmul.f32 %v3321, %v3454
        %v3462 = vmul.f32 %v3322, %v3458
        %v3463 = vmul.f32 %v3323, %v3454
        %v3464 = vmul.f32 %v3324, %v3458
        %v3465 = vmul.f32 %v3325, %v3454
        %v3466 = vmul.f32 %v3326, %v3458
        %v3467 = vmul.f32 %v3327, %v3454
        %v3468 = vmul.f32 %v3328, %v3458
        %v3469 = vmul.f32 %v3329, %v3454
        %v3470 = vmul.f32 %v3330, %v3458
        %v3471 = vmul.f32 %v3331, %v3454
        %v3472 = vmul.f32 %v3332, %v3458
        %v3473 = vmul.f32 %v3333, %v3454
        %v3474 = vmul.f32 %v3334, %v3458
        %v3475 = vmul.f32 %v3335, %v3454
        %v3476 = vmul.f32 %v3336, %v3458
        %v3477 = vmul.f32 %v3337, %v3454
        %v3478 = vmul.f32 %v3338, %v3458
        %v3479 = vmul.f32 %v3339, %v3454
        %v3480 = vmul.f32 %v3340, %v3458
        %v3481 = vmul.f32 %v3341, %v3454
        %v3482 = vmul.f32 %v3342, %v3458
        %v3483 = vmul.f32 %v3343, %v3454
        %v3484 = vmul.f32 %v3344, %v3458
        %v3485 = vmul.f32 %v3345, %v3454
        %v3486 = vmul.f32 %v3346, %v3458
        %v3487 = vmul.f32 %v3347, %v3454
        %v3488 = vmul.f32 %v3348, %v3458
        %v3489 = vmul.f32 %v3349, %v3454
        %v3490 = vmul.f32 %v3350, %v3458
        %v3491 = vmul.f32 %v3351, %v3454
        %v3492 = vmul.f32 %v3352, %v3458
        %v3493 = vmul.f32 %v3353, %v3454
        %v3494 = vmul.f32 %v3354, %v3458
        %v3495 = vmul.f32 %v3355, %v3454
        %v3496 = vmul.f32 %v3356, %v3458
        %v3497 = vmul.f32 %v3357, %v3454
        %v3498 = vmul.f32 %v3358, %v3458
        %v3499 = vmul.f32 %v3359, %v3454
        %v3500 = vmul.f32 %v3360, %v3458
        %v3501 = vmul.f32 %v3361, %v3454
        %v3502 = vmul.f32 %v3362, %v3458
        %v3503 = vmul.f32 %v3363, %v3454
        %v3504 = vmul.f32 %v3364, %v3458
        %v3505 = vmul.f32 %v3365, %v3454
        %v3506 = vmul.f32 %v3366, %v3458
        %v3507 = vmul.f32 %v3367, %v3454
        %v3508 = vmul.f32 %v3368, %v3458
        %v3509 = vmul.f32 %v3369, %v3454
        %v3510 = vmul.f32 %v3370, %v3458
        %v3511 = vmul.f32 %v3371, %v3454
        %v3512 = vmul.f32 %v3372, %v3458
        %v3513 = vmul.f32 %v3373, %v3454
        %v3514 = vmul.f32 %v3374, %v3458
        %v3515 = vmul.f32 %v3375, %v3454
        %v3516 = vmul.f32 %v3376, %v3458
        %v3517 = vmul.f32 %v3377, %v3454
        %v3518 = vmul.f32 %v3378, %v3458
        %v3519 = vmul.f32 %v3379, %v3454
        %v3520 = vmul.f32 %v3380, %v3458
        %v3521 = vmul.f32 %v3381, %v3454
        %v3522 = vmul.f32 %v3382, %v3458
        %v3523 = vmul.f32 %v3383, %v3454
        %v3524 = vmul.f32 %v3384, %v3458
        %v3525 = vmul.f32 %v3385, %v3454
        %v3526 = vmul.f32 %v3386, %v3458
        %v3527 = vmul.f32 %v3387, %v3454
        %v3528 = vmul.f32 %v3388, %v3458
        %v3529 = vmul.f32 %v3389, %v3454
        %v3530 = vmul.f32 %v3390, %v3458
        %v3531 = vmul.f32 %v3391, %v3454
        %v3532 = vmul.f32 %v3392, %v3458
        %v3533 = vmul.f32 %v3393, %v3454
        %v3534 = vmul.f32 %v3394, %v3458
        %v3535 = vmul.f32 %v3395, %v3454
        %v3536 = vmul.f32 %v3396, %v3458
        %v3537 = vmul.f32 %v3397, %v3454
        %v3538 = vmul.f32 %v3398, %v3458
        %v3539 = vmul.f32 %v3399, %v3454
        %v3540 = vmul.f32 %v3400, %v3458
        %v3541 = vmul.f32 %v3401, %v3454
        %v3542 = vmul.f32 %v3402, %v3458
        %v3543 = vmul.f32 %v3403, %v3454
        %v3544 = vmul.f32 %v3404, %v3458
        %v3545 = vmul.f32 %v3405, %v3454
        %v3546 = vmul.f32 %v3406, %v3458
        %v3547 = vmul.f32 %v3407, %v3454
        %v3548 = vmul.f32 %v3408, %v3458
        %v3549 = vmul.f32 %v3409, %v3454
        %v3550 = vmul.f32 %v3410, %v3458
        %v3551 = vmul.f32 %v3411, %v3454
        %v3552 = vmul.f32 %v3412, %v3458
        %v3553 = vmul.f32 %v3413, %v3454
        %v3554 = vmul.f32 %v3414, %v3458
        %v3555 = vmul.f32 %v3415, %v3454
        %v3556 = vmul.f32 %v3416, %v3458
        %v3557 = vmul.f32 %v3417, %v3454
        %v3558 = vmul.f32 %v3418, %v3458
        %v3559 = vmul.f32 %v3419, %v3454
        %v3560 = vmul.f32 %v3420, %v3458
        %v3561 = vmul.f32 %v3421, %v3454
        %v3562 = vmul.f32 %v3422, %v3458
        %v3563 = vmul.f32 %v3423, %v3454
        %v3564 = vmul.f32 %v3424, %v3458
        %v3565 = vmul.f32 %v3425, %v3454
        %v3566 = vmul.f32 %v3426, %v3458
        %v3567 = vmul.f32 %v3427, %v3454
        %v3568 = vmul.f32 %v3428, %v3458
        %v3569 = vmul.f32 %v3429, %v3454
        %v3570 = vmul.f32 %v3430, %v3458
        %v3571 = vmul.f32 %v3431, %v3454
        %v3572 = vmul.f32 %v3432, %v3458
        %v3573 = vmul.f32 %v3433, %v3454
        %v3574 = vmul.f32 %v3434, %v3458
        %v3575 = vmul.f32 %v3435, %v3454
        %v3576 = vmul.f32 %v3436, %v3458
        %v3577 = vmul.f32 %v3437, %v3454
        %v3578 = vmul.f32 %v3438, %v3458
        %v3579 = vmul.f32 %v3439, %v3454
        %v3580 = vmul.f32 %v3440, %v3458
        %v3581 = vmul.f32 %v3441, %v3454
        %v3582 = vmul.f32 %v3442, %v3458
        %v3583 = vmul.f32 %v3443, %v3454
        %v3584 = vmul.f32 %v3444, %v3458
        %v3585 = vmul.f32 %v3445, %v3454
        %v3586 = vmul.f32 %v3446, %v3458
        %v3587 = vmul.f32 %v3447, %v3454
        %v3588 = vmul.f32 %v3448, %v3458
        %v3589 = vld [vmem:[#allocation10] sm:$0x3]
        %v3591 = vlaneseq
        %v3592 = vshrl.u32 %v3591, 7
        %v3593 = vsub.s32 0, %v3592
        %v3594 = vrot.slane %v3589, %v3593
        %v3595 = vlaneseq
        %v3596 = vshrl.u32 %v3595, 7
        %v3597 = vsub.s32 1, %v3596
        %v3598 = vrot.slane %v3589, %v3597
        %v3601 = vadd.f32 %v3461, %v3594
        %v3602 = vadd.f32 %v3462, %v3598
        %v3603 = vadd.f32 %v3463, %v3594
        %v3604 = vadd.f32 %v3464, %v3598
        %v3605 = vadd.f32 %v3465, %v3594
        %v3606 = vadd.f32 %v3466, %v3598
        %v3607 = vadd.f32 %v3467, %v3594
        %v3608 = vadd.f32 %v3468, %v3598
        %v3609 = vadd.f32 %v3469, %v3594
        %v3610 = vadd.f32 %v3470, %v3598
        %v3611 = vadd.f32 %v3471, %v3594
        %v3612 = vadd.f32 %v3472, %v3598
        %v3613 = vadd.f32 %v3473, %v3594
        %v3614 = vadd.f32 %v3474, %v3598
        %v3615 = vadd.f32 %v3475, %v3594
        %v3616 = vadd.f32 %v3476, %v3598
        %v3617 = vadd.f32 %v3477, %v3594
        %v3618 = vadd.f32 %v3478, %v3598
        %v3619 = vadd.f32 %v3479, %v3594
        %v3620 = vadd.f32 %v3480, %v3598
        %v3621 = vadd.f32 %v3481, %v3594
        %v3622 = vadd.f32 %v3482, %v3598
        %v3623 = vadd.f32 %v3483, %v3594
        %v3624 = vadd.f32 %v3484, %v3598
        %v3625 = vadd.f32 %v3485, %v3594
        %v3626 = vadd.f32 %v3486, %v3598
        %v3627 = vadd.f32 %v3487, %v3594
        %v3628 = vadd.f32 %v3488, %v3598
        %v3629 = vadd.f32 %v3489, %v3594
        %v3630 = vadd.f32 %v3490, %v3598
        %v3631 = vadd.f32 %v3491, %v3594
        %v3632 = vadd.f32 %v3492, %v3598
        %v3633 = vadd.f32 %v3493, %v3594
        %v3634 = vadd.f32 %v3494, %v3598
        %v3635 = vadd.f32 %v3495, %v3594
        %v3636 = vadd.f32 %v3496, %v3598
        %v3637 = vadd.f32 %v3497, %v3594
        %v3638 = vadd.f32 %v3498, %v3598
        %v3639 = vadd.f32 %v3499, %v3594
        %v3640 = vadd.f32 %v3500, %v3598
        %v3641 = vadd.f32 %v3501, %v3594
        %v3642 = vadd.f32 %v3502, %v3598
        %v3643 = vadd.f32 %v3503, %v3594
        %v3644 = vadd.f32 %v3504, %v3598
        %v3645 = vadd.f32 %v3505, %v3594
        %v3646 = vadd.f32 %v3506, %v3598
        %v3647 = vadd.f32 %v3507, %v3594
        %v3648 = vadd.f32 %v3508, %v3598
        %v3649 = vadd.f32 %v3509, %v3594
        %v3650 = vadd.f32 %v3510, %v3598
        %v3651 = vadd.f32 %v3511, %v3594
        %v3652 = vadd.f32 %v3512, %v3598
        %v3653 = vadd.f32 %v3513, %v3594
        %v3654 = vadd.f32 %v3514, %v3598
        %v3655 = vadd.f32 %v3515, %v3594
        %v3656 = vadd.f32 %v3516, %v3598
        %v3657 = vadd.f32 %v3517, %v3594
        %v3658 = vadd.f32 %v3518, %v3598
        %v3659 = vadd.f32 %v3519, %v3594
        %v3660 = vadd.f32 %v3520, %v3598
        %v3661 = vadd.f32 %v3521, %v3594
        %v3662 = vadd.f32 %v3522, %v3598
        %v3663 = vadd.f32 %v3523, %v3594
        %v3664 = vadd.f32 %v3524, %v3598
        %v3665 = vadd.f32 %v3525, %v3594
        %v3666 = vadd.f32 %v3526, %v3598
        %v3667 = vadd.f32 %v3527, %v3594
        %v3668 = vadd.f32 %v3528, %v3598
        %v3669 = vadd.f32 %v3529, %v3594
        %v3670 = vadd.f32 %v3530, %v3598
        %v3671 = vadd.f32 %v3531, %v3594
        %v3672 = vadd.f32 %v3532, %v3598
        %v3673 = vadd.f32 %v3533, %v3594
        %v3674 = vadd.f32 %v3534, %v3598
        %v3675 = vadd.f32 %v3535, %v3594
        %v3676 = vadd.f32 %v3536, %v3598
        %v3677 = vadd.f32 %v3537, %v3594
        %v3678 = vadd.f32 %v3538, %v3598
        %v3679 = vadd.f32 %v3539, %v3594
        %v3680 = vadd.f32 %v3540, %v3598
        %v3681 = vadd.f32 %v3541, %v3594
        %v3682 = vadd.f32 %v3542, %v3598
        %v3683 = vadd.f32 %v3543, %v3594
        %v3684 = vadd.f32 %v3544, %v3598
        %v3685 = vadd.f32 %v3545, %v3594
        %v3686 = vadd.f32 %v3546, %v3598
        %v3687 = vadd.f32 %v3547, %v3594
        %v3688 = vadd.f32 %v3548, %v3598
        %v3689 = vadd.f32 %v3549, %v3594
        %v3690 = vadd.f32 %v3550, %v3598
        %v3691 = vadd.f32 %v3551, %v3594
        %v3692 = vadd.f32 %v3552, %v3598
        %v3693 = vadd.f32 %v3553, %v3594
        %v3694 = vadd.f32 %v3554, %v3598
        %v3695 = vadd.f32 %v3555, %v3594
        %v3696 = vadd.f32 %v3556, %v3598
        %v3697 = vadd.f32 %v3557, %v3594
        %v3698 = vadd.f32 %v3558, %v3598
        %v3699 = vadd.f32 %v3559, %v3594
        %v3700 = vadd.f32 %v3560, %v3598
        %v3701 = vadd.f32 %v3561, %v3594
        %v3702 = vadd.f32 %v3562, %v3598
        %v3703 = vadd.f32 %v3563, %v3594
        %v3704 = vadd.f32 %v3564, %v3598
        %v3705 = vadd.f32 %v3565, %v3594
        %v3706 = vadd.f32 %v3566, %v3598
        %v3707 = vadd.f32 %v3567, %v3594
        %v3708 = vadd.f32 %v3568, %v3598
        %v3709 = vadd.f32 %v3569, %v3594
        %v3710 = vadd.f32 %v3570, %v3598
        %v3711 = vadd.f32 %v3571, %v3594
        %v3712 = vadd.f32 %v3572, %v3598
        %v3713 = vadd.f32 %v3573, %v3594
        %v3714 = vadd.f32 %v3574, %v3598
        %v3715 = vadd.f32 %v3575, %v3594
        %v3716 = vadd.f32 %v3576, %v3598
        %v3717 = vadd.f32 %v3577, %v3594
        %v3718 = vadd.f32 %v3578, %v3598
        %v3719 = vadd.f32 %v3579, %v3594
        %v3720 = vadd.f32 %v3580, %v3598
        %v3721 = vadd.f32 %v3581, %v3594
        %v3722 = vadd.f32 %v3582, %v3598
        %v3723 = vadd.f32 %v3583, %v3594
        %v3724 = vadd.f32 %v3584, %v3598
        %v3725 = vadd.f32 %v3585, %v3594
        %v3726 = vadd.f32 %v3586, %v3598
        %v3727 = vadd.f32 %v3587, %v3594
        %v3728 = vadd.f32 %v3588, %v3598
        %3729 = vst [vmem:[%s295] sm:$0xff] %v3601
        %3730 = vst [vmem:[%s295 + $0x8] sm:$0xff] %v3602
        %3731 = vst [vmem:[%s295 + $0x10] sm:$0xff] %v3603
        %3732 = vst [vmem:[%s295 + $0x18] sm:$0xff] %v3604
        %3733 = vst [vmem:[%s295 + $0x20] sm:$0xff] %v3605
        %3734 = vst [vmem:[%s295 + $0x28] sm:$0xff] %v3606
        %3735 = vst [vmem:[%s295 + $0x30] sm:$0xff] %v3607
        %3736 = vst [vmem:[%s295 + $0x38] sm:$0xff] %v3608
        %3737 = vst [vmem:[%s295 + $0x40] sm:$0xff] %v3609
        %3738 = vst [vmem:[%s295 + $0x48] sm:$0xff] %v3610
        %3739 = vst [vmem:[%s295 + $0x50] sm:$0xff] %v3611
        %3740 = vst [vmem:[%s295 + $0x58] sm:$0xff] %v3612
        %3741 = vst [vmem:[%s295 + $0x60] sm:$0xff] %v3613
        %3742 = vst [vmem:[%s295 + $0x68] sm:$0xff] %v3614
        %3743 = vst [vmem:[%s295 + $0x70] sm:$0xff] %v3615
        %3744 = vst [vmem:[%s295 + $0x78] sm:$0xff] %v3616
        %3745 = vst [vmem:[%s295 + $0x80] sm:$0xff] %v3617
        %3746 = vst [vmem:[%s295 + $0x88] sm:$0xff] %v3618
        %3747 = vst [vmem:[%s295 + $0x90] sm:$0xff] %v3619
        %3748 = vst [vmem:[%s295 + $0x98] sm:$0xff] %v3620
        %3749 = vst [vmem:[%s295 + $0xa0] sm:$0xff] %v3621
        %3750 = vst [vmem:[%s295 + $0xa8] sm:$0xff] %v3622
        %3751 = vst [vmem:[%s295 + $0xb0] sm:$0xff] %v3623
        %3752 = vst [vmem:[%s295 + $0xb8] sm:$0xff] %v3624
        %3753 = vst [vmem:[%s295 + $0xc0] sm:$0xff] %v3625
        %3754 = vst [vmem:[%s295 + $0xc8] sm:$0xff] %v3626
        %3755 = vst [vmem:[%s295 + $0xd0] sm:$0xff] %v3627
        %3756 = vst [vmem:[%s295 + $0xd8] sm:$0xff] %v3628
        %3757 = vst [vmem:[%s295 + $0xe0] sm:$0xff] %v3629
        %3758 = vst [vmem:[%s295 + $0xe8] sm:$0xff] %v3630
        %3759 = vst [vmem:[%s295 + $0xf0] sm:$0xff] %v3631
        %3760 = vst [vmem:[%s295 + $0xf8] sm:$0xff] %v3632
        %3761 = vst [vmem:[%s295 + $0x100] sm:$0xff] %v3633
        %3762 = vst [vmem:[%s295 + $0x108] sm:$0xff] %v3634
        %3763 = vst [vmem:[%s295 + $0x110] sm:$0xff] %v3635
        %3764 = vst [vmem:[%s295 + $0x118] sm:$0xff] %v3636
        %3765 = vst [vmem:[%s295 + $0x120] sm:$0xff] %v3637
        %3766 = vst [vmem:[%s295 + $0x128] sm:$0xff] %v3638
        %3767 = vst [vmem:[%s295 + $0x130] sm:$0xff] %v3639
        %3768 = vst [vmem:[%s295 + $0x138] sm:$0xff] %v3640
        %3769 = vst [vmem:[%s295 + $0x140] sm:$0xff] %v3641
        %3770 = vst [vmem:[%s295 + $0x148] sm:$0xff] %v3642
        %3771 = vst [vmem:[%s295 + $0x150] sm:$0xff] %v3643
        %3772 = vst [vmem:[%s295 + $0x158] sm:$0xff] %v3644
        %3773 = vst [vmem:[%s295 + $0x160] sm:$0xff] %v3645
        %3774 = vst [vmem:[%s295 + $0x168] sm:$0xff] %v3646
        %3775 = vst [vmem:[%s295 + $0x170] sm:$0xff] %v3647
        %3776 = vst [vmem:[%s295 + $0x178] sm:$0xff] %v3648
        %3777 = vst [vmem:[%s295 + $0x180] sm:$0xff] %v3649
        %3778 = vst [vmem:[%s295 + $0x188] sm:$0xff] %v3650
        %3779 = vst [vmem:[%s295 + $0x190] sm:$0xff] %v3651
        %3780 = vst [vmem:[%s295 + $0x198] sm:$0xff] %v3652
        %3781 = vst [vmem:[%s295 + $0x1a0] sm:$0xff] %v3653
        %3782 = vst [vmem:[%s295 + $0x1a8] sm:$0xff] %v3654
        %3783 = vst [vmem:[%s295 + $0x1b0] sm:$0xff] %v3655
        %3784 = vst [vmem:[%s295 + $0x1b8] sm:$0xff] %v3656
        %3785 = vst [vmem:[%s295 + $0x1c0] sm:$0xff] %v3657
        %3786 = vst [vmem:[%s295 + $0x1c8] sm:$0xff] %v3658
        %3787 = vst [vmem:[%s295 + $0x1d0] sm:$0xff] %v3659
        %3788 = vst [vmem:[%s295 + $0x1d8] sm:$0xff] %v3660
        %3789 = vst [vmem:[%s295 + $0x1e0] sm:$0xff] %v3661
        %3790 = vst [vmem:[%s295 + $0x1e8] sm:$0xff] %v3662
        %3791 = vst [vmem:[%s295 + $0x1f0] sm:$0xff] %v3663
        %3792 = vst [vmem:[%s295 + $0x1f8] sm:$0xff] %v3664
        %3793 = vst [vmem:[%s295 + $0x200] sm:$0xff] %v3665
        %3794 = vst [vmem:[%s295 + $0x208] sm:$0xff] %v3666
        %3795 = vst [vmem:[%s295 + $0x210] sm:$0xff] %v3667
        %3796 = vst [vmem:[%s295 + $0x218] sm:$0xff] %v3668
        %3797 = vst [vmem:[%s295 + $0x220] sm:$0xff] %v3669
        %3798 = vst [vmem:[%s295 + $0x228] sm:$0xff] %v3670
        %3799 = vst [vmem:[%s295 + $0x230] sm:$0xff] %v3671
        %3800 = vst [vmem:[%s295 + $0x238] sm:$0xff] %v3672
        %3801 = vst [vmem:[%s295 + $0x240] sm:$0xff] %v3673
        %3802 = vst [vmem:[%s295 + $0x248] sm:$0xff] %v3674
        %3803 = vst [vmem:[%s295 + $0x250] sm:$0xff] %v3675
        %3804 = vst [vmem:[%s295 + $0x258] sm:$0xff] %v3676
        %3805 = vst [vmem:[%s295 + $0x260] sm:$0xff] %v3677
        %3806 = vst [vmem:[%s295 + $0x268] sm:$0xff] %v3678
        %3807 = vst [vmem:[%s295 + $0x270] sm:$0xff] %v3679
        %3808 = vst [vmem:[%s295 + $0x278] sm:$0xff] %v3680
        %3809 = vst [vmem:[%s295 + $0x280] sm:$0xff] %v3681
        %3810 = vst [vmem:[%s295 + $0x288] sm:$0xff] %v3682
        %3811 = vst [vmem:[%s295 + $0x290] sm:$0xff] %v3683
        %3812 = vst [vmem:[%s295 + $0x298] sm:$0xff] %v3684
        %3813 = vst [vmem:[%s295 + $0x2a0] sm:$0xff] %v3685
        %3814 = vst [vmem:[%s295 + $0x2a8] sm:$0xff] %v3686
        %3815 = vst [vmem:[%s295 + $0x2b0] sm:$0xff] %v3687
        %3816 = vst [vmem:[%s295 + $0x2b8] sm:$0xff] %v3688
        %3817 = vst [vmem:[%s295 + $0x2c0] sm:$0xff] %v3689
        %3818 = vst [vmem:[%s295 + $0x2c8] sm:$0xff] %v3690
        %3819 = vst [vmem:[%s295 + $0x2d0] sm:$0xff] %v3691
        %3820 = vst [vmem:[%s295 + $0x2d8] sm:$0xff] %v3692
        %3821 = vst [vmem:[%s295 + $0x2e0] sm:$0xff] %v3693
        %3822 = vst [vmem:[%s295 + $0x2e8] sm:$0xff] %v3694
        %3823 = vst [vmem:[%s295 + $0x2f0] sm:$0xff] %v3695
        %3824 = vst [vmem:[%s295 + $0x2f8] sm:$0xff] %v3696
        %3825 = vst [vmem:[%s295 + $0x300] sm:$0xff] %v3697
        %3826 = vst [vmem:[%s295 + $0x308] sm:$0xff] %v3698
        %3827 = vst [vmem:[%s295 + $0x310] sm:$0xff] %v3699
        %3828 = vst [vmem:[%s295 + $0x318] sm:$0xff] %v3700
        %3829 = vst [vmem:[%s295 + $0x320] sm:$0xff] %v3701
        %3830 = vst [vmem:[%s295 + $0x328] sm:$0xff] %v3702
        %3831 = vst [vmem:[%s295 + $0x330] sm:$0xff] %v3703
        %3832 = vst [vmem:[%s295 + $0x338] sm:$0xff] %v3704
        %3833 = vst [vmem:[%s295 + $0x340] sm:$0xff] %v3705
        %3834 = vst [vmem:[%s295 + $0x348] sm:$0xff] %v3706
        %3835 = vst [vmem:[%s295 + $0x350] sm:$0xff] %v3707
        %3836 = vst [vmem:[%s295 + $0x358] sm:$0xff] %v3708
        %3837 = vst [vmem:[%s295 + $0x360] sm:$0xff] %v3709
        %3838 = vst [vmem:[%s295 + $0x368] sm:$0xff] %v3710
        %3839 = vst [vmem:[%s295 + $0x370] sm:$0xff] %v3711
        %3840 = vst [vmem:[%s295 + $0x378] sm:$0xff] %v3712
        %3841 = vst [vmem:[%s295 + $0x380] sm:$0xff] %v3713
        %3842 = vst [vmem:[%s295 + $0x388] sm:$0xff] %v3714
        %3843 = vst [vmem:[%s295 + $0x390] sm:$0xff] %v3715
        %3844 = vst [vmem:[%s295 + $0x398] sm:$0xff] %v3716
        %3845 = vst [vmem:[%s295 + $0x3a0] sm:$0xff] %v3717
        %3846 = vst [vmem:[%s295 + $0x3a8] sm:$0xff] %v3718
        %3847 = vst [vmem:[%s295 + $0x3b0] sm:$0xff] %v3719
        %3848 = vst [vmem:[%s295 + $0x3b8] sm:$0xff] %v3720
        %3849 = vst [vmem:[%s295 + $0x3c0] sm:$0xff] %v3721
        %3850 = vst [vmem:[%s295 + $0x3c8] sm:$0xff] %v3722
        %3851 = vst [vmem:[%s295 + $0x3d0] sm:$0xff] %v3723
        %3852 = vst [vmem:[%s295 + $0x3d8] sm:$0xff] %v3724
        %3853 = vst [vmem:[%s295 + $0x3e0] sm:$0xff] %v3725
        %3854 = vst [vmem:[%s295 + $0x3e8] sm:$0xff] %v3726
        %3855 = vst [vmem:[%s295 + $0x3f0] sm:$0xff] %v3727
        %3856 = vst [vmem:[%s295 + $0x3f8] sm:$0xff] %v3728
        %s3857 = sand.u32 %s142, 1
        %s3858 = scalar_lea.sflag [#allocation4], %s3857
        %s3859 = sand.u32 %s142, 1
        %s3860 = smul.addr %s3859, 1024
        %s3861 = scalar_lea.vmem [#allocation11], %s3860
        // Predicated region
        $region61: #{tpu_custom_call.1} parent=39 // pred_check
          %p3862 = pneg %p152
        $region62: #{tpu_custom_call.1} parent=39 // pred_check_branch
          %3864 = sbr.rel (%p3862) target = $region64
        $region63: #{tpu_custom_call.1} parent=39 // pred_region
          %s3865 = smul.u32 64, %s24
          %s3867 = ssub.s32 16384, 16384
          %3868 = vsyncadd %s3858, %s3867
          %s3869 = smul.addr %s3865, 2
          %s3870 = smul.addr %s3869, 128
          %s3871 = scalar_lea.hbm %s5, %s3870
          %s3872 = sshll.u32 %s3861, 4
          %s3873 = int_to_ptr.vmem [resolvable:$true] %s3872
          %3878 = dma.vmem_to_hbm [thread:$0]  %s3873, 16384, %s3871, %s3858, 256, 256, 16
        $region64: #{tpu_custom_call.1} parent=39 // pred_fallthru
          _
      $region40: #{tpu_custom_call.1} parent=5 // pred_fallthru
        _
      %p3879 = scmp.le.s32.totalorder 2, %s19
      // Predicated region
      $region65: #{tpu_custom_call.1} parent=5 // pred_check
        %p3880 = pneg %p3879
      $region66: #{tpu_custom_call.1} parent=5 // pred_check_branch
        %3882 = sbr.rel (%p3880) target = $region68
      $region67: #{tpu_custom_call.1} parent=5 // pred_region
        %s3883 = ssub.s32 %s19, 2
        // Predicated region
        $region69: #{tpu_custom_call.1} parent=67 // pred_check
          %p3884 = pneg %p158
        $region70: #{tpu_custom_call.1} parent=67 // pred_check_branch
          %3886 = sbr.rel (%p3884) target = $region72
        $region71: #{tpu_custom_call.1} parent=67 // pred_region
          %s3887 = sand.u32 %s143, 1
          %s3888 = scalar_lea.sflag [#allocation4], %s3887
          %s3889 = sand.u32 %s143, 1
          %s3890 = smul.addr %s3889, 1024
          %s3891 = scalar_lea.vmem [#allocation11], %s3890
          %3892 = dma.done %s3888, 16384
        $region72: #{tpu_custom_call.1} parent=67 // pred_fallthru
          _
      $region68: #{tpu_custom_call.1} parent=5 // pred_fallthru
        _
    $region6: #{tpu_custom_call.1} parent=1 // loop_footer
      %s23 = sadd.s32 1, %s19
    $region7: #{tpu_custom_call.1} parent=1 // loop_footer_branch
      %18 = sbr.rel target = $region3
    $region8: #{tpu_custom_call.1} parent=1 // loop_exit
      _
    %3893 = vsyncpa [#allocation3], 1
    %s3894 = scalar_lea.sflag [#allocation3], 1
    %3895 = vsyncpa %s3894, 1
    %3896 = vsyncpa [#allocation6], 1
    %3897 = vsyncpa [#allocation9], 1
    %3898 = vsyncpa [#allocation4], 1
    %s3899 = scalar_lea.sflag [#allocation4], 1
    %3900 = vsyncpa %s3899, 1

</llo_original>
